<compile_context>
chip_gen: v7x
topology: tpu7x:2x2x1
jax: 0.10.0
libtpu: 0.0.40
codegen_flags: <defaults>
</compile_context>

<pallas_src>
import functools
import numpy as np
import jax
import jax.numpy as jnp
from jax import lax
from jax.experimental import pallas as pl
from jax.experimental.pallas import tpu as pltpu


def _round_up(x, m):
    return (x + m - 1) // m * m


def _vmem_limit_bytes():
    """~96-100 MiB on v5e/v6e (128 MiB VMEM), ~48 MiB on v7x (64 MiB VMEM)."""
    default = 64 * 1024 * 1024
    try:
        cap = int(pltpu.get_tpu_info().vmem_capacity_bytes)
        if cap <= 0:
            return default
        return int(min(cap * 3 // 4, 100 * 1024 * 1024))
    except Exception:
        return default


# ---------------------------------------------------------------------------
# Fused whole-decoder kernel (one batch element per grid step)
# ---------------------------------------------------------------------------
def _decoder_kernel(x_ref, *refs, down_t, dilations, matmul_dtype):
    o_ref = refs[-1]
    md = matmul_dtype

    def conv3(h_f32, w_val, b_val, dil):
        # Cast ONCE before building the tap concat (half the xcat VMEM / cast work).
        hm = h_f32.astype(md)
        T, Cin = hm.shape
        z = jnp.zeros((dil, Cin), md)
        hp = jnp.concatenate([z, hm, z], axis=0)                 # (T + 2*dil, Cin)
        xcat = jnp.concatenate([hp[k * dil:k * dil + T, :] for k in range(3)],
                               axis=-1)                          # (T, 3*Cin)
        return jnp.dot(xcat, w_val, preferred_element_type=jnp.float32) + b_val

    # ---- Conv1d(out_emb, width, 3,1,1) -> ReLU -------------------------------
    h = jnp.maximum(conv3(x_ref[...], refs[0][...], refs[1][...], 1), 0.0)
    r = 2

    # ---- down_t x (Resnet1D + nearest-2x upsample + Conv1d(3,1,1)) -----------
    for _ in range(down_t):
        w1, b1, w2, b2, we, wo, ub = refs[r:r + 7]
        r += 7
        for j, dil in enumerate(dilations):           # reverse-dilation res blocks
            t = conv3(jnp.maximum(h, 0.0), w1[j], b1[j], dil)    # pre-ReLU + dilated conv
            t = jnp.maximum(t, 0.0).astype(md)                   # ReLU, then 1x1 conv
            h = h + jnp.dot(t, w2[j], preferred_element_type=jnp.float32) + b2[j]

        # Fused upsample + conv with precombined 2-tap polyphase weights.
        T, C = h.shape
        hm = h.astype(md)                                        # cast once, then slice
        z = jnp.zeros((1, C), md)
        hp = jnp.concatenate([z, hm, z], axis=0)                 # (T + 2, C)
        ubv = ub[...]
        even = jnp.dot(jnp.concatenate([hp[0:T], hp[1:T + 1]], axis=-1), we[...],
                       preferred_element_type=jnp.float32) + ubv        # (T, C)
        odd = jnp.dot(jnp.concatenate([hp[1:T + 1], hp[2:T + 2]], axis=-1), wo[...],
                      preferred_element_type=jnp.float32) + ubv         # (T, C)

        # Row-interleave even/odd -> (2T, C) via exact 0/1 selection matmuls
        # (kept f32 so the interleave is bit-exact in both matmul dtypes).
        rows = lax.broadcasted_iota(jnp.int32, (2 * T, T), 0)
        cols = lax.broadcasted_iota(jnp.int32, (2 * T, T), 1)
        sel_e = jnp.where(rows == 2 * cols, 1.0, 0.0)
        sel_o = jnp.where(rows == 2 * cols + 1, 1.0, 0.0)
        h = (jnp.dot(sel_e, even, preferred_element_type=jnp.float32)
             + jnp.dot(sel_o, odd, preferred_element_type=jnp.float32))  # (2T, C)

    # ---- Conv1d(w,w,3,1,1) -> ReLU -> Conv1d(w,input_emb,3,1,1) --------------
    wm, bm, wout, bout = refs[r:r + 4]
    m = jnp.maximum(conv3(h, wm[...], bm[...], 1), 0.0)
    o = conv3(m, wout[...], bout[...], 1)                        # (T_out, opad)
    o_ref[...] = o.astype(o_ref.dtype)


# ---------------------------------------------------------------------------
# BlockSpec helpers
# ---------------------------------------------------------------------------
def _batch_spec(tail_shape):
    nd = len(tail_shape)
    return pl.BlockSpec((None,) + tuple(tail_shape),
                        lambda n, _nd=nd: (n,) + (0,) * _nd)


def _const_spec(shape):
    # Constant index map across the batch grid -> Pallas only DMAs the block once.
    # TODO(synk): at production width=512 add pipeline_mode=pl.Buffered(1) so these
    # constant weights are not double-buffered (saves ~10 MiB VMEM on v7x).
    nd = len(shape)
    return pl.BlockSpec(tuple(shape), lambda n, _nd=nd: (0,) * _nd)


# ---------------------------------------------------------------------------
# Parameter init (deterministic, PyTorch-Conv1d-like uniform fan-in scaling)
# ---------------------------------------------------------------------------
def init_conv(key, cin, cout, k):
    k1, k2 = jax.random.split(key)
    s = 1.0 / np.sqrt(cin * k)
    w = jax.random.uniform(k1, (k, cin, cout), jnp.float32, -s, s)   # (K, Cin, Cout)
    b = jax.random.uniform(k2, (cout,), jnp.float32, -s, s)
    return w, b


def init_decoder_params(key, input_emb_width, output_emb_width, width, down_t, depth):
    n_keys = 3 + down_t * (2 * depth + 1)
    keys = iter(jax.random.split(key, n_keys))
    params = {"conv_in": init_conv(next(keys), output_emb_width, width, 3)}
    for i in range(down_t):
        for j in range(depth):
            params[f"res_{i}_{j}_conv1"] = init_conv(next(keys), width, width, 3)
            params[f"res_{i}_{j}_conv2"] = init_conv(next(keys), width, width, 1)
        params[f"up_conv_{i}"] = init_conv(next(keys), width, width, 3)
    params["conv_mid"] = init_conv(next(keys), width, width, 3)
    params["conv_out"] = init_conv(next(keys), width, input_emb_width, 3)
    return params


# ---------------------------------------------------------------------------
# One-time weight preparation: pad width/output channels to 128 multiples,
# flatten taps, precombine polyphase upsample weights, cast to matmul dtype.
# ---------------------------------------------------------------------------
def prepare_params(params, *, width, input_emb_width, down_t, depth,
                   matmul_dtype=jnp.bfloat16):
    cpad = _round_up(width, 128)
    opad = _round_up(input_emb_width, 128)

    def pad_w(w, cin_to, cout_to):
        k, cin, cout = w.shape
        return jnp.pad(w, ((0, 0), (0, cin_to - cin), (0, cout_to - cout)))

    def flat(w):                                   # (K, Cin, Cout) -> (K*Cin, Cout)
        return w.reshape(-1, w.shape[2]).astype(matmul_dtype)

    def pad_b(b, cto):
        return jnp.pad(b, (0, cto - b.shape[0])).reshape(1, cto).astype(jnp.float32)

    prep = {}
    w, b = params["conv_in"]                       # (3, out_emb, width)
    # True (unpadded) input channels: K = 3*out_emb, no zero contraction, 4x less DMA.
    prep["conv_in_w"] = flat(pad_w(w, w.shape[1], cpad))
    prep["conv_in_b"] = pad_b(b, cpad)

    for i in range(down_t):
        w1s, b1s, w2s, b2s = [], [], [], []
        for j in range(depth):
            w1, b1 = params[f"res_{i}_{j}_conv1"]  # (3, width, width)
            w2, b2 = params[f"res_{i}_{j}_conv2"]  # (1, width, width)
            w1s.append(flat(pad_w(w1, cpad, cpad)))                  # (3*cpad, cpad)
            b1s.append(pad_b(b1, cpad))
            w2s.append(pad_w(w2, cpad, cpad)[0].astype(matmul_dtype))  # (cpad, cpad)
            b2s.append(pad_b(b2, cpad))
        prep[f"stage{i}_w1"] = jnp.stack(w1s)      # (depth, 3*cpad, cpad)
        prep[f"stage{i}_b1"] = jnp.stack(b1s)      # (depth, 1, cpad)
        prep[f"stage{i}_w2"] = jnp.stack(w2s)      # (depth, cpad, cpad)
        prep[f"stage{i}_b2"] = jnp.stack(b2s)      # (depth, 1, cpad)

        # Precombined 2-tap polyphase weights for nearest-2x upsample + conv:
        #   even[t] = w0 h[t-1] + (w1+w2) h[t];   odd[t] = (w0+w1) h[t] + w2 h[t+1]
        uw, ub = params[f"up_conv_{i}"]
        uwp = pad_w(uw, cpad, cpad)                # (3, cpad, cpad) f32
        prep[f"stage{i}_we"] = jnp.concatenate([uwp[0], uwp[1] + uwp[2]],
                                               axis=0).astype(matmul_dtype)
        prep[f"stage{i}_wo"] = jnp.concatenate([uwp[0] + uwp[1], uwp[2]],
                                               axis=0).astype(matmul_dtype)
        prep[f"stage{i}_ub"] = pad_b(ub, cpad)

    wm, bm = params["conv_mid"]
    prep["mid_w"] = flat(pad_w(wm, cpad, cpad))
    prep["mid_b"] = pad_b(bm, cpad)
    wo, bo = params["conv_out"]                    # (3, width, input_emb)
    prep["out_w"] = flat(pad_w(wo, cpad, opad))
    prep["out_b"] = pad_b(bo, opad)
    return prep


# ---------------------------------------------------------------------------
# Full Decoder forward: ONE fused Pallas kernel
# ---------------------------------------------------------------------------
def decoder_forward(prep, x_ncl, *, down_t, depth, dilation_growth_rate,
                    width, input_emb_width, matmul_dtype=jnp.bfloat16):
    cpad = _round_up(width, 128)
    opad = _round_up(input_emb_width, 128)
    dilations = tuple(dilation_growth_rate ** d for d in range(depth))[::-1]  # reversed

    x = jnp.transpose(x_ncl, (0, 2, 1))            # (N, T, Cin) channels-last
    N, T, cin = x.shape
    t_out = T * (2 ** down_t)

    consts = [prep["conv_in_w"], prep["conv_in_b"]]
    for i in range(down_t):
        consts += [prep[f"stage{i}_w1"], prep[f"stage{i}_b1"],
                   prep[f"stage{i}_w2"], prep[f"stage{i}_b2"],
                   prep[f"stage{i}_we"], prep[f"stage{i}_wo"], prep[f"stage{i}_ub"]]
    consts += [prep["mid_w"], prep["mid_b"], prep["out_w"], prep["out_b"]]

    kernel = functools.partial(_decoder_kernel, down_t=down_t,
                               dilations=dilations, matmul_dtype=matmul_dtype)

    out = pl.pallas_call(
        kernel,
        grid=(N,),
        in_specs=[_batch_spec((T, cin))] + [_const_spec(c.shape) for c in consts],
        out_specs=_batch_spec((t_out, opad)),
        out_shape=jax.ShapeDtypeStruct((N, t_out, opad), jnp.float32),
        compiler_params=pltpu.CompilerParams(
            dimension_semantics=("parallel",),
            vmem_limit_bytes=_vmem_limit_bytes()),
    )(x, *consts)

    # Layout already (N, T, C) (PyTorch's final permute); drop the lane padding.
    return out[:, :, :input_emb_width]


# ---------------------------------------------------------------------------
# Pure-JAX reference (lax.conv_general_dilated, f32) for correctness checks
# ---------------------------------------------------------------------------
def conv1d_ref(x_ncl, w, b, dilation=1):
    wt = jnp.transpose(w, (2, 1, 0))               # (Cout, Cin, K)
    pad = dilation * (w.shape[0] - 1) // 2
    y = jax.lax.conv_general_dilated(
        x_ncl, wt, window_strides=(1,), padding=[(pad, pad)],
        rhs_dilation=(dilation,), dimension_numbers=("NCH", "OIH", "NCH"))
    return y + b[None, :, None]


def decoder_ref(params, x_ncl, *, down_t, depth, dilation_growth_rate):
    dilations = [dilation_growth_rate ** d for d in range(depth)][::-1]
    h = jax.nn.relu(conv1d_ref(x_ncl, *params["conv_in"]))
    for i in range(down_t):
        for j, dil in enumerate(dilations):
            w1, b1 = params[f"res_{i}_{j}_conv1"]
            w2, b2 = params[f"res_{i}_{j}_conv2"]
            r = h
            h2 = conv1d_ref(jax.nn.relu(h), w1, b1, dil)
            h = conv1d_ref(jax.nn.relu(h2), w2, b2, 1) + r
        h = jnp.repeat(h, 2, axis=2)
        h = conv1d_ref(h, *params[f"up_conv_{i}"])
    h = jax.nn.relu(conv1d_ref(h, *params["conv_mid"]))
    h = conv1d_ref(h, *params["conv_out"])
    return jnp.transpose(h, (0, 2, 1))


if __name__ == "__main__":
    # Small, module-consistent config (module defaults scaled down).
    N, T = 2, 16
    input_emb_width, output_emb_width, width = 3, 32, 32
    down_t, depth, dilation_growth_rate = 2, 3, 3

    key = jax.random.PRNGKey(0)
    kp, kx = jax.random.split(key)
    params = init_decoder_params(kp, input_emb_width, output_emb_width, width,
                                 down_t, depth)
    x = jax.random.normal(kx, (N, output_emb_width, T), jnp.float32)   # NCL input

    cfg = dict(down_t=down_t, depth=depth, dilation_growth_rate=dilation_growth_rate,
               width=width, input_emb_width=input_emb_width)
    pcfg = dict(width=width, input_emb_width=input_emb_width,
                down_t=down_t, depth=depth)

    # Optimized path: bf16 MXU operands, f32 accumulation / elementwise math.
    prep_bf16 = prepare_params(params, matmul_dtype=jnp.bfloat16, **pcfg)
    fwd_bf16 = jax.jit(functools.partial(decoder_forward,
                                         matmul_dtype=jnp.bfloat16, **cfg))
    out = jax.block_until_ready(fwd_bf16(prep_bf16, x))
    assert out.shape == (N, T * (2 ** down_t), input_emb_width), out.shape

    ref = jax.block_until_ready(
        decoder_ref(params, x, down_t=down_t, depth=depth,
                    dilation_growth_rate=dilation_growth_rate))

    # Strict structural check: same fused kernel with f32 matmul operands.
    prep_f32 = prepare_params(params, matmul_dtype=jnp.float32, **pcfg)
    fwd_f32 = jax.jit(functools.partial(decoder_forward,
                                        matmul_dtype=jnp.float32, **cfg))
    out_f32 = jax.block_until_ready(fwd_f32(prep_f32, x))
    np.testing.assert_allclose(np.asarray(out_f32), np.asarray(ref),
                               rtol=1e-3, atol=1e-3)

    # Sanity checks of the bf16-operand fast path against the f32 reference.
    err = (np.linalg.norm(np.asarray(out) - np.asarray(ref))
           / max(np.linalg.norm(np.asarray(ref)), 1e-12))
    assert err < 5e-2, f"bf16 relative error too large: {err}"
    np.testing.assert_allclose(np.asarray(out), np.asarray(ref),
                               rtol=1e-1, atol=1e-1)

    print("KERNEL_OK")
</pallas_src>

<mosaic_0001>
module attributes {stable_mosaic.version = 11 : i64} {
  func.func @_decoder_kernel(%arg0: i32, %arg1: memref<1x16x32xf32, #tpu.memory_space<vmem>>, %arg2: memref<96x128xbf16, #tpu.memory_space<vmem>>, %arg3: memref<1x128xf32, #tpu.memory_space<vmem>>, %arg4: memref<3x384x128xbf16, #tpu.memory_space<vmem>>, %arg5: memref<3x1x128xf32, #tpu.memory_space<vmem>>, %arg6: memref<3x128x128xbf16, #tpu.memory_space<vmem>>, %arg7: memref<3x1x128xf32, #tpu.memory_space<vmem>>, %arg8: memref<256x128xbf16, #tpu.memory_space<vmem>>, %arg9: memref<256x128xbf16, #tpu.memory_space<vmem>>, %arg10: memref<1x128xf32, #tpu.memory_space<vmem>>, %arg11: memref<3x384x128xbf16, #tpu.memory_space<vmem>>, %arg12: memref<3x1x128xf32, #tpu.memory_space<vmem>>, %arg13: memref<3x128x128xbf16, #tpu.memory_space<vmem>>, %arg14: memref<3x1x128xf32, #tpu.memory_space<vmem>>, %arg15: memref<256x128xbf16, #tpu.memory_space<vmem>>, %arg16: memref<256x128xbf16, #tpu.memory_space<vmem>>, %arg17: memref<1x128xf32, #tpu.memory_space<vmem>>, %arg18: memref<384x128xbf16, #tpu.memory_space<vmem>>, %arg19: memref<1x128xf32, #tpu.memory_space<vmem>>, %arg20: memref<384x128xbf16, #tpu.memory_space<vmem>>, %arg21: memref<1x128xf32, #tpu.memory_space<vmem>>, %arg22: memref<1x64x128xf32, #tpu.memory_space<vmem>>) attributes {dimension_semantics = [#tpu.dimension_semantics<parallel>], iteration_bounds = array<i64: 2>, scalar_prefetch = 0 : i64, scratch_operands = 0 : i64, tpu.core_type = #tpu.core_type<tc>, window_params = [{transform_indices = @transform_0, window_bounds = array<i64: 1, 16, 32>}, {pipeline_mode = #tpu.pipeline_mode<synchronous>, transform_indices = @transform_1, window_bounds = array<i64: 96, 128>}, {pipeline_mode = #tpu.pipeline_mode<synchronous>, transform_indices = @transform_2, window_bounds = array<i64: 1, 128>}, {pipeline_mode = #tpu.pipeline_mode<synchronous>, transform_indices = @transform_3, window_bounds = array<i64: 3, 384, 128>}, {pipeline_mode = #tpu.pipeline_mode<synchronous>, transform_indices = @transform_4, window_bounds = array<i64: 3, 1, 128>}, {pipeline_mode = #tpu.pipeline_mode<synchronous>, transform_indices = @transform_5, window_bounds = array<i64: 3, 128, 128>}, {pipeline_mode = #tpu.pipeline_mode<synchronous>, transform_indices = @transform_6, window_bounds = array<i64: 3, 1, 128>}, {pipeline_mode = #tpu.pipeline_mode<synchronous>, transform_indices = @transform_7, window_bounds = array<i64: 256, 128>}, {pipeline_mode = #tpu.pipeline_mode<synchronous>, transform_indices = @transform_8, window_bounds = array<i64: 256, 128>}, {pipeline_mode = #tpu.pipeline_mode<synchronous>, transform_indices = @transform_9, window_bounds = array<i64: 1, 128>}, {pipeline_mode = #tpu.pipeline_mode<synchronous>, transform_indices = @transform_10, window_bounds = array<i64: 3, 384, 128>}, {pipeline_mode = #tpu.pipeline_mode<synchronous>, transform_indices = @transform_11, window_bounds = array<i64: 3, 1, 128>}, {pipeline_mode = #tpu.pipeline_mode<synchronous>, transform_indices = @transform_12, window_bounds = array<i64: 3, 128, 128>}, {pipeline_mode = #tpu.pipeline_mode<synchronous>, transform_indices = @transform_13, window_bounds = array<i64: 3, 1, 128>}, {pipeline_mode = #tpu.pipeline_mode<synchronous>, transform_indices = @transform_14, window_bounds = array<i64: 256, 128>}, {pipeline_mode = #tpu.pipeline_mode<synchronous>, transform_indices = @transform_15, window_bounds = array<i64: 256, 128>}, {pipeline_mode = #tpu.pipeline_mode<synchronous>, transform_indices = @transform_16, window_bounds = array<i64: 1, 128>}, {pipeline_mode = #tpu.pipeline_mode<synchronous>, transform_indices = @transform_17, window_bounds = array<i64: 384, 128>}, {pipeline_mode = #tpu.pipeline_mode<synchronous>, transform_indices = @transform_18, window_bounds = array<i64: 1, 128>}, {pipeline_mode = #tpu.pipeline_mode<synchronous>, transform_indices = @transform_19, window_bounds = array<i64: 384, 128>}, {pipeline_mode = #tpu.pipeline_mode<synchronous>, transform_indices = @transform_20, window_bounds = array<i64: 1, 128>}, {transform_indices = @transform_21, window_bounds = array<i64: 1, 64, 128>}]} {
    %c0 = arith.constant 0 : index
    %c0_0 = arith.constant 0 : index
    %c0_1 = arith.constant 0 : index
    %0 = vector.load %arg1[%c0, %c0_0, %c0_1] : memref<1x16x32xf32, #tpu.memory_space<vmem>>, vector<1x16x32xf32>
    %1 = vector.shape_cast %0 : vector<1x16x32xf32> to vector<16x32xf32>
    %c0_2 = arith.constant 0 : index
    %c0_3 = arith.constant 0 : index
    %2 = vector.load %arg2[%c0_2, %c0_3] : memref<96x128xbf16, #tpu.memory_space<vmem>>, vector<96x128xbf16>
    %c0_4 = arith.constant 0 : index
    %c0_5 = arith.constant 0 : index
    %3 = vector.load %arg3[%c0_4, %c0_5] : memref<1x128xf32, #tpu.memory_space<vmem>>, vector<1x128xf32>
    %4 = arith.truncf %1 : vector<16x32xf32> to vector<16x32xbf16>
    %cst = arith.constant 0.000000e+00 : bf16
    %5 = vector.broadcast %cst : bf16 to vector<1x32xbf16>
    %6 = tpu.concatenate %5, %4, %5 in 0 : vector<1x32xbf16>, vector<16x32xbf16>, vector<1x32xbf16> -> vector<18x32xbf16>
    %7 = vector.extract_strided_slice %6 {offsets = [0, 0], sizes = [16, 32], strides = [1, 1]} : vector<18x32xbf16> to vector<16x32xbf16>
    %8 = vector.extract_strided_slice %6 {offsets = [1, 0], sizes = [16, 32], strides = [1, 1]} : vector<18x32xbf16> to vector<16x32xbf16>
    %9 = vector.extract_strided_slice %6 {offsets = [2, 0], sizes = [16, 32], strides = [1, 1]} : vector<18x32xbf16> to vector<16x32xbf16>
    %10 = tpu.concatenate %7, %8, %9 in 1 : vector<16x32xbf16>, vector<16x32xbf16>, vector<16x32xbf16> -> vector<16x96xbf16>
    %cst_6 = arith.constant dense<0.000000e+00> : vector<16x128xf32>
    %11 = tpu.matmul %10, %2, %cst_6 {dimension_numbers = #tpu.dot_dimension_numbers<[1], [0], [0], [1], [0, 0, 1, 1], [], []>} : vector<16x96xbf16>, vector<96x128xbf16>, vector<16x128xf32> -> vector<16x128xf32>
    %12 = vector.broadcast %3 : vector<1x128xf32> to vector<16x128xf32>
    %13 = arith.addf %11, %12 : vector<16x128xf32>
    %cst_7 = arith.constant 0.000000e+00 : f32
    %14 = vector.broadcast %cst_7 : f32 to vector<16x128xf32>
    %15 = arith.maximumf %13, %14 : vector<16x128xf32>
    %cst_8 = arith.constant 0.000000e+00 : f32
    %16 = vector.broadcast %cst_8 : f32 to vector<16x128xf32>
    %17 = arith.maximumf %15, %16 : vector<16x128xf32>
    %c0_9 = arith.constant 0 : index
    %c0_10 = arith.constant 0 : index
    %c0_11 = arith.constant 0 : index
    %18 = vector.load %arg4[%c0_9, %c0_10, %c0_11] : memref<3x384x128xbf16, #tpu.memory_space<vmem>>, vector<1x384x128xbf16>
    %19 = vector.shape_cast %18 : vector<1x384x128xbf16> to vector<384x128xbf16>
    %c0_12 = arith.constant 0 : index
    %c0_13 = arith.constant 0 : index
    %c0_14 = arith.constant 0 : index
    %20 = vector.load %arg5[%c0_12, %c0_13, %c0_14] : memref<3x1x128xf32, #tpu.memory_space<vmem>>, vector<1x1x128xf32>
    %21 = vector.shape_cast %20 : vector<1x1x128xf32> to vector<1x128xf32>
    %22 = arith.truncf %17 : vector<16x128xf32> to vector<16x128xbf16>
    %cst_15 = arith.constant 0.000000e+00 : bf16
    %23 = vector.broadcast %cst_15 : bf16 to vector<9x128xbf16>
    %24 = tpu.concatenate %23, %22, %23 in 0 : vector<9x128xbf16>, vector<16x128xbf16>, vector<9x128xbf16> -> vector<34x128xbf16>
    %25 = vector.extract_strided_slice %24 {offsets = [0, 0], sizes = [16, 128], strides = [1, 1]} : vector<34x128xbf16> to vector<16x128xbf16>
    %26 = vector.extract_strided_slice %24 {offsets = [9, 0], sizes = [16, 128], strides = [1, 1]} : vector<34x128xbf16> to vector<16x128xbf16>
    %27 = vector.extract_strided_slice %24 {offsets = [18, 0], sizes = [16, 128], strides = [1, 1]} : vector<34x128xbf16> to vector<16x128xbf16>
    %28 = tpu.concatenate %25, %26, %27 in 1 : vector<16x128xbf16>, vector<16x128xbf16>, vector<16x128xbf16> -> vector<16x384xbf16>
    %cst_16 = arith.constant dense<0.000000e+00> : vector<16x128xf32>
    %29 = tpu.matmul %28, %19, %cst_16 {dimension_numbers = #tpu.dot_dimension_numbers<[1], [0], [0], [1], [0, 0, 1, 1], [], []>} : vector<16x384xbf16>, vector<384x128xbf16>, vector<16x128xf32> -> vector<16x128xf32>
    %30 = vector.broadcast %21 : vector<1x128xf32> to vector<16x128xf32>
    %31 = arith.addf %29, %30 : vector<16x128xf32>
    %cst_17 = arith.constant 0.000000e+00 : f32
    %32 = vector.broadcast %cst_17 : f32 to vector<16x128xf32>
    %33 = arith.maximumf %31, %32 : vector<16x128xf32>
    %34 = arith.truncf %33 : vector<16x128xf32> to vector<16x128xbf16>
    %c0_18 = arith.constant 0 : index
    %c0_19 = arith.constant 0 : index
    %c0_20 = arith.constant 0 : index
    %35 = vector.load %arg6[%c0_18, %c0_19, %c0_20] : memref<3x128x128xbf16, #tpu.memory_space<vmem>>, vector<1x128x128xbf16>
    %36 = vector.shape_cast %35 : vector<1x128x128xbf16> to vector<128x128xbf16>
    %cst_21 = arith.constant dense<0.000000e+00> : vector<16x128xf32>
    %37 = tpu.matmul %34, %36, %cst_21 {dimension_numbers = #tpu.dot_dimension_numbers<[1], [0], [0], [1], [0, 0, 1, 1], [], []>} : vector<16x128xbf16>, vector<128x128xbf16>, vector<16x128xf32> -> vector<16x128xf32>
    %38 = arith.addf %15, %37 : vector<16x128xf32>
    %c0_22 = arith.constant 0 : index
    %c0_23 = arith.constant 0 : index
    %c0_24 = arith.constant 0 : index
    %39 = vector.load %arg7[%c0_22, %c0_23, %c0_24] : memref<3x1x128xf32, #tpu.memory_space<vmem>>, vector<1x1x128xf32>
    %40 = vector.shape_cast %39 : vector<1x1x128xf32> to vector<1x128xf32>
    %41 = vector.broadcast %40 : vector<1x128xf32> to vector<16x128xf32>
    %42 = arith.addf %38, %41 : vector<16x128xf32>
    %cst_25 = arith.constant 0.000000e+00 : f32
    %43 = vector.broadcast %cst_25 : f32 to vector<16x128xf32>
    %44 = arith.maximumf %42, %43 : vector<16x128xf32>
    %c1 = arith.constant 1 : index
    %c0_26 = arith.constant 0 : index
    %c0_27 = arith.constant 0 : index
    %45 = vector.load %arg4[%c1, %c0_26, %c0_27] : memref<3x384x128xbf16, #tpu.memory_space<vmem>>, vector<1x384x128xbf16>
    %46 = vector.shape_cast %45 : vector<1x384x128xbf16> to vector<384x128xbf16>
    %c1_28 = arith.constant 1 : index
    %c0_29 = arith.constant 0 : index
    %c0_30 = arith.constant 0 : index
    %47 = vector.load %arg5[%c1_28, %c0_29, %c0_30] : memref<3x1x128xf32, #tpu.memory_space<vmem>>, vector<1x1x128xf32>
    %48 = vector.shape_cast %47 : vector<1x1x128xf32> to vector<1x128xf32>
    %49 = arith.truncf %44 : vector<16x128xf32> to vector<16x128xbf16>
    %cst_31 = arith.constant 0.000000e+00 : bf16
    %50 = vector.broadcast %cst_31 : bf16 to vector<3x128xbf16>
    %51 = tpu.concatenate %50, %49, %50 in 0 : vector<3x128xbf16>, vector<16x128xbf16>, vector<3x128xbf16> -> vector<22x128xbf16>
    %52 = vector.extract_strided_slice %51 {offsets = [0, 0], sizes = [16, 128], strides = [1, 1]} : vector<22x128xbf16> to vector<16x128xbf16>
    %53 = vector.extract_strided_slice %51 {offsets = [3, 0], sizes = [16, 128], strides = [1, 1]} : vector<22x128xbf16> to vector<16x128xbf16>
    %54 = vector.extract_strided_slice %51 {offsets = [6, 0], sizes = [16, 128], strides = [1, 1]} : vector<22x128xbf16> to vector<16x128xbf16>
    %55 = tpu.concatenate %52, %53, %54 in 1 : vector<16x128xbf16>, vector<16x128xbf16>, vector<16x128xbf16> -> vector<16x384xbf16>
    %cst_32 = arith.constant dense<0.000000e+00> : vector<16x128xf32>
    %56 = tpu.matmul %55, %46, %cst_32 {dimension_numbers = #tpu.dot_dimension_numbers<[1], [0], [0], [1], [0, 0, 1, 1], [], []>} : vector<16x384xbf16>, vector<384x128xbf16>, vector<16x128xf32> -> vector<16x128xf32>
    %57 = vector.broadcast %48 : vector<1x128xf32> to vector<16x128xf32>
    %58 = arith.addf %56, %57 : vector<16x128xf32>
    %cst_33 = arith.constant 0.000000e+00 : f32
    %59 = vector.broadcast %cst_33 : f32 to vector<16x128xf32>
    %60 = arith.maximumf %58, %59 : vector<16x128xf32>
    %61 = arith.truncf %60 : vector<16x128xf32> to vector<16x128xbf16>
    %c1_34 = arith.constant 1 : index
    %c0_35 = arith.constant 0 : index
    %c0_36 = arith.constant 0 : index
    %62 = vector.load %arg6[%c1_34, %c0_35, %c0_36] : memref<3x128x128xbf16, #tpu.memory_space<vmem>>, vector<1x128x128xbf16>
    %63 = vector.shape_cast %62 : vector<1x128x128xbf16> to vector<128x128xbf16>
    %cst_37 = arith.constant dense<0.000000e+00> : vector<16x128xf32>
    %64 = tpu.matmul %61, %63, %cst_37 {dimension_numbers = #tpu.dot_dimension_numbers<[1], [0], [0], [1], [0, 0, 1, 1], [], []>} : vector<16x128xbf16>, vector<128x128xbf16>, vector<16x128xf32> -> vector<16x128xf32>
    %65 = arith.addf %42, %64 : vector<16x128xf32>
    %c1_38 = arith.constant 1 : index
    %c0_39 = arith.constant 0 : index
    %c0_40 = arith.constant 0 : index
    %66 = vector.load %arg7[%c1_38, %c0_39, %c0_40] : memref<3x1x128xf32, #tpu.memory_space<vmem>>, vector<1x1x128xf32>
    %67 = vector.shape_cast %66 : vector<1x1x128xf32> to vector<1x128xf32>
    %68 = vector.broadcast %67 : vector<1x128xf32> to vector<16x128xf32>
    %69 = arith.addf %65, %68 : vector<16x128xf32>
    %cst_41 = arith.constant 0.000000e+00 : f32
    %70 = vector.broadcast %cst_41 : f32 to vector<16x128xf32>
    %71 = arith.maximumf %69, %70 : vector<16x128xf32>
    %c2 = arith.constant 2 : index
    %c0_42 = arith.constant 0 : index
    %c0_43 = arith.constant 0 : index
    %72 = vector.load %arg4[%c2, %c0_42, %c0_43] : memref<3x384x128xbf16, #tpu.memory_space<vmem>>, vector<1x384x128xbf16>
    %73 = vector.shape_cast %72 : vector<1x384x128xbf16> to vector<384x128xbf16>
    %c2_44 = arith.constant 2 : index
    %c0_45 = arith.constant 0 : index
    %c0_46 = arith.constant 0 : index
    %74 = vector.load %arg5[%c2_44, %c0_45, %c0_46] : memref<3x1x128xf32, #tpu.memory_space<vmem>>, vector<1x1x128xf32>
    %75 = vector.shape_cast %74 : vector<1x1x128xf32> to vector<1x128xf32>
    %76 = arith.truncf %71 : vector<16x128xf32> to vector<16x128xbf16>
    %cst_47 = arith.constant 0.000000e+00 : bf16
    %77 = vector.broadcast %cst_47 : bf16 to vector<1x128xbf16>
    %78 = tpu.concatenate %77, %76, %77 in 0 : vector<1x128xbf16>, vector<16x128xbf16>, vector<1x128xbf16> -> vector<18x128xbf16>
    %79 = vector.extract_strided_slice %78 {offsets = [0, 0], sizes = [16, 128], strides = [1, 1]} : vector<18x128xbf16> to vector<16x128xbf16>
    %80 = vector.extract_strided_slice %78 {offsets = [1, 0], sizes = [16, 128], strides = [1, 1]} : vector<18x128xbf16> to vector<16x128xbf16>
    %81 = vector.extract_strided_slice %78 {offsets = [2, 0], sizes = [16, 128], strides = [1, 1]} : vector<18x128xbf16> to vector<16x128xbf16>
    %82 = tpu.concatenate %79, %80, %81 in 1 : vector<16x128xbf16>, vector<16x128xbf16>, vector<16x128xbf16> -> vector<16x384xbf16>
    %cst_48 = arith.constant dense<0.000000e+00> : vector<16x128xf32>
    %83 = tpu.matmul %82, %73, %cst_48 {dimension_numbers = #tpu.dot_dimension_numbers<[1], [0], [0], [1], [0, 0, 1, 1], [], []>} : vector<16x384xbf16>, vector<384x128xbf16>, vector<16x128xf32> -> vector<16x128xf32>
    %84 = vector.broadcast %75 : vector<1x128xf32> to vector<16x128xf32>
    %85 = arith.addf %83, %84 : vector<16x128xf32>
    %cst_49 = arith.constant 0.000000e+00 : f32
    %86 = vector.broadcast %cst_49 : f32 to vector<16x128xf32>
    %87 = arith.maximumf %85, %86 : vector<16x128xf32>
    %88 = arith.truncf %87 : vector<16x128xf32> to vector<16x128xbf16>
    %c2_50 = arith.constant 2 : index
    %c0_51 = arith.constant 0 : index
    %c0_52 = arith.constant 0 : index
    %89 = vector.load %arg6[%c2_50, %c0_51, %c0_52] : memref<3x128x128xbf16, #tpu.memory_space<vmem>>, vector<1x128x128xbf16>
    %90 = vector.shape_cast %89 : vector<1x128x128xbf16> to vector<128x128xbf16>
    %cst_53 = arith.constant dense<0.000000e+00> : vector<16x128xf32>
    %91 = tpu.matmul %88, %90, %cst_53 {dimension_numbers = #tpu.dot_dimension_numbers<[1], [0], [0], [1], [0, 0, 1, 1], [], []>} : vector<16x128xbf16>, vector<128x128xbf16>, vector<16x128xf32> -> vector<16x128xf32>
    %92 = arith.addf %69, %91 : vector<16x128xf32>
    %c2_54 = arith.constant 2 : index
    %c0_55 = arith.constant 0 : index
    %c0_56 = arith.constant 0 : index
    %93 = vector.load %arg7[%c2_54, %c0_55, %c0_56] : memref<3x1x128xf32, #tpu.memory_space<vmem>>, vector<1x1x128xf32>
    %94 = vector.shape_cast %93 : vector<1x1x128xf32> to vector<1x128xf32>
    %95 = vector.broadcast %94 : vector<1x128xf32> to vector<16x128xf32>
    %96 = arith.addf %92, %95 : vector<16x128xf32>
    %97 = arith.truncf %96 : vector<16x128xf32> to vector<16x128xbf16>
    %cst_57 = arith.constant 0.000000e+00 : bf16
    %98 = vector.broadcast %cst_57 : bf16 to vector<1x128xbf16>
    %99 = tpu.concatenate %98, %97, %98 in 0 : vector<1x128xbf16>, vector<16x128xbf16>, vector<1x128xbf16> -> vector<18x128xbf16>
    %c0_58 = arith.constant 0 : index
    %c0_59 = arith.constant 0 : index
    %100 = vector.load %arg10[%c0_58, %c0_59] : memref<1x128xf32, #tpu.memory_space<vmem>>, vector<1x128xf32>
    %101 = vector.extract_strided_slice %99 {offsets = [0, 0], sizes = [16, 128], strides = [1, 1]} : vector<18x128xbf16> to vector<16x128xbf16>
    %102 = vector.extract_strided_slice %99 {offsets = [1, 0], sizes = [16, 128], strides = [1, 1]} : vector<18x128xbf16> to vector<16x128xbf16>
    %103 = tpu.concatenate %101, %102 in 1 : vector<16x128xbf16>, vector<16x128xbf16> -> vector<16x256xbf16>
    %c0_60 = arith.constant 0 : index
    %c0_61 = arith.constant 0 : index
    %104 = vector.load %arg8[%c0_60, %c0_61] : memref<256x128xbf16, #tpu.memory_space<vmem>>, vector<256x128xbf16>
    %cst_62 = arith.constant dense<0.000000e+00> : vector<16x128xf32>
    %105 = tpu.matmul %103, %104, %cst_62 {dimension_numbers = #tpu.dot_dimension_numbers<[1], [0], [0], [1], [0, 0, 1, 1], [], []>} : vector<16x256xbf16>, vector<256x128xbf16>, vector<16x128xf32> -> vector<16x128xf32>
    %106 = vector.broadcast %100 : vector<1x128xf32> to vector<16x128xf32>
    %107 = arith.addf %105, %106 : vector<16x128xf32>
    %108 = vector.extract_strided_slice %99 {offsets = [1, 0], sizes = [16, 128], strides = [1, 1]} : vector<18x128xbf16> to vector<16x128xbf16>
    %109 = vector.extract_strided_slice %99 {offsets = [2, 0], sizes = [16, 128], strides = [1, 1]} : vector<18x128xbf16> to vector<16x128xbf16>
    %110 = tpu.concatenate %108, %109 in 1 : vector<16x128xbf16>, vector<16x128xbf16> -> vector<16x256xbf16>
    %c0_63 = arith.constant 0 : index
    %c0_64 = arith.constant 0 : index
    %111 = vector.load %arg9[%c0_63, %c0_64] : memref<256x128xbf16, #tpu.memory_space<vmem>>, vector<256x128xbf16>
    %cst_65 = arith.constant dense<0.000000e+00> : vector<16x128xf32>
    %112 = tpu.matmul %110, %111, %cst_65 {dimension_numbers = #tpu.dot_dimension_numbers<[1], [0], [0], [1], [0, 0, 1, 1], [], []>} : vector<16x256xbf16>, vector<256x128xbf16>, vector<16x128xf32> -> vector<16x128xf32>
    %113 = vector.broadcast %100 : vector<1x128xf32> to vector<16x128xf32>
    %114 = arith.addf %112, %113 : vector<16x128xf32>
    %115 = tpu.iota {dimensions = array<i32: 0>} : vector<32x16xi32>
    %116 = tpu.iota {dimensions = array<i32: 1>} : vector<32x16xi32>
    %c2_i32 = arith.constant 2 : i32
    %117 = vector.broadcast %c2_i32 : i32 to vector<32x16xi32>
    %118 = arith.muli %117, %116 : vector<32x16xi32>
    %119 = arith.cmpi eq, %115, %118 : vector<32x16xi32>
    %cst_66 = arith.constant 1.000000e+00 : f32
    %cst_67 = arith.constant 0.000000e+00 : f32
    %120 = vector.broadcast %cst_66 : f32 to vector<32x16xf32>
    %121 = vector.broadcast %cst_67 : f32 to vector<32x16xf32>
    %122 = arith.select %119, %120, %121 : vector<32x16xi1>, vector<32x16xf32>
    %c2_i32_68 = arith.constant 2 : i32
    %123 = vector.broadcast %c2_i32_68 : i32 to vector<32x16xi32>
    %124 = arith.muli %123, %116 : vector<32x16xi32>
    %c1_i32 = arith.constant 1 : i32
    %125 = vector.broadcast %c1_i32 : i32 to vector<32x16xi32>
    %126 = arith.addi %124, %125 : vector<32x16xi32>
    %127 = arith.cmpi eq, %115, %126 : vector<32x16xi32>
    %cst_69 = arith.constant 1.000000e+00 : f32
    %cst_70 = arith.constant 0.000000e+00 : f32
    %128 = vector.broadcast %cst_69 : f32 to vector<32x16xf32>
    %129 = vector.broadcast %cst_70 : f32 to vector<32x16xf32>
    %130 = arith.select %127, %128, %129 : vector<32x16xi1>, vector<32x16xf32>
    %cst_71 = arith.constant dense<0.000000e+00> : vector<32x128xf32>
    %131 = tpu.matmul %122, %107, %cst_71 {dimension_numbers = #tpu.dot_dimension_numbers<[1], [0], [0], [1], [0, 0, 1, 1], [], []>} : vector<32x16xf32>, vector<16x128xf32>, vector<32x128xf32> -> vector<32x128xf32>
    %cst_72 = arith.constant dense<0.000000e+00> : vector<32x128xf32>
    %132 = tpu.matmul %130, %114, %cst_72 {dimension_numbers = #tpu.dot_dimension_numbers<[1], [0], [0], [1], [0, 0, 1, 1], [], []>} : vector<32x16xf32>, vector<16x128xf32>, vector<32x128xf32> -> vector<32x128xf32>
    %133 = arith.addf %131, %132 : vector<32x128xf32>
    %cst_73 = arith.constant 0.000000e+00 : f32
    %134 = vector.broadcast %cst_73 : f32 to vector<32x128xf32>
    %135 = arith.maximumf %133, %134 : vector<32x128xf32>
    %c0_74 = arith.constant 0 : index
    %c0_75 = arith.constant 0 : index
    %c0_76 = arith.constant 0 : index
    %136 = vector.load %arg11[%c0_74, %c0_75, %c0_76] : memref<3x384x128xbf16, #tpu.memory_space<vmem>>, vector<1x384x128xbf16>
    %137 = vector.shape_cast %136 : vector<1x384x128xbf16> to vector<384x128xbf16>
    %c0_77 = arith.constant 0 : index
    %c0_78 = arith.constant 0 : index
    %c0_79 = arith.constant 0 : index
    %138 = vector.load %arg12[%c0_77, %c0_78, %c0_79] : memref<3x1x128xf32, #tpu.memory_space<vmem>>, vector<1x1x128xf32>
    %139 = vector.shape_cast %138 : vector<1x1x128xf32> to vector<1x128xf32>
    %140 = arith.truncf %135 : vector<32x128xf32> to vector<32x128xbf16>
    %cst_80 = arith.constant 0.000000e+00 : bf16
    %141 = vector.broadcast %cst_80 : bf16 to vector<9x128xbf16>
    %142 = tpu.concatenate %141, %140, %141 in 0 : vector<9x128xbf16>, vector<32x128xbf16>, vector<9x128xbf16> -> vector<50x128xbf16>
    %143 = vector.extract_strided_slice %142 {offsets = [0, 0], sizes = [32, 128], strides = [1, 1]} : vector<50x128xbf16> to vector<32x128xbf16>
    %144 = vector.extract_strided_slice %142 {offsets = [9, 0], sizes = [32, 128], strides = [1, 1]} : vector<50x128xbf16> to vector<32x128xbf16>
    %145 = vector.extract_strided_slice %142 {offsets = [18, 0], sizes = [32, 128], strides = [1, 1]} : vector<50x128xbf16> to vector<32x128xbf16>
    %146 = tpu.concatenate %143, %144, %145 in 1 : vector<32x128xbf16>, vector<32x128xbf16>, vector<32x128xbf16> -> vector<32x384xbf16>
    %cst_81 = arith.constant dense<0.000000e+00> : vector<32x128xf32>
    %147 = tpu.matmul %146, %137, %cst_81 {dimension_numbers = #tpu.dot_dimension_numbers<[1], [0], [0], [1], [0, 0, 1, 1], [], []>} : vector<32x384xbf16>, vector<384x128xbf16>, vector<32x128xf32> -> vector<32x128xf32>
    %148 = vector.broadcast %139 : vector<1x128xf32> to vector<32x128xf32>
    %149 = arith.addf %147, %148 : vector<32x128xf32>
    %cst_82 = arith.constant 0.000000e+00 : f32
    %150 = vector.broadcast %cst_82 : f32 to vector<32x128xf32>
    %151 = arith.maximumf %149, %150 : vector<32x128xf32>
    %152 = arith.truncf %151 : vector<32x128xf32> to vector<32x128xbf16>
    %c0_83 = arith.constant 0 : index
    %c0_84 = arith.constant 0 : index
    %c0_85 = arith.constant 0 : index
    %153 = vector.load %arg13[%c0_83, %c0_84, %c0_85] : memref<3x128x128xbf16, #tpu.memory_space<vmem>>, vector<1x128x128xbf16>
    %154 = vector.shape_cast %153 : vector<1x128x128xbf16> to vector<128x128xbf16>
    %cst_86 = arith.constant dense<0.000000e+00> : vector<32x128xf32>
    %155 = tpu.matmul %152, %154, %cst_86 {dimension_numbers = #tpu.dot_dimension_numbers<[1], [0], [0], [1], [0, 0, 1, 1], [], []>} : vector<32x128xbf16>, vector<128x128xbf16>, vector<32x128xf32> -> vector<32x128xf32>
    %156 = arith.addf %133, %155 : vector<32x128xf32>
    %c0_87 = arith.constant 0 : index
    %c0_88 = arith.constant 0 : index
    %c0_89 = arith.constant 0 : index
    %157 = vector.load %arg14[%c0_87, %c0_88, %c0_89] : memref<3x1x128xf32, #tpu.memory_space<vmem>>, vector<1x1x128xf32>
    %158 = vector.shape_cast %157 : vector<1x1x128xf32> to vector<1x128xf32>
    %159 = vector.broadcast %158 : vector<1x128xf32> to vector<32x128xf32>
    %160 = arith.addf %156, %159 : vector<32x128xf32>
    %cst_90 = arith.constant 0.000000e+00 : f32
    %161 = vector.broadcast %cst_90 : f32 to vector<32x128xf32>
    %162 = arith.maximumf %160, %161 : vector<32x128xf32>
    %c1_91 = arith.constant 1 : index
    %c0_92 = arith.constant 0 : index
    %c0_93 = arith.constant 0 : index
    %163 = vector.load %arg11[%c1_91, %c0_92, %c0_93] : memref<3x384x128xbf16, #tpu.memory_space<vmem>>, vector<1x384x128xbf16>
    %164 = vector.shape_cast %163 : vector<1x384x128xbf16> to vector<384x128xbf16>
    %c1_94 = arith.constant 1 : index
    %c0_95 = arith.constant 0 : index
    %c0_96 = arith.constant 0 : index
    %165 = vector.load %arg12[%c1_94, %c0_95, %c0_96] : memref<3x1x128xf32, #tpu.memory_space<vmem>>, vector<1x1x128xf32>
    %166 = vector.shape_cast %165 : vector<1x1x128xf32> to vector<1x128xf32>
    %167 = arith.truncf %162 : vector<32x128xf32> to vector<32x128xbf16>
    %cst_97 = arith.constant 0.000000e+00 : bf16
    %168 = vector.broadcast %cst_97 : bf16 to vector<3x128xbf16>
    %169 = tpu.concatenate %168, %167, %168 in 0 : vector<3x128xbf16>, vector<32x128xbf16>, vector<3x128xbf16> -> vector<38x128xbf16>
    %170 = vector.extract_strided_slice %169 {offsets = [0, 0], sizes = [32, 128], strides = [1, 1]} : vector<38x128xbf16> to vector<32x128xbf16>
    %171 = vector.extract_strided_slice %169 {offsets = [3, 0], sizes = [32, 128], strides = [1, 1]} : vector<38x128xbf16> to vector<32x128xbf16>
    %172 = vector.extract_strided_slice %169 {offsets = [6, 0], sizes = [32, 128], strides = [1, 1]} : vector<38x128xbf16> to vector<32x128xbf16>
    %173 = tpu.concatenate %170, %171, %172 in 1 : vector<32x128xbf16>, vector<32x128xbf16>, vector<32x128xbf16> -> vector<32x384xbf16>
    %cst_98 = arith.constant dense<0.000000e+00> : vector<32x128xf32>
    %174 = tpu.matmul %173, %164, %cst_98 {dimension_numbers = #tpu.dot_dimension_numbers<[1], [0], [0], [1], [0, 0, 1, 1], [], []>} : vector<32x384xbf16>, vector<384x128xbf16>, vector<32x128xf32> -> vector<32x128xf32>
    %175 = vector.broadcast %166 : vector<1x128xf32> to vector<32x128xf32>
    %176 = arith.addf %174, %175 : vector<32x128xf32>
    %cst_99 = arith.constant 0.000000e+00 : f32
    %177 = vector.broadcast %cst_99 : f32 to vector<32x128xf32>
    %178 = arith.maximumf %176, %177 : vector<32x128xf32>
    %179 = arith.truncf %178 : vector<32x128xf32> to vector<32x128xbf16>
    %c1_100 = arith.constant 1 : index
    %c0_101 = arith.constant 0 : index
    %c0_102 = arith.constant 0 : index
    %180 = vector.load %arg13[%c1_100, %c0_101, %c0_102] : memref<3x128x128xbf16, #tpu.memory_space<vmem>>, vector<1x128x128xbf16>
    %181 = vector.shape_cast %180 : vector<1x128x128xbf16> to vector<128x128xbf16>
    %cst_103 = arith.constant dense<0.000000e+00> : vector<32x128xf32>
    %182 = tpu.matmul %179, %181, %cst_103 {dimension_numbers = #tpu.dot_dimension_numbers<[1], [0], [0], [1], [0, 0, 1, 1], [], []>} : vector<32x128xbf16>, vector<128x128xbf16>, vector<32x128xf32> -> vector<32x128xf32>
    %183 = arith.addf %160, %182 : vector<32x128xf32>
    %c1_104 = arith.constant 1 : index
    %c0_105 = arith.constant 0 : index
    %c0_106 = arith.constant 0 : index
    %184 = vector.load %arg14[%c1_104, %c0_105, %c0_106] : memref<3x1x128xf32, #tpu.memory_space<vmem>>, vector<1x1x128xf32>
    %185 = vector.shape_cast %184 : vector<1x1x128xf32> to vector<1x128xf32>
    %186 = vector.broadcast %185 : vector<1x128xf32> to vector<32x128xf32>
    %187 = arith.addf %183, %186 : vector<32x128xf32>
    %cst_107 = arith.constant 0.000000e+00 : f32
    %188 = vector.broadcast %cst_107 : f32 to vector<32x128xf32>
    %189 = arith.maximumf %187, %188 : vector<32x128xf32>
    %c2_108 = arith.constant 2 : index
    %c0_109 = arith.constant 0 : index
    %c0_110 = arith.constant 0 : index
    %190 = vector.load %arg11[%c2_108, %c0_109, %c0_110] : memref<3x384x128xbf16, #tpu.memory_space<vmem>>, vector<1x384x128xbf16>
    %191 = vector.shape_cast %190 : vector<1x384x128xbf16> to vector<384x128xbf16>
    %c2_111 = arith.constant 2 : index
    %c0_112 = arith.constant 0 : index
    %c0_113 = arith.constant 0 : index
    %192 = vector.load %arg12[%c2_111, %c0_112, %c0_113] : memref<3x1x128xf32, #tpu.memory_space<vmem>>, vector<1x1x128xf32>
    %193 = vector.shape_cast %192 : vector<1x1x128xf32> to vector<1x128xf32>
    %194 = arith.truncf %189 : vector<32x128xf32> to vector<32x128xbf16>
    %cst_114 = arith.constant 0.000000e+00 : bf16
    %195 = vector.broadcast %cst_114 : bf16 to vector<1x128xbf16>
    %196 = tpu.concatenate %195, %194, %195 in 0 : vector<1x128xbf16>, vector<32x128xbf16>, vector<1x128xbf16> -> vector<34x128xbf16>
    %197 = vector.extract_strided_slice %196 {offsets = [0, 0], sizes = [32, 128], strides = [1, 1]} : vector<34x128xbf16> to vector<32x128xbf16>
    %198 = vector.extract_strided_slice %196 {offsets = [1, 0], sizes = [32, 128], strides = [1, 1]} : vector<34x128xbf16> to vector<32x128xbf16>
    %199 = vector.extract_strided_slice %196 {offsets = [2, 0], sizes = [32, 128], strides = [1, 1]} : vector<34x128xbf16> to vector<32x128xbf16>
    %200 = tpu.concatenate %197, %198, %199 in 1 : vector<32x128xbf16>, vector<32x128xbf16>, vector<32x128xbf16> -> vector<32x384xbf16>
    %cst_115 = arith.constant dense<0.000000e+00> : vector<32x128xf32>
    %201 = tpu.matmul %200, %191, %cst_115 {dimension_numbers = #tpu.dot_dimension_numbers<[1], [0], [0], [1], [0, 0, 1, 1], [], []>} : vector<32x384xbf16>, vector<384x128xbf16>, vector<32x128xf32> -> vector<32x128xf32>
    %202 = vector.broadcast %193 : vector<1x128xf32> to vector<32x128xf32>
    %203 = arith.addf %201, %202 : vector<32x128xf32>
    %cst_116 = arith.constant 0.000000e+00 : f32
    %204 = vector.broadcast %cst_116 : f32 to vector<32x128xf32>
    %205 = arith.maximumf %203, %204 : vector<32x128xf32>
    %206 = arith.truncf %205 : vector<32x128xf32> to vector<32x128xbf16>
    %c2_117 = arith.constant 2 : index
    %c0_118 = arith.constant 0 : index
    %c0_119 = arith.constant 0 : index
    %207 = vector.load %arg13[%c2_117, %c0_118, %c0_119] : memref<3x128x128xbf16, #tpu.memory_space<vmem>>, vector<1x128x128xbf16>
    %208 = vector.shape_cast %207 : vector<1x128x128xbf16> to vector<128x128xbf16>
    %cst_120 = arith.constant dense<0.000000e+00> : vector<32x128xf32>
    %209 = tpu.matmul %206, %208, %cst_120 {dimension_numbers = #tpu.dot_dimension_numbers<[1], [0], [0], [1], [0, 0, 1, 1], [], []>} : vector<32x128xbf16>, vector<128x128xbf16>, vector<32x128xf32> -> vector<32x128xf32>
    %210 = arith.addf %187, %209 : vector<32x128xf32>
    %c2_121 = arith.constant 2 : index
    %c0_122 = arith.constant 0 : index
    %c0_123 = arith.constant 0 : index
    %211 = vector.load %arg14[%c2_121, %c0_122, %c0_123] : memref<3x1x128xf32, #tpu.memory_space<vmem>>, vector<1x1x128xf32>
    %212 = vector.shape_cast %211 : vector<1x1x128xf32> to vector<1x128xf32>
    %213 = vector.broadcast %212 : vector<1x128xf32> to vector<32x128xf32>
    %214 = arith.addf %210, %213 : vector<32x128xf32>
    %215 = arith.truncf %214 : vector<32x128xf32> to vector<32x128xbf16>
    %cst_124 = arith.constant 0.000000e+00 : bf16
    %216 = vector.broadcast %cst_124 : bf16 to vector<1x128xbf16>
    %217 = tpu.concatenate %216, %215, %216 in 0 : vector<1x128xbf16>, vector<32x128xbf16>, vector<1x128xbf16> -> vector<34x128xbf16>
    %c0_125 = arith.constant 0 : index
    %c0_126 = arith.constant 0 : index
    %218 = vector.load %arg17[%c0_125, %c0_126] : memref<1x128xf32, #tpu.memory_space<vmem>>, vector<1x128xf32>
    %219 = vector.extract_strided_slice %217 {offsets = [0, 0], sizes = [32, 128], strides = [1, 1]} : vector<34x128xbf16> to vector<32x128xbf16>
    %220 = vector.extract_strided_slice %217 {offsets = [1, 0], sizes = [32, 128], strides = [1, 1]} : vector<34x128xbf16> to vector<32x128xbf16>
    %221 = tpu.concatenate %219, %220 in 1 : vector<32x128xbf16>, vector<32x128xbf16> -> vector<32x256xbf16>
    %c0_127 = arith.constant 0 : index
    %c0_128 = arith.constant 0 : index
    %222 = vector.load %arg15[%c0_127, %c0_128] : memref<256x128xbf16, #tpu.memory_space<vmem>>, vector<256x128xbf16>
    %cst_129 = arith.constant dense<0.000000e+00> : vector<32x128xf32>
    %223 = tpu.matmul %221, %222, %cst_129 {dimension_numbers = #tpu.dot_dimension_numbers<[1], [0], [0], [1], [0, 0, 1, 1], [], []>} : vector<32x256xbf16>, vector<256x128xbf16>, vector<32x128xf32> -> vector<32x128xf32>
    %224 = vector.broadcast %218 : vector<1x128xf32> to vector<32x128xf32>
    %225 = arith.addf %223, %224 : vector<32x128xf32>
    %226 = vector.extract_strided_slice %217 {offsets = [1, 0], sizes = [32, 128], strides = [1, 1]} : vector<34x128xbf16> to vector<32x128xbf16>
    %227 = vector.extract_strided_slice %217 {offsets = [2, 0], sizes = [32, 128], strides = [1, 1]} : vector<34x128xbf16> to vector<32x128xbf16>
    %228 = tpu.concatenate %226, %227 in 1 : vector<32x128xbf16>, vector<32x128xbf16> -> vector<32x256xbf16>
    %c0_130 = arith.constant 0 : index
    %c0_131 = arith.constant 0 : index
    %229 = vector.load %arg16[%c0_130, %c0_131] : memref<256x128xbf16, #tpu.memory_space<vmem>>, vector<256x128xbf16>
    %cst_132 = arith.constant dense<0.000000e+00> : vector<32x128xf32>
    %230 = tpu.matmul %228, %229, %cst_132 {dimension_numbers = #tpu.dot_dimension_numbers<[1], [0], [0], [1], [0, 0, 1, 1], [], []>} : vector<32x256xbf16>, vector<256x128xbf16>, vector<32x128xf32> -> vector<32x128xf32>
    %231 = vector.broadcast %218 : vector<1x128xf32> to vector<32x128xf32>
    %232 = arith.addf %230, %231 : vector<32x128xf32>
    %233 = tpu.iota {dimensions = array<i32: 0>} : vector<64x32xi32>
    %234 = tpu.iota {dimensions = array<i32: 1>} : vector<64x32xi32>
    %c2_i32_133 = arith.constant 2 : i32
    %235 = vector.broadcast %c2_i32_133 : i32 to vector<64x32xi32>
    %236 = arith.muli %235, %234 : vector<64x32xi32>
    %237 = arith.cmpi eq, %233, %236 : vector<64x32xi32>
    %cst_134 = arith.constant 1.000000e+00 : f32
    %cst_135 = arith.constant 0.000000e+00 : f32
    %238 = vector.broadcast %cst_134 : f32 to vector<64x32xf32>
    %239 = vector.broadcast %cst_135 : f32 to vector<64x32xf32>
    %240 = arith.select %237, %238, %239 : vector<64x32xi1>, vector<64x32xf32>
    %c2_i32_136 = arith.constant 2 : i32
    %241 = vector.broadcast %c2_i32_136 : i32 to vector<64x32xi32>
    %242 = arith.muli %241, %234 : vector<64x32xi32>
    %c1_i32_137 = arith.constant 1 : i32
    %243 = vector.broadcast %c1_i32_137 : i32 to vector<64x32xi32>
    %244 = arith.addi %242, %243 : vector<64x32xi32>
    %245 = arith.cmpi eq, %233, %244 : vector<64x32xi32>
    %cst_138 = arith.constant 1.000000e+00 : f32
    %cst_139 = arith.constant 0.000000e+00 : f32
    %246 = vector.broadcast %cst_138 : f32 to vector<64x32xf32>
    %247 = vector.broadcast %cst_139 : f32 to vector<64x32xf32>
    %248 = arith.select %245, %246, %247 : vector<64x32xi1>, vector<64x32xf32>
    %cst_140 = arith.constant dense<0.000000e+00> : vector<64x128xf32>
    %249 = tpu.matmul %240, %225, %cst_140 {dimension_numbers = #tpu.dot_dimension_numbers<[1], [0], [0], [1], [0, 0, 1, 1], [], []>} : vector<64x32xf32>, vector<32x128xf32>, vector<64x128xf32> -> vector<64x128xf32>
    %cst_141 = arith.constant dense<0.000000e+00> : vector<64x128xf32>
    %250 = tpu.matmul %248, %232, %cst_141 {dimension_numbers = #tpu.dot_dimension_numbers<[1], [0], [0], [1], [0, 0, 1, 1], [], []>} : vector<64x32xf32>, vector<32x128xf32>, vector<64x128xf32> -> vector<64x128xf32>
    %251 = arith.addf %249, %250 : vector<64x128xf32>
    %c0_142 = arith.constant 0 : index
    %c0_143 = arith.constant 0 : index
    %252 = vector.load %arg18[%c0_142, %c0_143] : memref<384x128xbf16, #tpu.memory_space<vmem>>, vector<384x128xbf16>
    %c0_144 = arith.constant 0 : index
    %c0_145 = arith.constant 0 : index
    %253 = vector.load %arg19[%c0_144, %c0_145] : memref<1x128xf32, #tpu.memory_space<vmem>>, vector<1x128xf32>
    %254 = arith.truncf %251 : vector<64x128xf32> to vector<64x128xbf16>
    %cst_146 = arith.constant 0.000000e+00 : bf16
    %255 = vector.broadcast %cst_146 : bf16 to vector<1x128xbf16>
    %256 = tpu.concatenate %255, %254, %255 in 0 : vector<1x128xbf16>, vector<64x128xbf16>, vector<1x128xbf16> -> vector<66x128xbf16>
    %257 = vector.extract_strided_slice %256 {offsets = [0, 0], sizes = [64, 128], strides = [1, 1]} : vector<66x128xbf16> to vector<64x128xbf16>
    %258 = vector.extract_strided_slice %256 {offsets = [1, 0], sizes = [64, 128], strides = [1, 1]} : vector<66x128xbf16> to vector<64x128xbf16>
    %259 = vector.extract_strided_slice %256 {offsets = [2, 0], sizes = [64, 128], strides = [1, 1]} : vector<66x128xbf16> to vector<64x128xbf16>
    %260 = tpu.concatenate %257, %258, %259 in 1 : vector<64x128xbf16>, vector<64x128xbf16>, vector<64x128xbf16> -> vector<64x384xbf16>
    %cst_147 = arith.constant dense<0.000000e+00> : vector<64x128xf32>
    %261 = tpu.matmul %260, %252, %cst_147 {dimension_numbers = #tpu.dot_dimension_numbers<[1], [0], [0], [1], [0, 0, 1, 1], [], []>} : vector<64x384xbf16>, vector<384x128xbf16>, vector<64x128xf32> -> vector<64x128xf32>
    %262 = vector.broadcast %253 : vector<1x128xf32> to vector<64x128xf32>
    %263 = arith.addf %261, %262 : vector<64x128xf32>
    %cst_148 = arith.constant 0.000000e+00 : f32
    %264 = vector.broadcast %cst_148 : f32 to vector<64x128xf32>
    %265 = arith.maximumf %263, %264 : vector<64x128xf32>
    %c0_149 = arith.constant 0 : index
    %c0_150 = arith.constant 0 : index
    %266 = vector.load %arg20[%c0_149, %c0_150] : memref<384x128xbf16, #tpu.memory_space<vmem>>, vector<384x128xbf16>
    %c0_151 = arith.constant 0 : index
    %c0_152 = arith.constant 0 : index
    %267 = vector.load %arg21[%c0_151, %c0_152] : memref<1x128xf32, #tpu.memory_space<vmem>>, vector<1x128xf32>
    %268 = arith.truncf %265 : vector<64x128xf32> to vector<64x128xbf16>
    %cst_153 = arith.constant 0.000000e+00 : bf16
    %269 = vector.broadcast %cst_153 : bf16 to vector<1x128xbf16>
    %270 = tpu.concatenate %269, %268, %269 in 0 : vector<1x128xbf16>, vector<64x128xbf16>, vector<1x128xbf16> -> vector<66x128xbf16>
    %271 = vector.extract_strided_slice %270 {offsets = [0, 0], sizes = [64, 128], strides = [1, 1]} : vector<66x128xbf16> to vector<64x128xbf16>
    %272 = vector.extract_strided_slice %270 {offsets = [1, 0], sizes = [64, 128], strides = [1, 1]} : vector<66x128xbf16> to vector<64x128xbf16>
    %273 = vector.extract_strided_slice %270 {offsets = [2, 0], sizes = [64, 128], strides = [1, 1]} : vector<66x128xbf16> to vector<64x128xbf16>
    %274 = tpu.concatenate %271, %272, %273 in 1 : vector<64x128xbf16>, vector<64x128xbf16>, vector<64x128xbf16> -> vector<64x384xbf16>
    %cst_154 = arith.constant dense<0.000000e+00> : vector<64x128xf32>
    %275 = tpu.matmul %274, %266, %cst_154 {dimension_numbers = #tpu.dot_dimension_numbers<[1], [0], [0], [1], [0, 0, 1, 1], [], []>} : vector<64x384xbf16>, vector<384x128xbf16>, vector<64x128xf32> -> vector<64x128xf32>
    %276 = vector.broadcast %267 : vector<1x128xf32> to vector<64x128xf32>
    %277 = arith.addf %275, %276 : vector<64x128xf32>
    %c0_155 = arith.constant 0 : index
    %c0_156 = arith.constant 0 : index
    %c0_157 = arith.constant 0 : index
    %278 = vector.load %arg22[%c0_155, %c0_156, %c0_157] : memref<1x64x128xf32, #tpu.memory_space<vmem>>, vector<1x64x128xf32>
    %279 = vector.shape_cast %278 : vector<1x64x128xf32> to vector<64x128xf32>
    %280 = vector.shape_cast %277 : vector<64x128xf32> to vector<1x64x128xf32>
    tpu.vector_store %arg22[%c0_155, %c0_156, %c0_157], %280 {strides = array<i32>} : memref<1x64x128xf32, #tpu.memory_space<vmem>>, vector<1x64x128xf32>,
    return
  }
  func.func @transform_0(%arg0: i32) -> (i32, i32, i32) {
    %c0_i32 = arith.constant 0 : i32
    %c0_i32_0 = arith.constant 0 : i32
    %c0_i32_1 = arith.constant 0 : i32
    return %arg0, %c0_i32, %c0_i32_0 : i32, i32, i32
  }
  func.func @transform_1(%arg0: i32) -> (i32, i32) {
    %c0_i32 = arith.constant 0 : i32
    %c0_i32_0 = arith.constant 0 : i32
    %c0_i32_1 = arith.constant 0 : i32
    return %c0_i32, %c0_i32_0 : i32, i32
  }
  func.func @transform_2(%arg0: i32) -> (i32, i32) {
    %c0_i32 = arith.constant 0 : i32
    %c0_i32_0 = arith.constant 0 : i32
    %c0_i32_1 = arith.constant 0 : i32
    return %c0_i32, %c0_i32_0 : i32, i32
  }
  func.func @transform_3(%arg0: i32) -> (i32, i32, i32) {
    %c0_i32 = arith.constant 0 : i32
    %c0_i32_0 = arith.constant 0 : i32
    %c0_i32_1 = arith.constant 0 : i32
    %c0_i32_2 = arith.constant 0 : i32
    return %c0_i32, %c0_i32_0, %c0_i32_1 : i32, i32, i32
  }
  func.func @transform_4(%arg0: i32) -> (i32, i32, i32) {
    %c0_i32 = arith.constant 0 : i32
    %c0_i32_0 = arith.constant 0 : i32
    %c0_i32_1 = arith.constant 0 : i32
    %c0_i32_2 = arith.constant 0 : i32
    return %c0_i32, %c0_i32_0, %c0_i32_1 : i32, i32, i32
  }
  func.func @transform_5(%arg0: i32) -> (i32, i32, i32) {
    %c0_i32 = arith.constant 0 : i32
    %c0_i32_0 = arith.constant 0 : i32
    %c0_i32_1 = arith.constant 0 : i32
    %c0_i32_2 = arith.constant 0 : i32
    return %c0_i32, %c0_i32_0, %c0_i32_1 : i32, i32, i32
  }
  func.func @transform_6(%arg0: i32) -> (i32, i32, i32) {
    %c0_i32 = arith.constant 0 : i32
    %c0_i32_0 = arith.constant 0 : i32
    %c0_i32_1 = arith.constant 0 : i32
    %c0_i32_2 = arith.constant 0 : i32
    return %c0_i32, %c0_i32_0, %c0_i32_1 : i32, i32, i32
  }
  func.func @transform_7(%arg0: i32) -> (i32, i32) {
    %c0_i32 = arith.constant 0 : i32
    %c0_i32_0 = arith.constant 0 : i32
    %c0_i32_1 = arith.constant 0 : i32
    return %c0_i32, %c0_i32_0 : i32, i32
  }
  func.func @transform_8(%arg0: i32) -> (i32, i32) {
    %c0_i32 = arith.constant 0 : i32
    %c0_i32_0 = arith.constant 0 : i32
    %c0_i32_1 = arith.constant 0 : i32
    return %c0_i32, %c0_i32_0 : i32, i32
  }
  func.func @transform_9(%arg0: i32) -> (i32, i32) {
    %c0_i32 = arith.constant 0 : i32
    %c0_i32_0 = arith.constant 0 : i32
    %c0_i32_1 = arith.constant 0 : i32
    return %c0_i32, %c0_i32_0 : i32, i32
  }
  func.func @transform_10(%arg0: i32) -> (i32, i32, i32) {
    %c0_i32 = arith.constant 0 : i32
    %c0_i32_0 = arith.constant 0 : i32
    %c0_i32_1 = arith.constant 0 : i32
    %c0_i32_2 = arith.constant 0 : i32
    return %c0_i32, %c0_i32_0, %c0_i32_1 : i32, i32, i32
  }
  func.func @transform_11(%arg0: i32) -> (i32, i32, i32) {
    %c0_i32 = arith.constant 0 : i32
    %c0_i32_0 = arith.constant 0 : i32
    %c0_i32_1 = arith.constant 0 : i32
    %c0_i32_2 = arith.constant 0 : i32
    return %c0_i32, %c0_i32_0, %c0_i32_1 : i32, i32, i32
  }
  func.func @transform_12(%arg0: i32) -> (i32, i32, i32) {
    %c0_i32 = arith.constant 0 : i32
    %c0_i32_0 = arith.constant 0 : i32
    %c0_i32_1 = arith.constant 0 : i32
    %c0_i32_2 = arith.constant 0 : i32
    return %c0_i32, %c0_i32_0, %c0_i32_1 : i32, i32, i32
  }
  func.func @transform_13(%arg0: i32) -> (i32, i32, i32) {
    %c0_i32 = arith.constant 0 : i32
    %c0_i32_0 = arith.constant 0 : i32
    %c0_i32_1 = arith.constant 0 : i32
    %c0_i32_2 = arith.constant 0 : i32
    return %c0_i32, %c0_i32_0, %c0_i32_1 : i32, i32, i32
  }
  func.func @transform_14(%arg0: i32) -> (i32, i32) {
    %c0_i32 = arith.constant 0 : i32
    %c0_i32_0 = arith.constant 0 : i32
    %c0_i32_1 = arith.constant 0 : i32
    return %c0_i32, %c0_i32_0 : i32, i32
  }
  func.func @transform_15(%arg0: i32) -> (i32, i32) {
    %c0_i32 = arith.constant 0 : i32
    %c0_i32_0 = arith.constant 0 : i32
    %c0_i32_1 = arith.constant 0 : i32
    return %c0_i32, %c0_i32_0 : i32, i32
  }
  func.func @transform_16(%arg0: i32) -> (i32, i32) {
    %c0_i32 = arith.constant 0 : i32
    %c0_i32_0 = arith.constant 0 : i32
    %c0_i32_1 = arith.constant 0 : i32
    return %c0_i32, %c0_i32_0 : i32, i32
  }
  func.func @transform_17(%arg0: i32) -> (i32, i32) {
    %c0_i32 = arith.constant 0 : i32
    %c0_i32_0 = arith.constant 0 : i32
    %c0_i32_1 = arith.constant 0 : i32
    return %c0_i32, %c0_i32_0 : i32, i32
  }
  func.func @transform_18(%arg0: i32) -> (i32, i32) {
    %c0_i32 = arith.constant 0 : i32
    %c0_i32_0 = arith.constant 0 : i32
    %c0_i32_1 = arith.constant 0 : i32
    return %c0_i32, %c0_i32_0 : i32, i32
  }
  func.func @transform_19(%arg0: i32) -> (i32, i32) {
    %c0_i32 = arith.constant 0 : i32
    %c0_i32_0 = arith.constant 0 : i32
    %c0_i32_1 = arith.constant 0 : i32
    return %c0_i32, %c0_i32_0 : i32, i32
  }
  func.func @transform_20(%arg0: i32) -> (i32, i32) {
    %c0_i32 = arith.constant 0 : i32
    %c0_i32_0 = arith.constant 0 : i32
    %c0_i32_1 = arith.constant 0 : i32
    return %c0_i32, %c0_i32_0 : i32, i32
  }
  func.func @transform_21(%arg0: i32) -> (i32, i32, i32) {
    %c0_i32 = arith.constant 0 : i32
    %c0_i32_0 = arith.constant 0 : i32
    %c0_i32_1 = arith.constant 0 : i32
    return %arg0, %c0_i32, %c0_i32_0 : i32, i32, i32
  }
}

</mosaic_0001>

<llo_original>
// kernel: decoder_forward.1
$region0: #{decoder_forward.1}
  #allocation0 [shape = 'u32[]', space=smem, size = 0x4, offset = 0x4, fixed_abs, tag = 'smem constant byte address 0x4 - core index']
  #allocation1 [shape = 'u32[144,128]{1,0:T(1,128)}', space=vmem, size = 0x12000, scoped, tag = 'internal scratch']
  %s0 = inlined_call_operand.hbm [shape: f32[2,16,32], index: 0, kind: input, shape index: {}]
  %s1 = inlined_call_operand.hbm [shape: bf16[96,128], index: 1, kind: input, shape index: {}]
  %s2 = inlined_call_operand.hbm [shape: f32[1,128], index: 2, kind: input, shape index: {}]
  %s3 = inlined_call_operand.hbm [shape: bf16[3,384,128], index: 3, kind: input, shape index: {}]
  %s4 = inlined_call_operand.hbm [shape: f32[3,1,128], index: 4, kind: input, shape index: {}]
  %s5 = inlined_call_operand.hbm [shape: bf16[3,128,128], index: 5, kind: input, shape index: {}]
  %s6 = inlined_call_operand.hbm [shape: f32[3,1,128], index: 6, kind: input, shape index: {}]
  %s7 = inlined_call_operand.hbm [shape: bf16[256,128], index: 7, kind: input, shape index: {}]
  %s8 = inlined_call_operand.hbm [shape: bf16[256,128], index: 8, kind: input, shape index: {}]
  %s9 = inlined_call_operand.hbm [shape: f32[1,128], index: 9, kind: input, shape index: {}]
  %s10 = inlined_call_operand.hbm [shape: bf16[3,384,128], index: 10, kind: input, shape index: {}]
  %s11 = inlined_call_operand.hbm [shape: f32[3,1,128], index: 11, kind: input, shape index: {}]
  %s12 = inlined_call_operand.hbm [shape: bf16[3,128,128], index: 12, kind: input, shape index: {}]
  %s13 = inlined_call_operand.hbm [shape: f32[3,1,128], index: 13, kind: input, shape index: {}]
  %s14 = inlined_call_operand.hbm [shape: bf16[256,128], index: 14, kind: input, shape index: {}]
  %s15 = inlined_call_operand.hbm [shape: bf16[256,128], index: 15, kind: input, shape index: {}]
  %s16 = inlined_call_operand.hbm [shape: f32[1,128], index: 16, kind: input, shape index: {}]
  %s17 = inlined_call_operand.hbm [shape: bf16[384,128], index: 17, kind: input, shape index: {}]
  %s18 = inlined_call_operand.hbm [shape: f32[1,128], index: 18, kind: input, shape index: {}]
  %s19 = inlined_call_operand.hbm [shape: bf16[384,128], index: 19, kind: input, shape index: {}]
  %s20 = inlined_call_operand.hbm [shape: f32[1,128], index: 20, kind: input, shape index: {}]
  %s21 = inlined_call_operand.hbm [shape: f32[2,64,128], index: 21, kind: output, shape index: {}]
  %s22 = sld [smem:[#allocation0]]
  $region201: #{decoder_forward.1} parent=0
    _
  %s24 = ssub.s32 1, %s22
  %s25 = scalar_select 0, %s24, %s22
  $region1: #{decoder_forward.1} parent=0
    #allocation2 [shape = 'u8[16384]{0}', space=vmem, size = 0x4000, scoped, tag = 'input window, operand 0']
    #allocation3 [shape = 's32[2]{0}', space=sflag, size = 0x8, scoped, tag = 'scoped memory for decoder_forward.1']
    #allocation4 [shape = 's32[2]{0}', space=sflag, size = 0x8, scoped, tag = 'scoped memory for decoder_forward.1']
    #allocation5 [shape = 'u8[24576]{0}', space=vmem, size = 0x6000, scoped, tag = 'input window, operand 1, single buffered']
    #allocation6 [shape = 's32[1]{0}', space=sflag, size = 0x4, scoped, tag = 'scoped memory for decoder_forward.1']
    #allocation7 [shape = 'u8[512]{0}', space=vmem, size = 0x400, scoped, tag = 'input window, operand 2, single buffered']
    #allocation8 [shape = 'u8[294912]{0}', space=vmem, size = 0x48000, scoped, tag = 'input window, operand 3, single buffered']
    #allocation9 [shape = 's32[1]{0}', space=sflag, size = 0x4, scoped, tag = 'scoped memory for decoder_forward.1']
    #allocation10 [shape = 'u8[1536]{0}', space=vmem, size = 0x800, scoped, tag = 'input window, operand 4, single buffered']
    #allocation11 [shape = 'u8[98304]{0}', space=vmem, size = 0x18000, scoped, tag = 'input window, operand 5, single buffered']
    #allocation12 [shape = 's32[1]{0}', space=sflag, size = 0x4, scoped, tag = 'scoped memory for decoder_forward.1']
    #allocation13 [shape = 'u8[1536]{0}', space=vmem, size = 0x800, scoped, tag = 'input window, operand 6, single buffered']
    #allocation14 [shape = 'u8[65536]{0}', space=vmem, size = 0x10000, scoped, tag = 'input window, operand 7, single buffered']
    #allocation15 [shape = 's32[1]{0}', space=sflag, size = 0x4, scoped, tag = 'scoped memory for decoder_forward.1']
    #allocation16 [shape = 'u8[65536]{0}', space=vmem, size = 0x10000, scoped, tag = 'input window, operand 8, single buffered']
    #allocation17 [shape = 'u8[512]{0}', space=vmem, size = 0x400, scoped, tag = 'input window, operand 9, single buffered']
    #allocation18 [shape = 's32[1]{0}', space=sflag, size = 0x4, scoped, tag = 'scoped memory for decoder_forward.1']
    #allocation19 [shape = 'u8[294912]{0}', space=vmem, size = 0x48000, scoped, tag = 'input window, operand 10, single buffered']
    #allocation20 [shape = 'u8[1536]{0}', space=vmem, size = 0x800, scoped, tag = 'input window, operand 11, single buffered']
    #allocation21 [shape = 's32[1]{0}', space=sflag, size = 0x4, scoped, tag = 'scoped memory for decoder_forward.1']
    #allocation22 [shape = 'u8[98304]{0}', space=vmem, size = 0x18000, scoped, tag = 'input window, operand 12, single buffered']
    #allocation23 [shape = 'u8[1536]{0}', space=vmem, size = 0x800, scoped, tag = 'input window, operand 13, single buffered']
    #allocation24 [shape = 's32[1]{0}', space=sflag, size = 0x4, scoped, tag = 'scoped memory for decoder_forward.1']
    #allocation25 [shape = 'u8[65536]{0}', space=vmem, size = 0x10000, scoped, tag = 'input window, operand 14, single buffered']
    #allocation26 [shape = 'u8[65536]{0}', space=vmem, size = 0x10000, scoped, tag = 'input window, operand 15, single buffered']
    #allocation27 [shape = 's32[1]{0}', space=sflag, size = 0x4, scoped, tag = 'scoped memory for decoder_forward.1']
    #allocation28 [shape = 'u8[512]{0}', space=vmem, size = 0x400, scoped, tag = 'input window, operand 16, single buffered']
    #allocation29 [shape = 'u8[98304]{0}', space=vmem, size = 0x18000, scoped, tag = 'input window, operand 17, single buffered']
    #allocation30 [shape = 's32[1]{0}', space=sflag, size = 0x4, scoped, tag = 'scoped memory for decoder_forward.1']
    #allocation31 [shape = 'u8[512]{0}', space=vmem, size = 0x400, scoped, tag = 'input window, operand 18, single buffered']
    #allocation32 [shape = 'u8[98304]{0}', space=vmem, size = 0x18000, scoped, tag = 'input window, operand 19, single buffered']
    #allocation33 [shape = 's32[1]{0}', space=sflag, size = 0x4, scoped, tag = 'scoped memory for decoder_forward.1']
    #allocation34 [shape = 'u8[512]{0}', space=vmem, size = 0x400, scoped, tag = 'input window, operand 20, single buffered']
    #allocation35 [shape = 'u8[65536]{0}', space=vmem, size = 0x10000, scoped, tag = 'output window, operand 0']
    %26 = vsyncpa [#allocation3], 0
    %s27 = scalar_lea.sflag [#allocation3], 1
    %28 = vsyncpa %s27, 0
    %29 = vsyncpa [#allocation6], 0
    %30 = vsyncpa [#allocation9], 0
    %31 = vsyncpa [#allocation12], 0
    %32 = vsyncpa [#allocation15], 0
    %33 = vsyncpa [#allocation18], 0
    %34 = vsyncpa [#allocation21], 0
    %35 = vsyncpa [#allocation24], 0
    %36 = vsyncpa [#allocation27], 0
    %37 = vsyncpa [#allocation30], 0
    %38 = vsyncpa [#allocation33], 0
    %39 = vsyncpa [#allocation4], 0
    %s40 = scalar_lea.sflag [#allocation4], 1
    %41 = vsyncpa %s40, 0
    loop: start=0, step=1, limit=4
    $region2: #{decoder_forward.1} parent=1 // loop_pre_header
      _
    $region3: #{decoder_forward.1} parent=1 // loop_header
      %s43 = sphi 0, %s47
      %p44 = scmp.ge.s32.totalorder %s43, 4
      %s53 = sphi 0, %s55
      %s56 = sphi 0, %s53
      %s57 = sphi 0, %s56
      %s73 = sphi 0, %s57
      %s77 = sphi 0, %s77
      %s79 = sphi 0, %s77
      %s80 = sphi 0, %s79
      %s94 = sphi 0, %s80
      %s98 = sphi 0, %s98
      %s100 = sphi 0, %s98
      %s101 = sphi 0, %s100
      %s115 = sphi 0, %s101
      %s119 = sphi 0, %s119
      %s121 = sphi 0, %s119
      %s122 = sphi 0, %s121
      %s136 = sphi 0, %s122
      %s140 = sphi 0, %s140
      %s142 = sphi 0, %s140
      %s143 = sphi 0, %s142
      %s157 = sphi 0, %s143
      %s161 = sphi 0, %s161
      %s163 = sphi 0, %s161
      %s164 = sphi 0, %s163
      %s178 = sphi 0, %s164
      %s182 = sphi 0, %s182
      %s184 = sphi 0, %s182
      %s185 = sphi 0, %s184
      %s199 = sphi 0, %s185
      %s203 = sphi 0, %s203
      %s205 = sphi 0, %s203
      %s206 = sphi 0, %s205
      %s220 = sphi 0, %s206
      %s224 = sphi 0, %s224
      %s226 = sphi 0, %s224
      %s227 = sphi 0, %s226
      %s241 = sphi 0, %s227
      %s245 = sphi 0, %s245
      %s247 = sphi 0, %s245
      %s248 = sphi 0, %s247
      %s262 = sphi 0, %s248
      %s266 = sphi 0, %s266
      %s268 = sphi 0, %s266
      %s269 = sphi 0, %s268
      %s283 = sphi 0, %s269
      %s287 = sphi 0, %s287
      %s289 = sphi 0, %s287
      %s290 = sphi 0, %s289
      %s304 = sphi 0, %s290
      %s308 = sphi 0, %s308
      %s310 = sphi 0, %s308
      %s311 = sphi 0, %s310
      %s325 = sphi 0, %s311
      %s329 = sphi 0, %s329
      %s331 = sphi 0, %s329
      %s332 = sphi 0, %s331
      %s346 = sphi 0, %s332
      %s350 = sphi 0, %s350
      %s352 = sphi 0, %s350
      %s353 = sphi 0, %s352
      %s367 = sphi 0, %s353
      %s371 = sphi 0, %s371
      %s373 = sphi 0, %s371
      %s374 = sphi 0, %s373
      %s388 = sphi 0, %s374
      %s392 = sphi 0, %s392
      %s394 = sphi 0, %s392
      %s395 = sphi 0, %s394
      %s409 = sphi 0, %s395
      %s413 = sphi 0, %s413
      %s415 = sphi 0, %s413
      %s416 = sphi 0, %s415
      %s430 = sphi 0, %s416
      %s434 = sphi 0, %s434
      %s436 = sphi 0, %s434
      %s437 = sphi 0, %s436
      %s451 = sphi 0, %s437
      %s455 = sphi 0, %s455
      %s457 = sphi 0, %s455
      %s458 = sphi 0, %s457
      %s472 = sphi 0, %s458
      %s476 = sphi 0, %s476
      %s478 = sphi 0, %s476
      %s479 = sphi 0, %s478
      %s493 = sphi 0, %s479
      %s499 = sphi 0, %s501
      %s502 = sphi 0, %s499
      %s503 = sphi 0, %s502
      %s519 = sphi 0, %s503
    $region4: #{decoder_forward.1} parent=1 // loop_header_branch
      %46 = sbr.rel (%p44) target = $region8
    $region5: #{decoder_forward.1} parent=1 // loop_body
      %s48 = ssub.s32 %s43, 1
      %s49 = ssub.s32 %s43, 2
      %s50 = sadd.s32 %s43, 1
      %s51 = ssub.s32 %s43, %s50
      %p52 = scmp.eq.s32.totalorder %s51, 0
      %s54 = sadd.s32 %s53, 1
      %s55 = scalar_select %p52, %s53, %s54
      %p58 = pneg %p52
      %p59 = scmp.eq.s32.totalorder %s43, 1
      %p60 = por %p58, %p59
      %p61 = scmp.ne.s32.totalorder %s53, %s56
      %p62 = scmp.eq.s32.totalorder %s43, 0
      %p63 = por %p61, %p62
      %p64 = scmp.ne.s32.totalorder %s53, %s56
      %p65 = scmp.eq.s32.totalorder %s48, 1
      %p66 = por %p64, %p65
      %p67 = scmp.ne.s32.totalorder %s56, %s57
      %p68 = scmp.eq.s32.totalorder %s48, 0
      %p69 = por %p67, %p68
      %p70 = scmp.ne.s32.totalorder %s56, %s57
      %p71 = scmp.eq.s32.totalorder %s49, 1
      %p72 = por %p70, %p71
      %p74 = scmp.ne.s32.totalorder %s57, %s73
      %p75 = scmp.eq.s32.totalorder %s49, 0
      %p76 = por %p74, %p75
      %s78 = sadd.s32 %s77, 1
      %p81 = scmp.eq.s32.totalorder %s43, 1
      %p82 = scmp.ne.s32.totalorder %s77, %s79
      %p83 = scmp.eq.s32.totalorder %s43, 0
      %p84 = por %p82, %p83
      %p85 = scmp.ne.s32.totalorder %s77, %s79
      %p86 = scmp.eq.s32.totalorder %s48, 1
      %p87 = por %p85, %p86
      %p88 = scmp.ne.s32.totalorder %s79, %s80
      %p89 = scmp.eq.s32.totalorder %s48, 0
      %p90 = por %p88, %p89
      %p91 = scmp.ne.s32.totalorder %s79, %s80
      %p92 = scmp.eq.s32.totalorder %s49, 1
      %p93 = por %p91, %p92
      %p95 = scmp.ne.s32.totalorder %s80, %s94
      %p96 = scmp.eq.s32.totalorder %s49, 0
      %p97 = por %p95, %p96
      %s99 = sadd.s32 %s98, 1
      %p102 = scmp.eq.s32.totalorder %s43, 1
      %p103 = scmp.ne.s32.totalorder %s98, %s100
      %p104 = scmp.eq.s32.totalorder %s43, 0
      %p105 = por %p103, %p104
      %p106 = scmp.ne.s32.totalorder %s98, %s100
      %p107 = scmp.eq.s32.totalorder %s48, 1
      %p108 = por %p106, %p107
      %p109 = scmp.ne.s32.totalorder %s100, %s101
      %p110 = scmp.eq.s32.totalorder %s48, 0
      %p111 = por %p109, %p110
      %p112 = scmp.ne.s32.totalorder %s100, %s101
      %p113 = scmp.eq.s32.totalorder %s49, 1
      %p114 = por %p112, %p113
      %p116 = scmp.ne.s32.totalorder %s101, %s115
      %p117 = scmp.eq.s32.totalorder %s49, 0
      %p118 = por %p116, %p117
      %s120 = sadd.s32 %s119, 1
      %p123 = scmp.eq.s32.totalorder %s43, 1
      %p124 = scmp.ne.s32.totalorder %s119, %s121
      %p125 = scmp.eq.s32.totalorder %s43, 0
      %p126 = por %p124, %p125
      %p127 = scmp.ne.s32.totalorder %s119, %s121
      %p128 = scmp.eq.s32.totalorder %s48, 1
      %p129 = por %p127, %p128
      %p130 = scmp.ne.s32.totalorder %s121, %s122
      %p131 = scmp.eq.s32.totalorder %s48, 0
      %p132 = por %p130, %p131
      %p133 = scmp.ne.s32.totalorder %s121, %s122
      %p134 = scmp.eq.s32.totalorder %s49, 1
      %p135 = por %p133, %p134
      %p137 = scmp.ne.s32.totalorder %s122, %s136
      %p138 = scmp.eq.s32.totalorder %s49, 0
      %p139 = por %p137, %p138
      %s141 = sadd.s32 %s140, 1
      %p144 = scmp.eq.s32.totalorder %s43, 1
      %p145 = scmp.ne.s32.totalorder %s140, %s142
      %p146 = scmp.eq.s32.totalorder %s43, 0
      %p147 = por %p145, %p146
      %p148 = scmp.ne.s32.totalorder %s140, %s142
      %p149 = scmp.eq.s32.totalorder %s48, 1
      %p150 = por %p148, %p149
      %p151 = scmp.ne.s32.totalorder %s142, %s143
      %p152 = scmp.eq.s32.totalorder %s48, 0
      %p153 = por %p151, %p152
      %p154 = scmp.ne.s32.totalorder %s142, %s143
      %p155 = scmp.eq.s32.totalorder %s49, 1
      %p156 = por %p154, %p155
      %p158 = scmp.ne.s32.totalorder %s143, %s157
      %p159 = scmp.eq.s32.totalorder %s49, 0
      %p160 = por %p158, %p159
      %s162 = sadd.s32 %s161, 1
      %p165 = scmp.eq.s32.totalorder %s43, 1
      %p166 = scmp.ne.s32.totalorder %s161, %s163
      %p167 = scmp.eq.s32.totalorder %s43, 0
      %p168 = por %p166, %p167
      %p169 = scmp.ne.s32.totalorder %s161, %s163
      %p170 = scmp.eq.s32.totalorder %s48, 1
      %p171 = por %p169, %p170
      %p172 = scmp.ne.s32.totalorder %s163, %s164
      %p173 = scmp.eq.s32.totalorder %s48, 0
      %p174 = por %p172, %p173
      %p175 = scmp.ne.s32.totalorder %s163, %s164
      %p176 = scmp.eq.s32.totalorder %s49, 1
      %p177 = por %p175, %p176
      %p179 = scmp.ne.s32.totalorder %s164, %s178
      %p180 = scmp.eq.s32.totalorder %s49, 0
      %p181 = por %p179, %p180
      %s183 = sadd.s32 %s182, 1
      %p186 = scmp.eq.s32.totalorder %s43, 1
      %p187 = scmp.ne.s32.totalorder %s182, %s184
      %p188 = scmp.eq.s32.totalorder %s43, 0
      %p189 = por %p187, %p188
      %p190 = scmp.ne.s32.totalorder %s182, %s184
      %p191 = scmp.eq.s32.totalorder %s48, 1
      %p192 = por %p190, %p191
      %p193 = scmp.ne.s32.totalorder %s184, %s185
      %p194 = scmp.eq.s32.totalorder %s48, 0
      %p195 = por %p193, %p194
      %p196 = scmp.ne.s32.totalorder %s184, %s185
      %p197 = scmp.eq.s32.totalorder %s49, 1
      %p198 = por %p196, %p197
      %p200 = scmp.ne.s32.totalorder %s185, %s199
      %p201 = scmp.eq.s32.totalorder %s49, 0
      %p202 = por %p200, %p201
      %s204 = sadd.s32 %s203, 1
      %p207 = scmp.eq.s32.totalorder %s43, 1
      %p208 = scmp.ne.s32.totalorder %s203, %s205
      %p209 = scmp.eq.s32.totalorder %s43, 0
      %p210 = por %p208, %p209
      %p211 = scmp.ne.s32.totalorder %s203, %s205
      %p212 = scmp.eq.s32.totalorder %s48, 1
      %p213 = por %p211, %p212
      %p214 = scmp.ne.s32.totalorder %s205, %s206
      %p215 = scmp.eq.s32.totalorder %s48, 0
      %p216 = por %p214, %p215
      %p217 = scmp.ne.s32.totalorder %s205, %s206
      %p218 = scmp.eq.s32.totalorder %s49, 1
      %p219 = por %p217, %p218
      %p221 = scmp.ne.s32.totalorder %s206, %s220
      %p222 = scmp.eq.s32.totalorder %s49, 0
      %p223 = por %p221, %p222
      %s225 = sadd.s32 %s224, 1
      %p228 = scmp.eq.s32.totalorder %s43, 1
      %p229 = scmp.ne.s32.totalorder %s224, %s226
      %p230 = scmp.eq.s32.totalorder %s43, 0
      %p231 = por %p229, %p230
      %p232 = scmp.ne.s32.totalorder %s224, %s226
      %p233 = scmp.eq.s32.totalorder %s48, 1
      %p234 = por %p232, %p233
      %p235 = scmp.ne.s32.totalorder %s226, %s227
      %p236 = scmp.eq.s32.totalorder %s48, 0
      %p237 = por %p235, %p236
      %p238 = scmp.ne.s32.totalorder %s226, %s227
      %p239 = scmp.eq.s32.totalorder %s49, 1
      %p240 = por %p238, %p239
      %p242 = scmp.ne.s32.totalorder %s227, %s241
      %p243 = scmp.eq.s32.totalorder %s49, 0
      %p244 = por %p242, %p243
      %s246 = sadd.s32 %s245, 1
      %p249 = scmp.eq.s32.totalorder %s43, 1
      %p250 = scmp.ne.s32.totalorder %s245, %s247
      %p251 = scmp.eq.s32.totalorder %s43, 0
      %p252 = por %p250, %p251
      %p253 = scmp.ne.s32.totalorder %s245, %s247
      %p254 = scmp.eq.s32.totalorder %s48, 1
      %p255 = por %p253, %p254
      %p256 = scmp.ne.s32.totalorder %s247, %s248
      %p257 = scmp.eq.s32.totalorder %s48, 0
      %p258 = por %p256, %p257
      %p259 = scmp.ne.s32.totalorder %s247, %s248
      %p260 = scmp.eq.s32.totalorder %s49, 1
      %p261 = por %p259, %p260
      %p263 = scmp.ne.s32.totalorder %s248, %s262
      %p264 = scmp.eq.s32.totalorder %s49, 0
      %p265 = por %p263, %p264
      %s267 = sadd.s32 %s266, 1
      %p270 = scmp.eq.s32.totalorder %s43, 1
      %p271 = scmp.ne.s32.totalorder %s266, %s268
      %p272 = scmp.eq.s32.totalorder %s43, 0
      %p273 = por %p271, %p272
      %p274 = scmp.ne.s32.totalorder %s266, %s268
      %p275 = scmp.eq.s32.totalorder %s48, 1
      %p276 = por %p274, %p275
      %p277 = scmp.ne.s32.totalorder %s268, %s269
      %p278 = scmp.eq.s32.totalorder %s48, 0
      %p279 = por %p277, %p278
      %p280 = scmp.ne.s32.totalorder %s268, %s269
      %p281 = scmp.eq.s32.totalorder %s49, 1
      %p282 = por %p280, %p281
      %p284 = scmp.ne.s32.totalorder %s269, %s283
      %p285 = scmp.eq.s32.totalorder %s49, 0
      %p286 = por %p284, %p285
      %s288 = sadd.s32 %s287, 1
      %p291 = scmp.eq.s32.totalorder %s43, 1
      %p292 = scmp.ne.s32.totalorder %s287, %s289
      %p293 = scmp.eq.s32.totalorder %s43, 0
      %p294 = por %p292, %p293
      %p295 = scmp.ne.s32.totalorder %s287, %s289
      %p296 = scmp.eq.s32.totalorder %s48, 1
      %p297 = por %p295, %p296
      %p298 = scmp.ne.s32.totalorder %s289, %s290
      %p299 = scmp.eq.s32.totalorder %s48, 0
      %p300 = por %p298, %p299
      %p301 = scmp.ne.s32.totalorder %s289, %s290
      %p302 = scmp.eq.s32.totalorder %s49, 1
      %p303 = por %p301, %p302
      %p305 = scmp.ne.s32.totalorder %s290, %s304
      %p306 = scmp.eq.s32.totalorder %s49, 0
      %p307 = por %p305, %p306
      %s309 = sadd.s32 %s308, 1
      %p312 = scmp.eq.s32.totalorder %s43, 1
      %p313 = scmp.ne.s32.totalorder %s308, %s310
      %p314 = scmp.eq.s32.totalorder %s43, 0
      %p315 = por %p313, %p314
      %p316 = scmp.ne.s32.totalorder %s308, %s310
      %p317 = scmp.eq.s32.totalorder %s48, 1
      %p318 = por %p316, %p317
      %p319 = scmp.ne.s32.totalorder %s310, %s311
      %p320 = scmp.eq.s32.totalorder %s48, 0
      %p321 = por %p319, %p320
      %p322 = scmp.ne.s32.totalorder %s310, %s311
      %p323 = scmp.eq.s32.totalorder %s49, 1
      %p324 = por %p322, %p323
      %p326 = scmp.ne.s32.totalorder %s311, %s325
      %p327 = scmp.eq.s32.totalorder %s49, 0
      %p328 = por %p326, %p327
      %s330 = sadd.s32 %s329, 1
      %p333 = scmp.eq.s32.totalorder %s43, 1
      %p334 = scmp.ne.s32.totalorder %s329, %s331
      %p335 = scmp.eq.s32.totalorder %s43, 0
      %p336 = por %p334, %p335
      %p337 = scmp.ne.s32.totalorder %s329, %s331
      %p338 = scmp.eq.s32.totalorder %s48, 1
      %p339 = por %p337, %p338
      %p340 = scmp.ne.s32.totalorder %s331, %s332
      %p341 = scmp.eq.s32.totalorder %s48, 0
      %p342 = por %p340, %p341
      %p343 = scmp.ne.s32.totalorder %s331, %s332
      %p344 = scmp.eq.s32.totalorder %s49, 1
      %p345 = por %p343, %p344
      %p347 = scmp.ne.s32.totalorder %s332, %s346
      %p348 = scmp.eq.s32.totalorder %s49, 0
      %p349 = por %p347, %p348
      %s351 = sadd.s32 %s350, 1
      %p354 = scmp.eq.s32.totalorder %s43, 1
      %p355 = scmp.ne.s32.totalorder %s350, %s352
      %p356 = scmp.eq.s32.totalorder %s43, 0
      %p357 = por %p355, %p356
      %p358 = scmp.ne.s32.totalorder %s350, %s352
      %p359 = scmp.eq.s32.totalorder %s48, 1
      %p360 = por %p358, %p359
      %p361 = scmp.ne.s32.totalorder %s352, %s353
      %p362 = scmp.eq.s32.totalorder %s48, 0
      %p363 = por %p361, %p362
      %p364 = scmp.ne.s32.totalorder %s352, %s353
      %p365 = scmp.eq.s32.totalorder %s49, 1
      %p366 = por %p364, %p365
      %p368 = scmp.ne.s32.totalorder %s353, %s367
      %p369 = scmp.eq.s32.totalorder %s49, 0
      %p370 = por %p368, %p369
      %s372 = sadd.s32 %s371, 1
      %p375 = scmp.eq.s32.totalorder %s43, 1
      %p376 = scmp.ne.s32.totalorder %s371, %s373
      %p377 = scmp.eq.s32.totalorder %s43, 0
      %p378 = por %p376, %p377
      %p379 = scmp.ne.s32.totalorder %s371, %s373
      %p380 = scmp.eq.s32.totalorder %s48, 1
      %p381 = por %p379, %p380
      %p382 = scmp.ne.s32.totalorder %s373, %s374
      %p383 = scmp.eq.s32.totalorder %s48, 0
      %p384 = por %p382, %p383
      %p385 = scmp.ne.s32.totalorder %s373, %s374
      %p386 = scmp.eq.s32.totalorder %s49, 1
      %p387 = por %p385, %p386
      %p389 = scmp.ne.s32.totalorder %s374, %s388
      %p390 = scmp.eq.s32.totalorder %s49, 0
      %p391 = por %p389, %p390
      %s393 = sadd.s32 %s392, 1
      %p396 = scmp.eq.s32.totalorder %s43, 1
      %p397 = scmp.ne.s32.totalorder %s392, %s394
      %p398 = scmp.eq.s32.totalorder %s43, 0
      %p399 = por %p397, %p398
      %p400 = scmp.ne.s32.totalorder %s392, %s394
      %p401 = scmp.eq.s32.totalorder %s48, 1
      %p402 = por %p400, %p401
      %p403 = scmp.ne.s32.totalorder %s394, %s395
      %p404 = scmp.eq.s32.totalorder %s48, 0
      %p405 = por %p403, %p404
      %p406 = scmp.ne.s32.totalorder %s394, %s395
      %p407 = scmp.eq.s32.totalorder %s49, 1
      %p408 = por %p406, %p407
      %p410 = scmp.ne.s32.totalorder %s395, %s409
      %p411 = scmp.eq.s32.totalorder %s49, 0
      %p412 = por %p410, %p411
      %s414 = sadd.s32 %s413, 1
      %p417 = scmp.eq.s32.totalorder %s43, 1
      %p418 = scmp.ne.s32.totalorder %s413, %s415
      %p419 = scmp.eq.s32.totalorder %s43, 0
      %p420 = por %p418, %p419
      %p421 = scmp.ne.s32.totalorder %s413, %s415
      %p422 = scmp.eq.s32.totalorder %s48, 1
      %p423 = por %p421, %p422
      %p424 = scmp.ne.s32.totalorder %s415, %s416
      %p425 = scmp.eq.s32.totalorder %s48, 0
      %p426 = por %p424, %p425
      %p427 = scmp.ne.s32.totalorder %s415, %s416
      %p428 = scmp.eq.s32.totalorder %s49, 1
      %p429 = por %p427, %p428
      %p431 = scmp.ne.s32.totalorder %s416, %s430
      %p432 = scmp.eq.s32.totalorder %s49, 0
      %p433 = por %p431, %p432
      %s435 = sadd.s32 %s434, 1
      %p438 = scmp.eq.s32.totalorder %s43, 1
      %p439 = scmp.ne.s32.totalorder %s434, %s436
      %p440 = scmp.eq.s32.totalorder %s43, 0
      %p441 = por %p439, %p440
      %p442 = scmp.ne.s32.totalorder %s434, %s436
      %p443 = scmp.eq.s32.totalorder %s48, 1
      %p444 = por %p442, %p443
      %p445 = scmp.ne.s32.totalorder %s436, %s437
      %p446 = scmp.eq.s32.totalorder %s48, 0
      %p447 = por %p445, %p446
      %p448 = scmp.ne.s32.totalorder %s436, %s437
      %p449 = scmp.eq.s32.totalorder %s49, 1
      %p450 = por %p448, %p449
      %p452 = scmp.ne.s32.totalorder %s437, %s451
      %p453 = scmp.eq.s32.totalorder %s49, 0
      %p454 = por %p452, %p453
      %s456 = sadd.s32 %s455, 1
      %p459 = scmp.eq.s32.totalorder %s43, 1
      %p460 = scmp.ne.s32.totalorder %s455, %s457
      %p461 = scmp.eq.s32.totalorder %s43, 0
      %p462 = por %p460, %p461
      %p463 = scmp.ne.s32.totalorder %s455, %s457
      %p464 = scmp.eq.s32.totalorder %s48, 1
      %p465 = por %p463, %p464
      %p466 = scmp.ne.s32.totalorder %s457, %s458
      %p467 = scmp.eq.s32.totalorder %s48, 0
      %p468 = por %p466, %p467
      %p469 = scmp.ne.s32.totalorder %s457, %s458
      %p470 = scmp.eq.s32.totalorder %s49, 1
      %p471 = por %p469, %p470
      %p473 = scmp.ne.s32.totalorder %s458, %s472
      %p474 = scmp.eq.s32.totalorder %s49, 0
      %p475 = por %p473, %p474
      %s477 = sadd.s32 %s476, 1
      %p480 = scmp.eq.s32.totalorder %s43, 1
      %p481 = scmp.ne.s32.totalorder %s476, %s478
      %p482 = scmp.eq.s32.totalorder %s43, 0
      %p483 = por %p481, %p482
      %p484 = scmp.ne.s32.totalorder %s476, %s478
      %p485 = scmp.eq.s32.totalorder %s48, 1
      %p486 = por %p484, %p485
      %p487 = scmp.ne.s32.totalorder %s478, %s479
      %p488 = scmp.eq.s32.totalorder %s48, 0
      %p489 = por %p487, %p488
      %p490 = scmp.ne.s32.totalorder %s478, %s479
      %p491 = scmp.eq.s32.totalorder %s49, 1
      %p492 = por %p490, %p491
      %p494 = scmp.ne.s32.totalorder %s479, %s493
      %p495 = scmp.eq.s32.totalorder %s49, 0
      %p496 = por %p494, %p495
      %s497 = ssub.s32 %s43, %s50
      %p498 = scmp.eq.s32.totalorder %s497, 0
      %s500 = sadd.s32 %s499, 1
      %s501 = scalar_select %p498, %s499, %s500
      %p504 = pneg %p498
      %p505 = scmp.eq.s32.totalorder %s43, 1
      %p506 = por %p504, %p505
      %p507 = scmp.ne.s32.totalorder %s499, %s502
      %p508 = scmp.eq.s32.totalorder %s43, 0
      %p509 = por %p507, %p508
      %p510 = scmp.ne.s32.totalorder %s499, %s502
      %p511 = scmp.eq.s32.totalorder %s48, 1
      %p512 = por %p510, %p511
      %p513 = scmp.ne.s32.totalorder %s502, %s503
      %p514 = scmp.eq.s32.totalorder %s48, 0
      %p515 = por %p513, %p514
      %p516 = scmp.ne.s32.totalorder %s502, %s503
      %p517 = scmp.eq.s32.totalorder %s49, 1
      %p518 = por %p516, %p517
      %p520 = scmp.ne.s32.totalorder %s503, %s519
      %p521 = scmp.eq.s32.totalorder %s49, 0
      %p522 = por %p520, %p521
      %p523 = scmp.le.s32.totalorder 1, %s43
      %p524 = scmp.lt.s32.totalorder %s43, 3
      %p525 = pnand %p523, %p524
      %p526 = pneg %p525
      // Predicated region
      $region9: #{decoder_forward.1} parent=5 // pred_check
        _
      $region10: #{decoder_forward.1} parent=5 // pred_check_branch
        %528 = sbr.rel (%p525) target = $region12
      $region11: #{decoder_forward.1} parent=5 // pred_region
        %s529 = ssub.s32 %s43, 1
        // Predicated region
        $region13: #{decoder_forward.1} parent=11 // pred_check
          %p530 = pneg %p90
        $region14: #{decoder_forward.1} parent=11 // pred_check_branch
          %532 = sbr.rel (%p530) target = $region16
        $region15: #{decoder_forward.1} parent=11 // pred_region
          %s534 = ssub.s32 768, 768
          %535 = vsyncadd [#allocation6], %s534
          %s536 = sshll.u32 [#allocation5], 4
          %s537 = int_to_ptr.vmem [resolvable:$true] %s536
          %542 = dma.hbm_to_vmem [thread:$0]  %s1, 768, %s537, [#allocation6], 64, 64, 4
        $region16: #{decoder_forward.1} parent=11 // pred_fallthru
          _
        // Predicated region
        $region17: #{decoder_forward.1} parent=11 // pred_check
          %p543 = pneg %p111
        $region18: #{decoder_forward.1} parent=11 // pred_check_branch
          %545 = sbr.rel (%p543) target = $region20
        $region19: #{decoder_forward.1} parent=11 // pred_region
          %s547 = ssub.s32 16, 16
          %548 = vsyncadd [#allocation6], %s547
          %s550 = sshll.u32 [#allocation7], 4
          %s551 = int_to_ptr.vmem [resolvable:$true] %s550
          %553 = dma.hbm_to_vmem [thread:$0]  %s2, 16, %s551, [#allocation6]
        $region20: #{decoder_forward.1} parent=11 // pred_fallthru
          _
        // Predicated region
        $region21: #{decoder_forward.1} parent=11 // pred_check
          %p554 = pneg %p132
        $region22: #{decoder_forward.1} parent=11 // pred_check_branch
          %556 = sbr.rel (%p554) target = $region24
        $region23: #{decoder_forward.1} parent=11 // pred_region
          %s558 = ssub.s32 9216, 9216
          %559 = vsyncadd [#allocation9], %s558
          %s560 = sshll.u32 [#allocation8], 4
          %s561 = int_to_ptr.vmem [resolvable:$true] %s560
          %566 = dma.hbm_to_vmem [thread:$0]  %s3, 9216, %s561, [#allocation9], 64, 64, 4
        $region24: #{decoder_forward.1} parent=11 // pred_fallthru
          _
        // Predicated region
        $region25: #{decoder_forward.1} parent=11 // pred_check
          %p567 = pneg %p153
        $region26: #{decoder_forward.1} parent=11 // pred_check_branch
          %569 = sbr.rel (%p567) target = $region28
        $region27: #{decoder_forward.1} parent=11 // pred_region
          %s571 = ssub.s32 48, 48
          %572 = vsyncadd [#allocation9], %s571
          %s573 = sshll.u32 [#allocation10], 4
          %s574 = int_to_ptr.vmem [resolvable:$true] %s573
          %579 = dma.hbm_to_vmem [thread:$0]  %s4, 48, %s574, [#allocation9], 16, 16, 1
        $region28: #{decoder_forward.1} parent=11 // pred_fallthru
          _
        // Predicated region
        $region29: #{decoder_forward.1} parent=11 // pred_check
          %p580 = pneg %p174
        $region30: #{decoder_forward.1} parent=11 // pred_check_branch
          %582 = sbr.rel (%p580) target = $region32
        $region31: #{decoder_forward.1} parent=11 // pred_region
          %s584 = ssub.s32 3072, 3072
          %585 = vsyncadd [#allocation12], %s584
          %s586 = sshll.u32 [#allocation11], 4
          %s587 = int_to_ptr.vmem [resolvable:$true] %s586
          %592 = dma.hbm_to_vmem [thread:$0]  %s5, 3072, %s587, [#allocation12], 64, 64, 4
        $region32: #{decoder_forward.1} parent=11 // pred_fallthru
          _
        // Predicated region
        $region33: #{decoder_forward.1} parent=11 // pred_check
          %p593 = pneg %p195
        $region34: #{decoder_forward.1} parent=11 // pred_check_branch
          %595 = sbr.rel (%p593) target = $region36
        $region35: #{decoder_forward.1} parent=11 // pred_region
          %s597 = ssub.s32 48, 48
          %598 = vsyncadd [#allocation12], %s597
          %s599 = sshll.u32 [#allocation13], 4
          %s600 = int_to_ptr.vmem [resolvable:$true] %s599
          %605 = dma.hbm_to_vmem [thread:$0]  %s6, 48, %s600, [#allocation12], 16, 16, 1
        $region36: #{decoder_forward.1} parent=11 // pred_fallthru
          _
        // Predicated region
        $region37: #{decoder_forward.1} parent=11 // pred_check
          %p606 = pneg %p216
        $region38: #{decoder_forward.1} parent=11 // pred_check_branch
          %608 = sbr.rel (%p606) target = $region40
        $region39: #{decoder_forward.1} parent=11 // pred_region
          %s610 = ssub.s32 2048, 2048
          %611 = vsyncadd [#allocation15], %s610
          %s612 = sshll.u32 [#allocation14], 4
          %s613 = int_to_ptr.vmem [resolvable:$true] %s612
          %618 = dma.hbm_to_vmem [thread:$0]  %s7, 2048, %s613, [#allocation15], 64, 64, 4
        $region40: #{decoder_forward.1} parent=11 // pred_fallthru
          _
        // Predicated region
        $region41: #{decoder_forward.1} parent=11 // pred_check
          %p619 = pneg %p237
        $region42: #{decoder_forward.1} parent=11 // pred_check_branch
          %621 = sbr.rel (%p619) target = $region44
        $region43: #{decoder_forward.1} parent=11 // pred_region
          %s623 = ssub.s32 2048, 2048
          %624 = vsyncadd [#allocation15], %s623
          %s625 = sshll.u32 [#allocation16], 4
          %s626 = int_to_ptr.vmem [resolvable:$true] %s625
          %631 = dma.hbm_to_vmem [thread:$0]  %s8, 2048, %s626, [#allocation15], 64, 64, 4
        $region44: #{decoder_forward.1} parent=11 // pred_fallthru
          _
        // Predicated region
        $region45: #{decoder_forward.1} parent=11 // pred_check
          %p632 = pneg %p258
        $region46: #{decoder_forward.1} parent=11 // pred_check_branch
          %634 = sbr.rel (%p632) target = $region48
        $region47: #{decoder_forward.1} parent=11 // pred_region
          %s636 = ssub.s32 16, 16
          %637 = vsyncadd [#allocation18], %s636
          %s639 = sshll.u32 [#allocation17], 4
          %s640 = int_to_ptr.vmem [resolvable:$true] %s639
          %642 = dma.hbm_to_vmem [thread:$0]  %s9, 16, %s640, [#allocation18]
        $region48: #{decoder_forward.1} parent=11 // pred_fallthru
          _
        // Predicated region
        $region49: #{decoder_forward.1} parent=11 // pred_check
          %p643 = pneg %p279
        $region50: #{decoder_forward.1} parent=11 // pred_check_branch
          %645 = sbr.rel (%p643) target = $region52
        $region51: #{decoder_forward.1} parent=11 // pred_region
          %s647 = ssub.s32 9216, 9216
          %648 = vsyncadd [#allocation18], %s647
          %s649 = sshll.u32 [#allocation19], 4
          %s650 = int_to_ptr.vmem [resolvable:$true] %s649
          %655 = dma.hbm_to_vmem [thread:$0]  %s10, 9216, %s650, [#allocation18], 64, 64, 4
        $region52: #{decoder_forward.1} parent=11 // pred_fallthru
          _
        // Predicated region
        $region53: #{decoder_forward.1} parent=11 // pred_check
          %p656 = pneg %p300
        $region54: #{decoder_forward.1} parent=11 // pred_check_branch
          %658 = sbr.rel (%p656) target = $region56
        $region55: #{decoder_forward.1} parent=11 // pred_region
          %s660 = ssub.s32 48, 48
          %661 = vsyncadd [#allocation21], %s660
          %s662 = sshll.u32 [#allocation20], 4
          %s663 = int_to_ptr.vmem [resolvable:$true] %s662
          %668 = dma.hbm_to_vmem [thread:$0]  %s11, 48, %s663, [#allocation21], 16, 16, 1
        $region56: #{decoder_forward.1} parent=11 // pred_fallthru
          _
        // Predicated region
        $region57: #{decoder_forward.1} parent=11 // pred_check
          %p669 = pneg %p321
        $region58: #{decoder_forward.1} parent=11 // pred_check_branch
          %671 = sbr.rel (%p669) target = $region60
        $region59: #{decoder_forward.1} parent=11 // pred_region
          %s673 = ssub.s32 3072, 3072
          %674 = vsyncadd [#allocation21], %s673
          %s675 = sshll.u32 [#allocation22], 4
          %s676 = int_to_ptr.vmem [resolvable:$true] %s675
          %681 = dma.hbm_to_vmem [thread:$0]  %s12, 3072, %s676, [#allocation21], 64, 64, 4
        $region60: #{decoder_forward.1} parent=11 // pred_fallthru
          _
        // Predicated region
        $region61: #{decoder_forward.1} parent=11 // pred_check
          %p682 = pneg %p342
        $region62: #{decoder_forward.1} parent=11 // pred_check_branch
          %684 = sbr.rel (%p682) target = $region64
        $region63: #{decoder_forward.1} parent=11 // pred_region
          %s686 = ssub.s32 48, 48
          %687 = vsyncadd [#allocation24], %s686
          %s688 = sshll.u32 [#allocation23], 4
          %s689 = int_to_ptr.vmem [resolvable:$true] %s688
          %694 = dma.hbm_to_vmem [thread:$0]  %s13, 48, %s689, [#allocation24], 16, 16, 1
        $region64: #{decoder_forward.1} parent=11 // pred_fallthru
          _
        // Predicated region
        $region65: #{decoder_forward.1} parent=11 // pred_check
          %p695 = pneg %p363
        $region66: #{decoder_forward.1} parent=11 // pred_check_branch
          %697 = sbr.rel (%p695) target = $region68
        $region67: #{decoder_forward.1} parent=11 // pred_region
          %s699 = ssub.s32 2048, 2048
          %700 = vsyncadd [#allocation24], %s699
          %s701 = sshll.u32 [#allocation25], 4
          %s702 = int_to_ptr.vmem [resolvable:$true] %s701
          %707 = dma.hbm_to_vmem [thread:$0]  %s14, 2048, %s702, [#allocation24], 64, 64, 4
        $region68: #{decoder_forward.1} parent=11 // pred_fallthru
          _
        // Predicated region
        $region69: #{decoder_forward.1} parent=11 // pred_check
          %p708 = pneg %p384
        $region70: #{decoder_forward.1} parent=11 // pred_check_branch
          %710 = sbr.rel (%p708) target = $region72
        $region71: #{decoder_forward.1} parent=11 // pred_region
          %s712 = ssub.s32 2048, 2048
          %713 = vsyncadd [#allocation27], %s712
          %s714 = sshll.u32 [#allocation26], 4
          %s715 = int_to_ptr.vmem [resolvable:$true] %s714
          %720 = dma.hbm_to_vmem [thread:$0]  %s15, 2048, %s715, [#allocation27], 64, 64, 4
        $region72: #{decoder_forward.1} parent=11 // pred_fallthru
          _
        // Predicated region
        $region73: #{decoder_forward.1} parent=11 // pred_check
          %p721 = pneg %p405
        $region74: #{decoder_forward.1} parent=11 // pred_check_branch
          %723 = sbr.rel (%p721) target = $region76
        $region75: #{decoder_forward.1} parent=11 // pred_region
          %s725 = ssub.s32 16, 16
          %726 = vsyncadd [#allocation27], %s725
          %s728 = sshll.u32 [#allocation28], 4
          %s729 = int_to_ptr.vmem [resolvable:$true] %s728
          %731 = dma.hbm_to_vmem [thread:$0]  %s16, 16, %s729, [#allocation27]
        $region76: #{decoder_forward.1} parent=11 // pred_fallthru
          _
        // Predicated region
        $region77: #{decoder_forward.1} parent=11 // pred_check
          %p732 = pneg %p426
        $region78: #{decoder_forward.1} parent=11 // pred_check_branch
          %734 = sbr.rel (%p732) target = $region80
        $region79: #{decoder_forward.1} parent=11 // pred_region
          %s736 = ssub.s32 3072, 3072
          %737 = vsyncadd [#allocation30], %s736
          %s738 = sshll.u32 [#allocation29], 4
          %s739 = int_to_ptr.vmem [resolvable:$true] %s738
          %744 = dma.hbm_to_vmem [thread:$0]  %s17, 3072, %s739, [#allocation30], 64, 64, 4
        $region80: #{decoder_forward.1} parent=11 // pred_fallthru
          _
        // Predicated region
        $region81: #{decoder_forward.1} parent=11 // pred_check
          %p745 = pneg %p447
        $region82: #{decoder_forward.1} parent=11 // pred_check_branch
          %747 = sbr.rel (%p745) target = $region84
        $region83: #{decoder_forward.1} parent=11 // pred_region
          %s749 = ssub.s32 16, 16
          %750 = vsyncadd [#allocation30], %s749
          %s752 = sshll.u32 [#allocation31], 4
          %s753 = int_to_ptr.vmem [resolvable:$true] %s752
          %755 = dma.hbm_to_vmem [thread:$0]  %s18, 16, %s753, [#allocation30]
        $region84: #{decoder_forward.1} parent=11 // pred_fallthru
          _
        // Predicated region
        $region85: #{decoder_forward.1} parent=11 // pred_check
          %p756 = pneg %p468
        $region86: #{decoder_forward.1} parent=11 // pred_check_branch
          %758 = sbr.rel (%p756) target = $region88
        $region87: #{decoder_forward.1} parent=11 // pred_region
          %s760 = ssub.s32 3072, 3072
          %761 = vsyncadd [#allocation33], %s760
          %s762 = sshll.u32 [#allocation32], 4
          %s763 = int_to_ptr.vmem [resolvable:$true] %s762
          %768 = dma.hbm_to_vmem [thread:$0]  %s19, 3072, %s763, [#allocation33], 64, 64, 4
        $region88: #{decoder_forward.1} parent=11 // pred_fallthru
          _
        // Predicated region
        $region89: #{decoder_forward.1} parent=11 // pred_check
          %p769 = pneg %p489
        $region90: #{decoder_forward.1} parent=11 // pred_check_branch
          %771 = sbr.rel (%p769) target = $region92
        $region91: #{decoder_forward.1} parent=11 // pred_region
          %s773 = ssub.s32 16, 16
          %774 = vsyncadd [#allocation33], %s773
          %s776 = sshll.u32 [#allocation34], 4
          %s777 = int_to_ptr.vmem [resolvable:$true] %s776
          %779 = dma.hbm_to_vmem [thread:$0]  %s20, 16, %s777, [#allocation33]
        $region92: #{decoder_forward.1} parent=11 // pred_fallthru
          _
      $region12: #{decoder_forward.1} parent=5 // pred_fallthru
        _
      %p780 = scmp.lt.s32.totalorder %s43, 2
      // Predicated region
      $region93: #{decoder_forward.1} parent=5 // pred_check
        %p781 = pneg %p780
      $region94: #{decoder_forward.1} parent=5 // pred_check_branch
        %783 = sbr.rel (%p781) target = $region96
      $region95: #{decoder_forward.1} parent=5 // pred_region
        // Predicated region
        $region97: #{decoder_forward.1} parent=95 // pred_check
          %p784 = pneg %p63
        $region98: #{decoder_forward.1} parent=95 // pred_check_branch
          %786 = sbr.rel (%p784) target = $region100
        $region99: #{decoder_forward.1} parent=95 // pred_region
          %s787 = sand.u32 %s53, 1
          %s788 = scalar_lea.sflag [#allocation3], %s787
          %s789 = sand.u32 %s53, 1
          %s790 = smul.addr %s789, 16
          %s791 = scalar_lea.vmem [#allocation2], %s790
          %s793 = ssub.s32 256, 256
          %794 = vsyncadd %s788, %s793
          %s795 = smul.addr %s43, 2
          %s796 = smul.addr %s795, 128
          %s797 = scalar_lea.hbm %s0, %s796
          %s798 = sshll.u32 %s791, 4
          %s799 = int_to_ptr.vmem [resolvable:$true] %s798
          %804 = dma.hbm_to_vmem [thread:$0]  %s797, 256, %s799, %s788, 128, 128, 8
        $region100: #{decoder_forward.1} parent=95 // pred_fallthru
          _
      $region96: #{decoder_forward.1} parent=5 // pred_fallthru
        _
      %p805 = scmp.le.s32.totalorder 1, %s43
      %p806 = scmp.lt.s32.totalorder %s43, 3
      %p807 = pnand %p805, %p806
      %p808 = pneg %p807
      // Predicated region
      $region101: #{decoder_forward.1} parent=5 // pred_check
        _
      $region102: #{decoder_forward.1} parent=5 // pred_check_branch
        %810 = sbr.rel (%p807) target = $region104
      $region103: #{decoder_forward.1} parent=5 // pred_region
        %s811 = ssub.s32 %s43, 1
        %s812 = sand.u32 %s56, 1
        %s813 = scalar_lea.sflag [#allocation3], %s812
        %s814 = sand.u32 %s56, 1
        %s815 = smul.addr %s814, 16
        %s816 = scalar_lea.vmem [#allocation2], %s815
        // Predicated region
        $region105: #{decoder_forward.1} parent=103 // pred_check
          %p817 = pneg %p69
        $region106: #{decoder_forward.1} parent=103 // pred_check_branch
          %819 = sbr.rel (%p817) target = $region108
        $region107: #{decoder_forward.1} parent=103 // pred_region
          %820 = dma.done %s813, 256
        $region108: #{decoder_forward.1} parent=103 // pred_fallthru
          _
        // Predicated region
        $region109: #{decoder_forward.1} parent=103 // pred_check
          %p821 = pneg %p90
        $region110: #{decoder_forward.1} parent=103 // pred_check_branch
          %823 = sbr.rel (%p821) target = $region112
        $region111: #{decoder_forward.1} parent=103 // pred_region
          %824 = dma.done [#allocation6], 768
        $region112: #{decoder_forward.1} parent=103 // pred_fallthru
          _
        // Predicated region
        $region113: #{decoder_forward.1} parent=103 // pred_check
          %p825 = pneg %p111
        $region114: #{decoder_forward.1} parent=103 // pred_check_branch
          %827 = sbr.rel (%p825) target = $region116
        $region115: #{decoder_forward.1} parent=103 // pred_region
          %828 = dma.done [#allocation6], 16
        $region116: #{decoder_forward.1} parent=103 // pred_fallthru
          _
        // Predicated region
        $region117: #{decoder_forward.1} parent=103 // pred_check
          %p829 = pneg %p132
        $region118: #{decoder_forward.1} parent=103 // pred_check_branch
          %831 = sbr.rel (%p829) target = $region120
        $region119: #{decoder_forward.1} parent=103 // pred_region
          %832 = dma.done [#allocation9], 9216
        $region120: #{decoder_forward.1} parent=103 // pred_fallthru
          _
        // Predicated region
        $region121: #{decoder_forward.1} parent=103 // pred_check
          %p833 = pneg %p153
        $region122: #{decoder_forward.1} parent=103 // pred_check_branch
          %835 = sbr.rel (%p833) target = $region124
        $region123: #{decoder_forward.1} parent=103 // pred_region
          %836 = dma.done [#allocation9], 48
        $region124: #{decoder_forward.1} parent=103 // pred_fallthru
          _
        // Predicated region
        $region125: #{decoder_forward.1} parent=103 // pred_check
          %p837 = pneg %p174
        $region126: #{decoder_forward.1} parent=103 // pred_check_branch
          %839 = sbr.rel (%p837) target = $region128
        $region127: #{decoder_forward.1} parent=103 // pred_region
          %840 = dma.done [#allocation12], 3072
        $region128: #{decoder_forward.1} parent=103 // pred_fallthru
          _
        // Predicated region
        $region129: #{decoder_forward.1} parent=103 // pred_check
          %p841 = pneg %p195
        $region130: #{decoder_forward.1} parent=103 // pred_check_branch
          %843 = sbr.rel (%p841) target = $region132
        $region131: #{decoder_forward.1} parent=103 // pred_region
          %844 = dma.done [#allocation12], 48
        $region132: #{decoder_forward.1} parent=103 // pred_fallthru
          _
        // Predicated region
        $region133: #{decoder_forward.1} parent=103 // pred_check
          %p845 = pneg %p216
        $region134: #{decoder_forward.1} parent=103 // pred_check_branch
          %847 = sbr.rel (%p845) target = $region136
        $region135: #{decoder_forward.1} parent=103 // pred_region
          %848 = dma.done [#allocation15], 2048
        $region136: #{decoder_forward.1} parent=103 // pred_fallthru
          _
        // Predicated region
        $region137: #{decoder_forward.1} parent=103 // pred_check
          %p849 = pneg %p237
        $region138: #{decoder_forward.1} parent=103 // pred_check_branch
          %851 = sbr.rel (%p849) target = $region140
        $region139: #{decoder_forward.1} parent=103 // pred_region
          %852 = dma.done [#allocation15], 2048
        $region140: #{decoder_forward.1} parent=103 // pred_fallthru
          _
        // Predicated region
        $region141: #{decoder_forward.1} parent=103 // pred_check
          %p853 = pneg %p258
        $region142: #{decoder_forward.1} parent=103 // pred_check_branch
          %855 = sbr.rel (%p853) target = $region144
        $region143: #{decoder_forward.1} parent=103 // pred_region
          %856 = dma.done [#allocation18], 16
        $region144: #{decoder_forward.1} parent=103 // pred_fallthru
          _
        // Predicated region
        $region145: #{decoder_forward.1} parent=103 // pred_check
          %p857 = pneg %p279
        $region146: #{decoder_forward.1} parent=103 // pred_check_branch
          %859 = sbr.rel (%p857) target = $region148
        $region147: #{decoder_forward.1} parent=103 // pred_region
          %860 = dma.done [#allocation18], 9216
        $region148: #{decoder_forward.1} parent=103 // pred_fallthru
          _
        // Predicated region
        $region149: #{decoder_forward.1} parent=103 // pred_check
          %p861 = pneg %p300
        $region150: #{decoder_forward.1} parent=103 // pred_check_branch
          %863 = sbr.rel (%p861) target = $region152
        $region151: #{decoder_forward.1} parent=103 // pred_region
          %864 = dma.done [#allocation21], 48
        $region152: #{decoder_forward.1} parent=103 // pred_fallthru
          _
        // Predicated region
        $region153: #{decoder_forward.1} parent=103 // pred_check
          %p865 = pneg %p321
        $region154: #{decoder_forward.1} parent=103 // pred_check_branch
          %867 = sbr.rel (%p865) target = $region156
        $region155: #{decoder_forward.1} parent=103 // pred_region
          %868 = dma.done [#allocation21], 3072
        $region156: #{decoder_forward.1} parent=103 // pred_fallthru
          _
        // Predicated region
        $region157: #{decoder_forward.1} parent=103 // pred_check
          %p869 = pneg %p342
        $region158: #{decoder_forward.1} parent=103 // pred_check_branch
          %871 = sbr.rel (%p869) target = $region160
        $region159: #{decoder_forward.1} parent=103 // pred_region
          %872 = dma.done [#allocation24], 48
        $region160: #{decoder_forward.1} parent=103 // pred_fallthru
          _
        // Predicated region
        $region161: #{decoder_forward.1} parent=103 // pred_check
          %p873 = pneg %p363
        $region162: #{decoder_forward.1} parent=103 // pred_check_branch
          %875 = sbr.rel (%p873) target = $region164
        $region163: #{decoder_forward.1} parent=103 // pred_region
          %876 = dma.done [#allocation24], 2048
        $region164: #{decoder_forward.1} parent=103 // pred_fallthru
          _
        // Predicated region
        $region165: #{decoder_forward.1} parent=103 // pred_check
          %p877 = pneg %p384
        $region166: #{decoder_forward.1} parent=103 // pred_check_branch
          %879 = sbr.rel (%p877) target = $region168
        $region167: #{decoder_forward.1} parent=103 // pred_region
          %880 = dma.done [#allocation27], 2048
        $region168: #{decoder_forward.1} parent=103 // pred_fallthru
          _
        // Predicated region
        $region169: #{decoder_forward.1} parent=103 // pred_check
          %p881 = pneg %p405
        $region170: #{decoder_forward.1} parent=103 // pred_check_branch
          %883 = sbr.rel (%p881) target = $region172
        $region171: #{decoder_forward.1} parent=103 // pred_region
          %884 = dma.done [#allocation27], 16
        $region172: #{decoder_forward.1} parent=103 // pred_fallthru
          _
        // Predicated region
        $region173: #{decoder_forward.1} parent=103 // pred_check
          %p885 = pneg %p426
        $region174: #{decoder_forward.1} parent=103 // pred_check_branch
          %887 = sbr.rel (%p885) target = $region176
        $region175: #{decoder_forward.1} parent=103 // pred_region
          %888 = dma.done [#allocation30], 3072
        $region176: #{decoder_forward.1} parent=103 // pred_fallthru
          _
        // Predicated region
        $region177: #{decoder_forward.1} parent=103 // pred_check
          %p889 = pneg %p447
        $region178: #{decoder_forward.1} parent=103 // pred_check_branch
          %891 = sbr.rel (%p889) target = $region180
        $region179: #{decoder_forward.1} parent=103 // pred_region
          %892 = dma.done [#allocation30], 16
        $region180: #{decoder_forward.1} parent=103 // pred_fallthru
          _
        // Predicated region
        $region181: #{decoder_forward.1} parent=103 // pred_check
          %p893 = pneg %p468
        $region182: #{decoder_forward.1} parent=103 // pred_check_branch
          %895 = sbr.rel (%p893) target = $region184
        $region183: #{decoder_forward.1} parent=103 // pred_region
          %896 = dma.done [#allocation33], 3072
        $region184: #{decoder_forward.1} parent=103 // pred_fallthru
          _
        // Predicated region
        $region185: #{decoder_forward.1} parent=103 // pred_check
          %p897 = pneg %p489
        $region186: #{decoder_forward.1} parent=103 // pred_check_branch
          %899 = sbr.rel (%p897) target = $region188
        $region187: #{decoder_forward.1} parent=103 // pred_region
          %900 = dma.done [#allocation33], 16
        $region188: #{decoder_forward.1} parent=103 // pred_fallthru
          _
        %s901 = sand.u32 %s56, 1
        %s902 = scalar_lea.sflag [#allocation3], %s901
        %s903 = sand.u32 %s56, 1
        %s904 = smul.addr %s903, 16
        %s905 = scalar_lea.vmem [#allocation2], %s904
        %p906 = pneg %p69
        %p907 = pneg %p66
        %p908 = pneg %p90
        %p909 = pneg %p87
        %p910 = pneg %p111
        %p911 = pneg %p108
        %p912 = pneg %p132
        %p913 = pneg %p129
        %p914 = pneg %p153
        %p915 = pneg %p150
        %p916 = pneg %p174
        %p917 = pneg %p171
        %p918 = pneg %p195
        %p919 = pneg %p192
        %p920 = pneg %p216
        %p921 = pneg %p213
        %p922 = pneg %p237
        %p923 = pneg %p234
        %p924 = pneg %p258
        %p925 = pneg %p255
        %p926 = pneg %p279
        %p927 = pneg %p276
        %p928 = pneg %p300
        %p929 = pneg %p297
        %p930 = pneg %p321
        %p931 = pneg %p318
        %p932 = pneg %p342
        %p933 = pneg %p339
        %p934 = pneg %p363
        %p935 = pneg %p360
        %p936 = pneg %p384
        %p937 = pneg %p381
        %p938 = pneg %p405
        %p939 = pneg %p402
        %p940 = pneg %p426
        %p941 = pneg %p423
        %p942 = pneg %p447
        %p943 = pneg %p444
        %p944 = pneg %p468
        %p945 = pneg %p465
        %p946 = pneg %p489
        %p947 = pneg %p486
        %p948 = pneg %p515
        %p949 = pneg %p512
        %s950 = sand.u32 %s502, 1
        %s951 = scalar_lea.sflag [#allocation4], %s950
        %s952 = sand.u32 %s502, 1
        %s953 = smul.addr %s952, 64
        %s954 = scalar_lea.vmem [#allocation35], %s953
        %v956 = vld [vmem:[%s816] sm:$0xff]
        %v957 = vld [vmem:[%s816 + $0x8] sm:$0xff]
        %v958 = vld [vmem:[#allocation5] sm:$0xf]
        %v959 = vld [vmem:[#allocation5 + $0x4] sm:$0xf]
        %v960 = vld [vmem:[#allocation5 + $0x8] sm:$0xf]
        %v961 = vld [vmem:[#allocation5 + $0xc] sm:$0xf]
        %v962 = vld [vmem:[#allocation5 + $0x10] sm:$0xf]
        %v963 = vld [vmem:[#allocation5 + $0x14] sm:$0xf]
        %v964 = vld [vmem:[#allocation5 + $0x18] sm:$0xf]
        %v965 = vld [vmem:[#allocation5 + $0x1c] sm:$0xf]
        %v966 = vld [vmem:[#allocation5 + $0x20] sm:$0xf]
        %v967 = vld [vmem:[#allocation5 + $0x24] sm:$0xf]
        %v968 = vld [vmem:[#allocation5 + $0x28] sm:$0xf]
        %v969 = vld [vmem:[#allocation5 + $0x2c] sm:$0xf]
        %v970 = vld [vmem:[#allocation7] sm:$0x1]
        %v971 = vpack.c.bf16 %v957, %v956
        %v973 = vshrl.u32 %v971, 16
        %v975 = vrot.slane %v973, 7
        %v976 = vshll.u32 %v971, 16
        %v978 = vor.u32 %v975, %v976
        %vm981 = vcmask 1040384
        %vm982 = vsmask.f32 256
        %vm983 = vmand %vm981, %vm982
        %v984 = vsel %vm983, 0, %v978
        %v985 = vsel %vm983, %v975, 0
        %vm986 = vsmask.f32 7424
        %v988 = vshrl.u32 %v984, 16
        %v990 = vshll.u32 %v984, 16
        %v992 = vrot.slane %v990, 1
        %v993 = vor.u32 %v988, %v992
        %v995 = vshll.u32 %v985, 16
        %v997 = vrot.slane %v995, 1
        %v998 = vsel %vm986, %v993, %v997
        %999 = vrot.lane.b32.xlu0 %v998, 32
        %v1000 = vpop.permute.xlu0 %999
        %vm1003 = vcmask 1046528
        %v1004 = vrot.slane %v984, 1
        %v1005 = vrot.slane %v985, 1
        %v1006 = vsel %vm1003, %v1004, %v1005
        %1007 = vrot.lane.b32.xlu0 %v1006, 64
        %v1008 = vpop.permute.xlu0 %1007
        %vm1009 = vcmask 261120
        %v1011 = vsel %vm1009, %v984, %v1000
        %vm1012 = vcmask 523264
        %v1014 = vsel %vm1012, %v1011, %v1008
        %v1016 = vlaneseq
        %v1017 = vshrl.u32 %v1016, 7
        %v1018 = vsub.s32 0, %v1017
        %v1019 = vrot.slane %v970, %v1018
        %v1033 = vunpack.c.l.b16 %v958
        %v1034 = vunpack.c.l.b16 %v959
        %v1035 = vunpack.c.l.b16 %v960
        %v1036 = vunpack.c.l.b16 %v961
        %v1037 = vunpack.c.l.b16 %v962
        %v1038 = vunpack.c.l.b16 %v963
        %v1039 = vunpack.c.l.b16 %v964
        %v1040 = vunpack.c.l.b16 %v965
        %v1041 = vunpack.c.l.b16 %v966
        %v1042 = vunpack.c.l.b16 %v967
        %v1043 = vunpack.c.l.b16 %v968
        %v1044 = vunpack.c.l.b16 %v969
        %v1045 = vpack.c.b16 %v1034, %v1033
        %v1046 = vpack.c.b16 %v1036, %v1035
        %v1047 = vpack.c.b16 %v1038, %v1037
        %v1048 = vpack.c.b16 %v1040, %v1039
        %v1049 = vpack.c.b16 %v1042, %v1041
        %v1050 = vpack.c.b16 %v1044, %v1043
        %vm1057 = vcmask 785408
        %v1058 = vsel %vm1057, %v1014, 0
        %1060 = vmatprep.subr.bf16.mxu0 0
        %1061 = vmatpush1.bf16.msra.mxu0 %v1045
        %1062 = vmatprep.subr.bf16.mxu0 0
        %1063 = vmatpush1.bf16.msra.mxu0 %v1046
        %1064 = vmatprep.subr.bf16.mxu0 0
        %1065 = vmatpush1.bf16.msra.mxu0 %v1047
        %1066 = vmatprep.subr.bf16.mxu0 0
        %1067 = vmatpush1.bf16.msra.mxu0 %v1048
        %1068 = vmatprep.subr.bf16.mxu0 0
        %1069 = vmatpush1.bf16.msra.mxu0 %v1049
        %1070 = vmatprep.subr.bf16.mxu0 0
        %1071 = vmatpush1.bf16.msra.mxu0 %v1050
        %1072 = vmatprep.subr.bf16.mxu0 0
        %1073 = vmatpush1.bf16.msra.mxu0 0
        %1074 = vmatprep.subr.bf16.mxu0 0
        %1075 = vmatpush1.bf16.msra.mxu0 0
        %1076 = vmatprep.subr.bf16.mxu0 0
        %1077 = vmatpush1.bf16.msra.mxu0 0
        %1078 = vmatprep.subr.bf16.mxu0 0
        %1079 = vmatpush1.bf16.msra.mxu0 0
        %1080 = vmatprep.subr.bf16.mxu0 0
        %1081 = vmatpush1.bf16.msra.mxu0 0
        %1082 = vmatprep.subr.bf16.mxu0 0
        %1083 = vmatpush1.bf16.msra.mxu0 0
        %1084 = vmatprep.subr.bf16.mxu0 0
        %1085 = vmatpush1.bf16.msra.mxu0 0
        %1086 = vmatprep.subr.bf16.mxu0 0
        %1087 = vmatpush1.bf16.msra.mxu0 0
        %1088 = vmatprep.subr.bf16.mxu0 0
        %1089 = vmatpush1.bf16.msra.mxu0 0
        %1090 = vmatprep.subr.bf16.mxu0 0
        %1091 = vmatpush1.bf16.msra.mxu0 0
        %1092 = vmatprep.mubr.bf16.mxu0 0
        %1093 = vmatmul.mubr.bf16.gmra.mrb[0].mxu0 %v1058
        %v1094 = vpop.f32.mrb[0].mxu0
        %v1095 = vadd.f32 %v1019, %v1094
        %v1096 = vpop.f32.mrb[0].mxu0
        %v1097 = vpop.f32.mrb[0].mxu0
        %v1098 = vadd.f32 %v1019, %v1097
        %v1099 = vpop.f32.mrb[0].mxu0
        %1100 = vdwg.mxu0
        %v1101 = vmax.f32 %v1095, 0.0
        %v1102 = vmax.f32 %v1098, 0.0
        %v1103 = vmax.f32 %v1101, 0.0
        %v1104 = vmax.f32 %v1102, 0.0
        %v1105 = vld [vmem:[#allocation8] sm:$0xf]
        %v1106 = vld [vmem:[#allocation8 + $0x4] sm:$0xf]
        %v1107 = vld [vmem:[#allocation8 + $0x8] sm:$0xf]
        %v1108 = vld [vmem:[#allocation8 + $0xc] sm:$0xf]
        %v1109 = vld [vmem:[#allocation8 + $0x10] sm:$0xf]
        %v1110 = vld [vmem:[#allocation8 + $0x14] sm:$0xf]
        %v1111 = vld [vmem:[#allocation8 + $0x18] sm:$0xf]
        %v1112 = vld [vmem:[#allocation8 + $0x1c] sm:$0xf]
        %v1113 = vld [vmem:[#allocation8 + $0x20] sm:$0xf]
        %v1114 = vld [vmem:[#allocation8 + $0x24] sm:$0xf]
        %v1115 = vld [vmem:[#allocation8 + $0x28] sm:$0xf]
        %v1116 = vld [vmem:[#allocation8 + $0x2c] sm:$0xf]
        %v1117 = vld [vmem:[#allocation8 + $0x30] sm:$0xf]
        %v1118 = vld [vmem:[#allocation8 + $0x34] sm:$0xf]
        %v1119 = vld [vmem:[#allocation8 + $0x38] sm:$0xf]
        %v1120 = vld [vmem:[#allocation8 + $0x3c] sm:$0xf]
        %v1121 = vld [vmem:[#allocation8 + $0x40] sm:$0xf]
        %v1122 = vld [vmem:[#allocation8 + $0x44] sm:$0xf]
        %v1123 = vld [vmem:[#allocation8 + $0x48] sm:$0xf]
        %v1124 = vld [vmem:[#allocation8 + $0x4c] sm:$0xf]
        %v1125 = vld [vmem:[#allocation8 + $0x50] sm:$0xf]
        %v1126 = vld [vmem:[#allocation8 + $0x54] sm:$0xf]
        %v1127 = vld [vmem:[#allocation8 + $0x58] sm:$0xf]
        %v1128 = vld [vmem:[#allocation8 + $0x5c] sm:$0xf]
        %v1129 = vld [vmem:[#allocation8 + $0x60] sm:$0xf]
        %v1130 = vld [vmem:[#allocation8 + $0x64] sm:$0xf]
        %v1131 = vld [vmem:[#allocation8 + $0x68] sm:$0xf]
        %v1132 = vld [vmem:[#allocation8 + $0x6c] sm:$0xf]
        %v1133 = vld [vmem:[#allocation8 + $0x70] sm:$0xf]
        %v1134 = vld [vmem:[#allocation8 + $0x74] sm:$0xf]
        %v1135 = vld [vmem:[#allocation8 + $0x78] sm:$0xf]
        %v1136 = vld [vmem:[#allocation8 + $0x7c] sm:$0xf]
        %v1137 = vld [vmem:[#allocation8 + $0x80] sm:$0xf]
        %v1138 = vld [vmem:[#allocation8 + $0x84] sm:$0xf]
        %v1139 = vld [vmem:[#allocation8 + $0x88] sm:$0xf]
        %v1140 = vld [vmem:[#allocation8 + $0x8c] sm:$0xf]
        %v1141 = vld [vmem:[#allocation8 + $0x90] sm:$0xf]
        %v1142 = vld [vmem:[#allocation8 + $0x94] sm:$0xf]
        %v1143 = vld [vmem:[#allocation8 + $0x98] sm:$0xf]
        %v1144 = vld [vmem:[#allocation8 + $0x9c] sm:$0xf]
        %v1145 = vld [vmem:[#allocation8 + $0xa0] sm:$0xf]
        %v1146 = vld [vmem:[#allocation8 + $0xa4] sm:$0xf]
        %v1147 = vld [vmem:[#allocation8 + $0xa8] sm:$0xf]
        %v1148 = vld [vmem:[#allocation8 + $0xac] sm:$0xf]
        %v1149 = vld [vmem:[#allocation8 + $0xb0] sm:$0xf]
        %v1150 = vld [vmem:[#allocation8 + $0xb4] sm:$0xf]
        %v1151 = vld [vmem:[#allocation8 + $0xb8] sm:$0xf]
        %v1152 = vld [vmem:[#allocation8 + $0xbc] sm:$0xf]
        %v1153 = vld [vmem:[#allocation10] sm:$0x1]
        %v1154 = vpack.c.bf16 %v1104, %v1103
        %v1156 = vshrl.u32 %v1154, 16
        %v1158 = vrot.slane %v1156, 3
        %v1159 = vshll.u32 %v1154, 16
        %v1161 = vrot.slane %v1159, 4
        %v1162 = vor.u32 %v1158, %v1161
        %vm1164 = vcmask 1044480
        %vm1165 = vsmask.f32 4352
        %vm1166 = vmand %vm1164, %vm1165
        %v1167 = vsel %vm1166, 0, %v1162
        %v1168 = vsel %vm1166, %v1162, 0
        %vm1169 = vsmask.f32 3328
        %v1171 = vshrl.u32 %v1167, 16
        %v1173 = vrot.slane %v1171, 4
        %v1174 = vshll.u32 %v1167, 16
        %v1176 = vrot.slane %v1174, 5
        %v1177 = vor.u32 %v1173, %v1176
        %v1179 = vshrl.u32 %v1168, 16
        %v1181 = vrot.slane %v1179, 4
        %v1182 = vshll.u32 %v1168, 16
        %v1184 = vrot.slane %v1182, 5
        %v1185 = vor.u32 %v1181, %v1184
        %v1186 = vsel %vm1169, %v1177, %v1185
        %v1190 = vrot.slane %v1168, 1
        %v1191 = vrot.slane 0, 1
        %v1192 = vsel %vm1003, %v1190, %v1191
        %v1195 = vlaneseq
        %v1196 = vshrl.u32 %v1195, 7
        %v1197 = vsub.s32 0, %v1196
        %v1198 = vrot.slane %v1153, %v1197
        %v1248 = vunpack.c.l.b16 %v1105
        %v1249 = vunpack.c.l.b16 %v1106
        %v1250 = vunpack.c.l.b16 %v1107
        %v1251 = vunpack.c.l.b16 %v1108
        %v1252 = vunpack.c.l.b16 %v1109
        %v1253 = vunpack.c.l.b16 %v1110
        %v1254 = vunpack.c.l.b16 %v1111
        %v1255 = vunpack.c.l.b16 %v1112
        %v1256 = vunpack.c.l.b16 %v1113
        %v1257 = vunpack.c.l.b16 %v1114
        %v1258 = vunpack.c.l.b16 %v1115
        %v1259 = vunpack.c.l.b16 %v1116
        %v1260 = vunpack.c.l.b16 %v1117
        %v1261 = vunpack.c.l.b16 %v1118
        %v1262 = vunpack.c.l.b16 %v1119
        %v1263 = vunpack.c.l.b16 %v1120
        %v1264 = vunpack.c.l.b16 %v1121
        %v1265 = vunpack.c.l.b16 %v1122
        %v1266 = vunpack.c.l.b16 %v1123
        %v1267 = vunpack.c.l.b16 %v1124
        %v1268 = vunpack.c.l.b16 %v1125
        %v1269 = vunpack.c.l.b16 %v1126
        %v1270 = vunpack.c.l.b16 %v1127
        %v1271 = vunpack.c.l.b16 %v1128
        %v1272 = vunpack.c.l.b16 %v1129
        %v1273 = vunpack.c.l.b16 %v1130
        %v1274 = vunpack.c.l.b16 %v1131
        %v1275 = vunpack.c.l.b16 %v1132
        %v1276 = vunpack.c.l.b16 %v1133
        %v1277 = vunpack.c.l.b16 %v1134
        %v1278 = vunpack.c.l.b16 %v1135
        %v1279 = vunpack.c.l.b16 %v1136
        %v1280 = vunpack.c.l.b16 %v1137
        %v1281 = vunpack.c.l.b16 %v1138
        %v1282 = vunpack.c.l.b16 %v1139
        %v1283 = vunpack.c.l.b16 %v1140
        %v1284 = vunpack.c.l.b16 %v1141
        %v1285 = vunpack.c.l.b16 %v1142
        %v1286 = vunpack.c.l.b16 %v1143
        %v1287 = vunpack.c.l.b16 %v1144
        %v1288 = vunpack.c.l.b16 %v1145
        %v1289 = vunpack.c.l.b16 %v1146
        %v1290 = vunpack.c.l.b16 %v1147
        %v1291 = vunpack.c.l.b16 %v1148
        %v1292 = vunpack.c.l.b16 %v1149
        %v1293 = vunpack.c.l.b16 %v1150
        %v1294 = vunpack.c.l.b16 %v1151
        %v1295 = vunpack.c.l.b16 %v1152
        %v1296 = vpack.c.b16 %v1249, %v1248
        %v1297 = vpack.c.b16 %v1251, %v1250
        %v1298 = vpack.c.b16 %v1253, %v1252
        %v1299 = vpack.c.b16 %v1255, %v1254
        %v1300 = vpack.c.b16 %v1257, %v1256
        %v1301 = vpack.c.b16 %v1259, %v1258
        %v1302 = vpack.c.b16 %v1261, %v1260
        %v1303 = vpack.c.b16 %v1263, %v1262
        %v1304 = vpack.c.b16 %v1265, %v1264
        %v1305 = vpack.c.b16 %v1267, %v1266
        %v1306 = vpack.c.b16 %v1269, %v1268
        %v1307 = vpack.c.b16 %v1271, %v1270
        %v1308 = vpack.c.b16 %v1273, %v1272
        %v1309 = vpack.c.b16 %v1275, %v1274
        %v1310 = vpack.c.b16 %v1277, %v1276
        %v1311 = vpack.c.b16 %v1279, %v1278
        %v1312 = vpack.c.b16 %v1281, %v1280
        %v1313 = vpack.c.b16 %v1283, %v1282
        %v1314 = vpack.c.b16 %v1285, %v1284
        %v1315 = vpack.c.b16 %v1287, %v1286
        %v1316 = vpack.c.b16 %v1289, %v1288
        %v1317 = vpack.c.b16 %v1291, %v1290
        %v1318 = vpack.c.b16 %v1293, %v1292
        %v1319 = vpack.c.b16 %v1295, %v1294
        %1344 = vmatprep.subr.bf16.mxu0 0
        %1345 = vmatpush1.bf16.msra.mxu0 %v1296
        %1346 = vmatprep.subr.bf16.mxu0 0
        %1347 = vmatpush1.bf16.msra.mxu0 %v1297
        %1348 = vmatprep.subr.bf16.mxu0 0
        %1349 = vmatpush1.bf16.msra.mxu0 %v1298
        %1350 = vmatprep.subr.bf16.mxu0 0
        %1351 = vmatpush1.bf16.msra.mxu0 %v1299
        %1352 = vmatprep.subr.bf16.mxu0 0
        %1353 = vmatpush1.bf16.msra.mxu0 %v1300
        %1354 = vmatprep.subr.bf16.mxu0 0
        %1355 = vmatpush1.bf16.msra.mxu0 %v1301
        %1356 = vmatprep.subr.bf16.mxu0 0
        %1357 = vmatpush1.bf16.msra.mxu0 %v1302
        %1358 = vmatprep.subr.bf16.mxu0 0
        %1359 = vmatpush1.bf16.msra.mxu0 %v1303
        %1360 = vmatprep.subr.bf16.mxu0 0
        %1361 = vmatpush1.bf16.msra.mxu0 %v1304
        %1362 = vmatprep.subr.bf16.mxu0 0
        %1363 = vmatpush1.bf16.msra.mxu0 %v1305
        %1364 = vmatprep.subr.bf16.mxu0 0
        %1365 = vmatpush1.bf16.msra.mxu0 %v1306
        %1366 = vmatprep.subr.bf16.mxu0 0
        %1367 = vmatpush1.bf16.msra.mxu0 %v1307
        %1368 = vmatprep.subr.bf16.mxu0 0
        %1369 = vmatpush1.bf16.msra.mxu0 %v1308
        %1370 = vmatprep.subr.bf16.mxu0 0
        %1371 = vmatpush1.bf16.msra.mxu0 %v1309
        %1372 = vmatprep.subr.bf16.mxu0 0
        %1373 = vmatpush1.bf16.msra.mxu0 %v1310
        %1374 = vmatprep.subr.bf16.mxu0 0
        %1375 = vmatpush1.bf16.msra.mxu0 %v1311
        %1376 = vmatprep.mubr.bf16.mxu0 %v1186
        %1377 = vmatmul.mubr.bf16.gmra.mrb[0].mxu0 %v1167
        %v1378 = vpop.f32.mrb[0].mxu0
        %v1379 = vadd.f32 %v1198, %v1378
        %v1380 = vpop.f32.mrb[0].mxu0
        %v1381 = vpop.f32.mrb[0].mxu0
        %v1382 = vadd.f32 %v1198, %v1381
        %v1383 = vpop.f32.mrb[0].mxu0
        %1384 = vdwg.mxu0
        %1385 = vmatprep.subr.bf16.mxu0 0
        %1386 = vmatpush1.bf16.msra.mxu0 %v1312
        %1387 = vmatprep.subr.bf16.mxu0 0
        %1388 = vmatpush1.bf16.msra.mxu0 %v1313
        %1389 = vmatprep.subr.bf16.mxu0 0
        %1390 = vmatpush1.bf16.msra.mxu0 %v1314
        %1391 = vmatprep.subr.bf16.mxu0 0
        %1392 = vmatpush1.bf16.msra.mxu0 %v1315
        %1393 = vmatprep.subr.bf16.mxu0 0
        %1394 = vmatpush1.bf16.msra.mxu0 %v1316
        %1395 = vmatprep.subr.bf16.mxu0 0
        %1396 = vmatpush1.bf16.msra.mxu0 %v1317
        %1397 = vmatprep.subr.bf16.mxu0 0
        %1398 = vmatpush1.bf16.msra.mxu0 %v1318
        %1399 = vmatprep.subr.bf16.mxu0 0
        %1400 = vmatpush1.bf16.msra.mxu0 %v1319
        %1401 = vmatprep.subr.bf16.mxu0 0
        %1402 = vmatpush1.bf16.msra.mxu0 0
        %1403 = vmatprep.subr.bf16.mxu0 0
        %1404 = vmatpush1.bf16.msra.mxu0 0
        %1405 = vmatprep.subr.bf16.mxu0 0
        %1406 = vmatpush1.bf16.msra.mxu0 0
        %1407 = vmatprep.subr.bf16.mxu0 0
        %1408 = vmatpush1.bf16.msra.mxu0 0
        %1409 = vmatprep.subr.bf16.mxu0 0
        %1410 = vmatpush1.bf16.msra.mxu0 0
        %1411 = vmatprep.subr.bf16.mxu0 0
        %1412 = vmatpush1.bf16.msra.mxu0 0
        %1413 = vmatprep.subr.bf16.mxu0 0
        %1414 = vmatpush1.bf16.msra.mxu0 0
        %1415 = vmatprep.subr.bf16.mxu0 0
        %1416 = vmatpush1.bf16.msra.mxu0 0
        %1417 = vmatprep.mubr.bf16.mxu0 0
        %1418 = vmatmul.mubr.bf16.gmra.mrb[0].mxu0 %v1192
        %v1419 = vpop.f32.mrb[0].mxu0
        %v1420 = vadd.f32 %v1379, %v1419
        %v1421 = vpop.f32.mrb[0].mxu0
        %v1422 = vpop.f32.mrb[0].mxu0
        %v1423 = vadd.f32 %v1382, %v1422
        %v1424 = vpop.f32.mrb[0].mxu0
        %1425 = vdwg.mxu0
        %v1426 = vmax.f32 %v1420, 0.0
        %v1427 = vmax.f32 %v1423, 0.0
        %v1428 = vpack.c.bf16 %v1427, %v1426
        %v1429 = vld [vmem:[#allocation11] sm:$0xf]
        %v1430 = vld [vmem:[#allocation11 + $0x4] sm:$0xf]
        %v1431 = vld [vmem:[#allocation11 + $0x8] sm:$0xf]
        %v1432 = vld [vmem:[#allocation11 + $0xc] sm:$0xf]
        %v1433 = vld [vmem:[#allocation11 + $0x10] sm:$0xf]
        %v1434 = vld [vmem:[#allocation11 + $0x14] sm:$0xf]
        %v1435 = vld [vmem:[#allocation11 + $0x18] sm:$0xf]
        %v1436 = vld [vmem:[#allocation11 + $0x1c] sm:$0xf]
        %v1437 = vld [vmem:[#allocation11 + $0x20] sm:$0xf]
        %v1438 = vld [vmem:[#allocation11 + $0x24] sm:$0xf]
        %v1439 = vld [vmem:[#allocation11 + $0x28] sm:$0xf]
        %v1440 = vld [vmem:[#allocation11 + $0x2c] sm:$0xf]
        %v1441 = vld [vmem:[#allocation11 + $0x30] sm:$0xf]
        %v1442 = vld [vmem:[#allocation11 + $0x34] sm:$0xf]
        %v1443 = vld [vmem:[#allocation11 + $0x38] sm:$0xf]
        %v1444 = vld [vmem:[#allocation11 + $0x3c] sm:$0xf]
        %v1461 = vunpack.c.l.b16 %v1429
        %v1462 = vunpack.c.l.b16 %v1430
        %v1463 = vunpack.c.l.b16 %v1431
        %v1464 = vunpack.c.l.b16 %v1432
        %v1465 = vunpack.c.l.b16 %v1433
        %v1466 = vunpack.c.l.b16 %v1434
        %v1467 = vunpack.c.l.b16 %v1435
        %v1468 = vunpack.c.l.b16 %v1436
        %v1469 = vunpack.c.l.b16 %v1437
        %v1470 = vunpack.c.l.b16 %v1438
        %v1471 = vunpack.c.l.b16 %v1439
        %v1472 = vunpack.c.l.b16 %v1440
        %v1473 = vunpack.c.l.b16 %v1441
        %v1474 = vunpack.c.l.b16 %v1442
        %v1475 = vunpack.c.l.b16 %v1443
        %v1476 = vunpack.c.l.b16 %v1444
        %v1477 = vpack.c.b16 %v1462, %v1461
        %v1478 = vpack.c.b16 %v1464, %v1463
        %v1479 = vpack.c.b16 %v1466, %v1465
        %v1480 = vpack.c.b16 %v1468, %v1467
        %v1481 = vpack.c.b16 %v1470, %v1469
        %v1482 = vpack.c.b16 %v1472, %v1471
        %v1483 = vpack.c.b16 %v1474, %v1473
        %v1484 = vpack.c.b16 %v1476, %v1475
        %1493 = vmatprep.subr.bf16.mxu0 0
        %1494 = vmatpush1.bf16.msra.mxu0 %v1477
        %1495 = vmatprep.subr.bf16.mxu0 0
        %1496 = vmatpush1.bf16.msra.mxu0 %v1478
        %1497 = vmatprep.subr.bf16.mxu0 0
        %1498 = vmatpush1.bf16.msra.mxu0 %v1479
        %1499 = vmatprep.subr.bf16.mxu0 0
        %1500 = vmatpush1.bf16.msra.mxu0 %v1480
        %1501 = vmatprep.subr.bf16.mxu0 0
        %1502 = vmatpush1.bf16.msra.mxu0 %v1481
        %1503 = vmatprep.subr.bf16.mxu0 0
        %1504 = vmatpush1.bf16.msra.mxu0 %v1482
        %1505 = vmatprep.subr.bf16.mxu0 0
        %1506 = vmatpush1.bf16.msra.mxu0 %v1483
        %1507 = vmatprep.subr.bf16.mxu0 0
        %1508 = vmatpush1.bf16.msra.mxu0 %v1484
        %1509 = vmatprep.subr.bf16.mxu0 0
        %1510 = vmatpush1.bf16.msra.mxu0 0
        %1511 = vmatprep.subr.bf16.mxu0 0
        %1512 = vmatpush1.bf16.msra.mxu0 0
        %1513 = vmatprep.subr.bf16.mxu0 0
        %1514 = vmatpush1.bf16.msra.mxu0 0
        %1515 = vmatprep.subr.bf16.mxu0 0
        %1516 = vmatpush1.bf16.msra.mxu0 0
        %1517 = vmatprep.subr.bf16.mxu0 0
        %1518 = vmatpush1.bf16.msra.mxu0 0
        %1519 = vmatprep.subr.bf16.mxu0 0
        %1520 = vmatpush1.bf16.msra.mxu0 0
        %1521 = vmatprep.subr.bf16.mxu0 0
        %1522 = vmatpush1.bf16.msra.mxu0 0
        %1523 = vmatprep.subr.bf16.mxu0 0
        %1524 = vmatpush1.bf16.msra.mxu0 0
        %1525 = vmatprep.mubr.bf16.mxu0 0
        %1526 = vmatmul.mubr.bf16.gmra.mrb[0].mxu0 %v1428
        %v1527 = vpop.f32.mrb[0].mxu0
        %v1528 = vadd.f32 0.0, %v1527
        %v1529 = vpop.f32.mrb[0].mxu0
        %v1530 = vpop.f32.mrb[0].mxu0
        %v1531 = vadd.f32 0.0, %v1530
        %v1532 = vpop.f32.mrb[0].mxu0
        %1533 = vdwg.mxu0
        %v1534 = vadd.f32 %v1101, %v1528
        %v1535 = vadd.f32 %v1102, %v1531
        %v1536 = vld [vmem:[#allocation13] sm:$0x1]
        %v1538 = vlaneseq
        %v1539 = vshrl.u32 %v1538, 7
        %v1540 = vsub.s32 0, %v1539
        %v1541 = vrot.slane %v1536, %v1540
        %v1543 = vadd.f32 %v1534, %v1541
        %v1544 = vadd.f32 %v1535, %v1541
        %v1545 = vmax.f32 %v1543, 0.0
        %v1546 = vmax.f32 %v1544, 0.0
        %s1547 = scalar_lea.vmem [#allocation8], 192
        %v1548 = vld [vmem:[%s1547] sm:$0xf]
        %v1549 = vld [vmem:[%s1547 + $0x4] sm:$0xf]
        %v1550 = vld [vmem:[%s1547 + $0x8] sm:$0xf]
        %v1551 = vld [vmem:[%s1547 + $0xc] sm:$0xf]
        %v1552 = vld [vmem:[%s1547 + $0x10] sm:$0xf]
        %v1553 = vld [vmem:[%s1547 + $0x14] sm:$0xf]
        %v1554 = vld [vmem:[%s1547 + $0x18] sm:$0xf]
        %v1555 = vld [vmem:[%s1547 + $0x1c] sm:$0xf]
        %v1556 = vld [vmem:[%s1547 + $0x20] sm:$0xf]
        %v1557 = vld [vmem:[%s1547 + $0x24] sm:$0xf]
        %v1558 = vld [vmem:[%s1547 + $0x28] sm:$0xf]
        %v1559 = vld [vmem:[%s1547 + $0x2c] sm:$0xf]
        %v1560 = vld [vmem:[%s1547 + $0x30] sm:$0xf]
        %v1561 = vld [vmem:[%s1547 + $0x34] sm:$0xf]
        %v1562 = vld [vmem:[%s1547 + $0x38] sm:$0xf]
        %v1563 = vld [vmem:[%s1547 + $0x3c] sm:$0xf]
        %v1564 = vld [vmem:[%s1547 + $0x40] sm:$0xf]
        %v1565 = vld [vmem:[%s1547 + $0x44] sm:$0xf]
        %v1566 = vld [vmem:[%s1547 + $0x48] sm:$0xf]
        %v1567 = vld [vmem:[%s1547 + $0x4c] sm:$0xf]
        %v1568 = vld [vmem:[%s1547 + $0x50] sm:$0xf]
        %v1569 = vld [vmem:[%s1547 + $0x54] sm:$0xf]
        %v1570 = vld [vmem:[%s1547 + $0x58] sm:$0xf]
        %v1571 = vld [vmem:[%s1547 + $0x5c] sm:$0xf]
        %v1572 = vld [vmem:[%s1547 + $0x60] sm:$0xf]
        %v1573 = vld [vmem:[%s1547 + $0x64] sm:$0xf]
        %v1574 = vld [vmem:[%s1547 + $0x68] sm:$0xf]
        %v1575 = vld [vmem:[%s1547 + $0x6c] sm:$0xf]
        %v1576 = vld [vmem:[%s1547 + $0x70] sm:$0xf]
        %v1577 = vld [vmem:[%s1547 + $0x74] sm:$0xf]
        %v1578 = vld [vmem:[%s1547 + $0x78] sm:$0xf]
        %v1579 = vld [vmem:[%s1547 + $0x7c] sm:$0xf]
        %v1580 = vld [vmem:[%s1547 + $0x80] sm:$0xf]
        %v1581 = vld [vmem:[%s1547 + $0x84] sm:$0xf]
        %v1582 = vld [vmem:[%s1547 + $0x88] sm:$0xf]
        %v1583 = vld [vmem:[%s1547 + $0x8c] sm:$0xf]
        %v1584 = vld [vmem:[%s1547 + $0x90] sm:$0xf]
        %v1585 = vld [vmem:[%s1547 + $0x94] sm:$0xf]
        %v1586 = vld [vmem:[%s1547 + $0x98] sm:$0xf]
        %v1587 = vld [vmem:[%s1547 + $0x9c] sm:$0xf]
        %v1588 = vld [vmem:[%s1547 + $0xa0] sm:$0xf]
        %v1589 = vld [vmem:[%s1547 + $0xa4] sm:$0xf]
        %v1590 = vld [vmem:[%s1547 + $0xa8] sm:$0xf]
        %v1591 = vld [vmem:[%s1547 + $0xac] sm:$0xf]
        %v1592 = vld [vmem:[%s1547 + $0xb0] sm:$0xf]
        %v1593 = vld [vmem:[%s1547 + $0xb4] sm:$0xf]
        %v1594 = vld [vmem:[%s1547 + $0xb8] sm:$0xf]
        %v1595 = vld [vmem:[%s1547 + $0xbc] sm:$0xf]
        %s1596 = scalar_lea.vmem [#allocation10], 1
        %v1597 = vld [vmem:[%s1596] sm:$0x1]
        %v1598 = vpack.c.bf16 %v1546, %v1545
        %v1600 = vshrl.u32 %v1598, 16
        %v1602 = vrot.slane %v1600, 6
        %v1603 = vshll.u32 %v1598, 16
        %v1605 = vrot.slane %v1603, 7
        %v1606 = vor.u32 %v1602, %v1605
        %vm1608 = vcmask 1041408
        %vm1609 = vsmask.f32 1280
        %vm1610 = vmand %vm1608, %vm1609
        %v1611 = vsel %vm1610, 0, %v1606
        %v1612 = vsel %vm1610, %v1606, 0
        %vm1613 = vsmask.f32 6400
        %v1615 = vshrl.u32 %v1611, 16
        %v1617 = vrot.slane %v1615, 1
        %v1618 = vshll.u32 %v1611, 16
        %v1620 = vrot.slane %v1618, 2
        %v1621 = vor.u32 %v1617, %v1620
        %v1623 = vshrl.u32 %v1612, 16
        %v1625 = vrot.slane %v1623, 1
        %v1626 = vshll.u32 %v1612, 16
        %v1628 = vrot.slane %v1626, 2
        %v1629 = vor.u32 %v1625, %v1628
        %v1630 = vsel %vm1613, %v1621, %v1629
        %v1634 = vrot.slane %v1611, 3
        %v1635 = vrot.slane %v1612, 3
        %v1636 = vsel %vm1164, %v1634, %v1635
        %v1639 = vlaneseq
        %v1640 = vshrl.u32 %v1639, 7
        %v1641 = vsub.s32 0, %v1640
        %v1642 = vrot.slane %v1597, %v1641
        %v1692 = vunpack.c.l.b16 %v1548
        %v1693 = vunpack.c.l.b16 %v1549
        %v1694 = vunpack.c.l.b16 %v1550
        %v1695 = vunpack.c.l.b16 %v1551
        %v1696 = vunpack.c.l.b16 %v1552
        %v1697 = vunpack.c.l.b16 %v1553
        %v1698 = vunpack.c.l.b16 %v1554
        %v1699 = vunpack.c.l.b16 %v1555
        %v1700 = vunpack.c.l.b16 %v1556
        %v1701 = vunpack.c.l.b16 %v1557
        %v1702 = vunpack.c.l.b16 %v1558
        %v1703 = vunpack.c.l.b16 %v1559
        %v1704 = vunpack.c.l.b16 %v1560
        %v1705 = vunpack.c.l.b16 %v1561
        %v1706 = vunpack.c.l.b16 %v1562
        %v1707 = vunpack.c.l.b16 %v1563
        %v1708 = vunpack.c.l.b16 %v1564
        %v1709 = vunpack.c.l.b16 %v1565
        %v1710 = vunpack.c.l.b16 %v1566
        %v1711 = vunpack.c.l.b16 %v1567
        %v1712 = vunpack.c.l.b16 %v1568
        %v1713 = vunpack.c.l.b16 %v1569
        %v1714 = vunpack.c.l.b16 %v1570
        %v1715 = vunpack.c.l.b16 %v1571
        %v1716 = vunpack.c.l.b16 %v1572
        %v1717 = vunpack.c.l.b16 %v1573
        %v1718 = vunpack.c.l.b16 %v1574
        %v1719 = vunpack.c.l.b16 %v1575
        %v1720 = vunpack.c.l.b16 %v1576
        %v1721 = vunpack.c.l.b16 %v1577
        %v1722 = vunpack.c.l.b16 %v1578
        %v1723 = vunpack.c.l.b16 %v1579
        %v1724 = vunpack.c.l.b16 %v1580
        %v1725 = vunpack.c.l.b16 %v1581
        %v1726 = vunpack.c.l.b16 %v1582
        %v1727 = vunpack.c.l.b16 %v1583
        %v1728 = vunpack.c.l.b16 %v1584
        %v1729 = vunpack.c.l.b16 %v1585
        %v1730 = vunpack.c.l.b16 %v1586
        %v1731 = vunpack.c.l.b16 %v1587
        %v1732 = vunpack.c.l.b16 %v1588
        %v1733 = vunpack.c.l.b16 %v1589
        %v1734 = vunpack.c.l.b16 %v1590
        %v1735 = vunpack.c.l.b16 %v1591
        %v1736 = vunpack.c.l.b16 %v1592
        %v1737 = vunpack.c.l.b16 %v1593
        %v1738 = vunpack.c.l.b16 %v1594
        %v1739 = vunpack.c.l.b16 %v1595
        %v1740 = vpack.c.b16 %v1693, %v1692
        %v1741 = vpack.c.b16 %v1695, %v1694
        %v1742 = vpack.c.b16 %v1697, %v1696
        %v1743 = vpack.c.b16 %v1699, %v1698
        %v1744 = vpack.c.b16 %v1701, %v1700
        %v1745 = vpack.c.b16 %v1703, %v1702
        %v1746 = vpack.c.b16 %v1705, %v1704
        %v1747 = vpack.c.b16 %v1707, %v1706
        %v1748 = vpack.c.b16 %v1709, %v1708
        %v1749 = vpack.c.b16 %v1711, %v1710
        %v1750 = vpack.c.b16 %v1713, %v1712
        %v1751 = vpack.c.b16 %v1715, %v1714
        %v1752 = vpack.c.b16 %v1717, %v1716
        %v1753 = vpack.c.b16 %v1719, %v1718
        %v1754 = vpack.c.b16 %v1721, %v1720
        %v1755 = vpack.c.b16 %v1723, %v1722
        %v1756 = vpack.c.b16 %v1725, %v1724
        %v1757 = vpack.c.b16 %v1727, %v1726
        %v1758 = vpack.c.b16 %v1729, %v1728
        %v1759 = vpack.c.b16 %v1731, %v1730
        %v1760 = vpack.c.b16 %v1733, %v1732
        %v1761 = vpack.c.b16 %v1735, %v1734
        %v1762 = vpack.c.b16 %v1737, %v1736
        %v1763 = vpack.c.b16 %v1739, %v1738
        %1788 = vmatprep.subr.bf16.mxu0 0
        %1789 = vmatpush1.bf16.msra.mxu0 %v1740
        %1790 = vmatprep.subr.bf16.mxu0 0
        %1791 = vmatpush1.bf16.msra.mxu0 %v1741
        %1792 = vmatprep.subr.bf16.mxu0 0
        %1793 = vmatpush1.bf16.msra.mxu0 %v1742
        %1794 = vmatprep.subr.bf16.mxu0 0
        %1795 = vmatpush1.bf16.msra.mxu0 %v1743
        %1796 = vmatprep.subr.bf16.mxu0 0
        %1797 = vmatpush1.bf16.msra.mxu0 %v1744
        %1798 = vmatprep.subr.bf16.mxu0 0
        %1799 = vmatpush1.bf16.msra.mxu0 %v1745
        %1800 = vmatprep.subr.bf16.mxu0 0
        %1801 = vmatpush1.bf16.msra.mxu0 %v1746
        %1802 = vmatprep.subr.bf16.mxu0 0
        %1803 = vmatpush1.bf16.msra.mxu0 %v1747
        %1804 = vmatprep.subr.bf16.mxu0 0
        %1805 = vmatpush1.bf16.msra.mxu0 %v1748
        %1806 = vmatprep.subr.bf16.mxu0 0
        %1807 = vmatpush1.bf16.msra.mxu0 %v1749
        %1808 = vmatprep.subr.bf16.mxu0 0
        %1809 = vmatpush1.bf16.msra.mxu0 %v1750
        %1810 = vmatprep.subr.bf16.mxu0 0
        %1811 = vmatpush1.bf16.msra.mxu0 %v1751
        %1812 = vmatprep.subr.bf16.mxu0 0
        %1813 = vmatpush1.bf16.msra.mxu0 %v1752
        %1814 = vmatprep.subr.bf16.mxu0 0
        %1815 = vmatpush1.bf16.msra.mxu0 %v1753
        %1816 = vmatprep.subr.bf16.mxu0 0
        %1817 = vmatpush1.bf16.msra.mxu0 %v1754
        %1818 = vmatprep.subr.bf16.mxu0 0
        %1819 = vmatpush1.bf16.msra.mxu0 %v1755
        %1820 = vmatprep.mubr.bf16.mxu0 %v1630
        %1821 = vmatmul.mubr.bf16.gmra.mrb[0].mxu0 %v1611
        %v1822 = vpop.f32.mrb[0].mxu0
        %v1823 = vadd.f32 %v1642, %v1822
        %v1824 = vpop.f32.mrb[0].mxu0
        %v1825 = vpop.f32.mrb[0].mxu0
        %v1826 = vadd.f32 %v1642, %v1825
        %v1827 = vpop.f32.mrb[0].mxu0
        %1828 = vdwg.mxu0
        %1829 = vmatprep.subr.bf16.mxu0 0
        %1830 = vmatpush1.bf16.msra.mxu0 %v1756
        %1831 = vmatprep.subr.bf16.mxu0 0
        %1832 = vmatpush1.bf16.msra.mxu0 %v1757
        %1833 = vmatprep.subr.bf16.mxu0 0
        %1834 = vmatpush1.bf16.msra.mxu0 %v1758
        %1835 = vmatprep.subr.bf16.mxu0 0
        %1836 = vmatpush1.bf16.msra.mxu0 %v1759
        %1837 = vmatprep.subr.bf16.mxu0 0
        %1838 = vmatpush1.bf16.msra.mxu0 %v1760
        %1839 = vmatprep.subr.bf16.mxu0 0
        %1840 = vmatpush1.bf16.msra.mxu0 %v1761
        %1841 = vmatprep.subr.bf16.mxu0 0
        %1842 = vmatpush1.bf16.msra.mxu0 %v1762
        %1843 = vmatprep.subr.bf16.mxu0 0
        %1844 = vmatpush1.bf16.msra.mxu0 %v1763
        %1845 = vmatprep.subr.bf16.mxu0 0
        %1846 = vmatpush1.bf16.msra.mxu0 0
        %1847 = vmatprep.subr.bf16.mxu0 0
        %1848 = vmatpush1.bf16.msra.mxu0 0
        %1849 = vmatprep.subr.bf16.mxu0 0
        %1850 = vmatpush1.bf16.msra.mxu0 0
        %1851 = vmatprep.subr.bf16.mxu0 0
        %1852 = vmatpush1.bf16.msra.mxu0 0
        %1853 = vmatprep.subr.bf16.mxu0 0
        %1854 = vmatpush1.bf16.msra.mxu0 0
        %1855 = vmatprep.subr.bf16.mxu0 0
        %1856 = vmatpush1.bf16.msra.mxu0 0
        %1857 = vmatprep.subr.bf16.mxu0 0
        %1858 = vmatpush1.bf16.msra.mxu0 0
        %1859 = vmatprep.subr.bf16.mxu0 0
        %1860 = vmatpush1.bf16.msra.mxu0 0
        %1861 = vmatprep.mubr.bf16.mxu0 0
        %1862 = vmatmul.mubr.bf16.gmra.mrb[0].mxu0 %v1636
        %v1863 = vpop.f32.mrb[0].mxu0
        %v1864 = vadd.f32 %v1823, %v1863
        %v1865 = vpop.f32.mrb[0].mxu0
        %v1866 = vpop.f32.mrb[0].mxu0
        %v1867 = vadd.f32 %v1826, %v1866
        %v1868 = vpop.f32.mrb[0].mxu0
        %1869 = vdwg.mxu0
        %v1870 = vmax.f32 %v1864, 0.0
        %v1871 = vmax.f32 %v1867, 0.0
        %v1872 = vpack.c.bf16 %v1871, %v1870
        %s1873 = scalar_lea.vmem [#allocation11], 64
        %v1874 = vld [vmem:[%s1873] sm:$0xf]
        %v1875 = vld [vmem:[%s1873 + $0x4] sm:$0xf]
        %v1876 = vld [vmem:[%s1873 + $0x8] sm:$0xf]
        %v1877 = vld [vmem:[%s1873 + $0xc] sm:$0xf]
        %v1878 = vld [vmem:[%s1873 + $0x10] sm:$0xf]
        %v1879 = vld [vmem:[%s1873 + $0x14] sm:$0xf]
        %v1880 = vld [vmem:[%s1873 + $0x18] sm:$0xf]
        %v1881 = vld [vmem:[%s1873 + $0x1c] sm:$0xf]
        %v1882 = vld [vmem:[%s1873 + $0x20] sm:$0xf]
        %v1883 = vld [vmem:[%s1873 + $0x24] sm:$0xf]
        %v1884 = vld [vmem:[%s1873 + $0x28] sm:$0xf]
        %v1885 = vld [vmem:[%s1873 + $0x2c] sm:$0xf]
        %v1886 = vld [vmem:[%s1873 + $0x30] sm:$0xf]
        %v1887 = vld [vmem:[%s1873 + $0x34] sm:$0xf]
        %v1888 = vld [vmem:[%s1873 + $0x38] sm:$0xf]
        %v1889 = vld [vmem:[%s1873 + $0x3c] sm:$0xf]
        %v1906 = vunpack.c.l.b16 %v1874
        %v1907 = vunpack.c.l.b16 %v1875
        %v1908 = vunpack.c.l.b16 %v1876
        %v1909 = vunpack.c.l.b16 %v1877
        %v1910 = vunpack.c.l.b16 %v1878
        %v1911 = vunpack.c.l.b16 %v1879
        %v1912 = vunpack.c.l.b16 %v1880
        %v1913 = vunpack.c.l.b16 %v1881
        %v1914 = vunpack.c.l.b16 %v1882
        %v1915 = vunpack.c.l.b16 %v1883
        %v1916 = vunpack.c.l.b16 %v1884
        %v1917 = vunpack.c.l.b16 %v1885
        %v1918 = vunpack.c.l.b16 %v1886
        %v1919 = vunpack.c.l.b16 %v1887
        %v1920 = vunpack.c.l.b16 %v1888
        %v1921 = vunpack.c.l.b16 %v1889
        %v1922 = vpack.c.b16 %v1907, %v1906
        %v1923 = vpack.c.b16 %v1909, %v1908
        %v1924 = vpack.c.b16 %v1911, %v1910
        %v1925 = vpack.c.b16 %v1913, %v1912
        %v1926 = vpack.c.b16 %v1915, %v1914
        %v1927 = vpack.c.b16 %v1917, %v1916
        %v1928 = vpack.c.b16 %v1919, %v1918
        %v1929 = vpack.c.b16 %v1921, %v1920
        %1938 = vmatprep.subr.bf16.mxu0 0
        %1939 = vmatpush1.bf16.msra.mxu0 %v1922
        %1940 = vmatprep.subr.bf16.mxu0 0
        %1941 = vmatpush1.bf16.msra.mxu0 %v1923
        %1942 = vmatprep.subr.bf16.mxu0 0
        %1943 = vmatpush1.bf16.msra.mxu0 %v1924
        %1944 = vmatprep.subr.bf16.mxu0 0
        %1945 = vmatpush1.bf16.msra.mxu0 %v1925
        %1946 = vmatprep.subr.bf16.mxu0 0
        %1947 = vmatpush1.bf16.msra.mxu0 %v1926
        %1948 = vmatprep.subr.bf16.mxu0 0
        %1949 = vmatpush1.bf16.msra.mxu0 %v1927
        %1950 = vmatprep.subr.bf16.mxu0 0
        %1951 = vmatpush1.bf16.msra.mxu0 %v1928
        %1952 = vmatprep.subr.bf16.mxu0 0
        %1953 = vmatpush1.bf16.msra.mxu0 %v1929
        %1954 = vmatprep.subr.bf16.mxu0 0
        %1955 = vmatpush1.bf16.msra.mxu0 0
        %1956 = vmatprep.subr.bf16.mxu0 0
        %1957 = vmatpush1.bf16.msra.mxu0 0
        %1958 = vmatprep.subr.bf16.mxu0 0
        %1959 = vmatpush1.bf16.msra.mxu0 0
        %1960 = vmatprep.subr.bf16.mxu0 0
        %1961 = vmatpush1.bf16.msra.mxu0 0
        %1962 = vmatprep.subr.bf16.mxu0 0
        %1963 = vmatpush1.bf16.msra.mxu0 0
        %1964 = vmatprep.subr.bf16.mxu0 0
        %1965 = vmatpush1.bf16.msra.mxu0 0
        %1966 = vmatprep.subr.bf16.mxu0 0
        %1967 = vmatpush1.bf16.msra.mxu0 0
        %1968 = vmatprep.subr.bf16.mxu0 0
        %1969 = vmatpush1.bf16.msra.mxu0 0
        %1970 = vmatprep.mubr.bf16.mxu0 0
        %1971 = vmatmul.mubr.bf16.gmra.mrb[0].mxu0 %v1872
        %v1972 = vpop.f32.mrb[0].mxu0
        %v1973 = vadd.f32 0.0, %v1972
        %v1974 = vpop.f32.mrb[0].mxu0
        %v1975 = vpop.f32.mrb[0].mxu0
        %v1976 = vadd.f32 0.0, %v1975
        %v1977 = vpop.f32.mrb[0].mxu0
        %1978 = vdwg.mxu0
        %v1979 = vadd.f32 %v1543, %v1973
        %v1980 = vadd.f32 %v1544, %v1976
        %s1981 = scalar_lea.vmem [#allocation13], 1
        %v1982 = vld [vmem:[%s1981] sm:$0x1]
        %v1984 = vlaneseq
        %v1985 = vshrl.u32 %v1984, 7
        %v1986 = vsub.s32 0, %v1985
        %v1987 = vrot.slane %v1982, %v1986
        %v1989 = vadd.f32 %v1979, %v1987
        %v1990 = vadd.f32 %v1980, %v1987
        %v1991 = vmax.f32 %v1989, 0.0
        %v1992 = vmax.f32 %v1990, 0.0
        %s1993 = scalar_lea.vmem [#allocation8], 384
        %v1994 = vld [vmem:[%s1993] sm:$0xf]
        %v1995 = vld [vmem:[%s1993 + $0x4] sm:$0xf]
        %v1996 = vld [vmem:[%s1993 + $0x8] sm:$0xf]
        %v1997 = vld [vmem:[%s1993 + $0xc] sm:$0xf]
        %v1998 = vld [vmem:[%s1993 + $0x10] sm:$0xf]
        %v1999 = vld [vmem:[%s1993 + $0x14] sm:$0xf]
        %v2000 = vld [vmem:[%s1993 + $0x18] sm:$0xf]
        %v2001 = vld [vmem:[%s1993 + $0x1c] sm:$0xf]
        %v2002 = vld [vmem:[%s1993 + $0x20] sm:$0xf]
        %v2003 = vld [vmem:[%s1993 + $0x24] sm:$0xf]
        %v2004 = vld [vmem:[%s1993 + $0x28] sm:$0xf]
        %v2005 = vld [vmem:[%s1993 + $0x2c] sm:$0xf]
        %v2006 = vld [vmem:[%s1993 + $0x30] sm:$0xf]
        %v2007 = vld [vmem:[%s1993 + $0x34] sm:$0xf]
        %v2008 = vld [vmem:[%s1993 + $0x38] sm:$0xf]
        %v2009 = vld [vmem:[%s1993 + $0x3c] sm:$0xf]
        %v2010 = vld [vmem:[%s1993 + $0x40] sm:$0xf]
        %v2011 = vld [vmem:[%s1993 + $0x44] sm:$0xf]
        %v2012 = vld [vmem:[%s1993 + $0x48] sm:$0xf]
        %v2013 = vld [vmem:[%s1993 + $0x4c] sm:$0xf]
        %v2014 = vld [vmem:[%s1993 + $0x50] sm:$0xf]
        %v2015 = vld [vmem:[%s1993 + $0x54] sm:$0xf]
        %v2016 = vld [vmem:[%s1993 + $0x58] sm:$0xf]
        %v2017 = vld [vmem:[%s1993 + $0x5c] sm:$0xf]
        %v2018 = vld [vmem:[%s1993 + $0x60] sm:$0xf]
        %v2019 = vld [vmem:[%s1993 + $0x64] sm:$0xf]
        %v2020 = vld [vmem:[%s1993 + $0x68] sm:$0xf]
        %v2021 = vld [vmem:[%s1993 + $0x6c] sm:$0xf]
        %v2022 = vld [vmem:[%s1993 + $0x70] sm:$0xf]
        %v2023 = vld [vmem:[%s1993 + $0x74] sm:$0xf]
        %v2024 = vld [vmem:[%s1993 + $0x78] sm:$0xf]
        %v2025 = vld [vmem:[%s1993 + $0x7c] sm:$0xf]
        %v2026 = vld [vmem:[%s1993 + $0x80] sm:$0xf]
        %v2027 = vld [vmem:[%s1993 + $0x84] sm:$0xf]
        %v2028 = vld [vmem:[%s1993 + $0x88] sm:$0xf]
        %v2029 = vld [vmem:[%s1993 + $0x8c] sm:$0xf]
        %v2030 = vld [vmem:[%s1993 + $0x90] sm:$0xf]
        %v2031 = vld [vmem:[%s1993 + $0x94] sm:$0xf]
        %v2032 = vld [vmem:[%s1993 + $0x98] sm:$0xf]
        %v2033 = vld [vmem:[%s1993 + $0x9c] sm:$0xf]
        %v2034 = vld [vmem:[%s1993 + $0xa0] sm:$0xf]
        %v2035 = vld [vmem:[%s1993 + $0xa4] sm:$0xf]
        %v2036 = vld [vmem:[%s1993 + $0xa8] sm:$0xf]
        %v2037 = vld [vmem:[%s1993 + $0xac] sm:$0xf]
        %v2038 = vld [vmem:[%s1993 + $0xb0] sm:$0xf]
        %v2039 = vld [vmem:[%s1993 + $0xb4] sm:$0xf]
        %v2040 = vld [vmem:[%s1993 + $0xb8] sm:$0xf]
        %v2041 = vld [vmem:[%s1993 + $0xbc] sm:$0xf]
        %s2042 = scalar_lea.vmem [#allocation10], 2
        %v2043 = vld [vmem:[%s2042] sm:$0x1]
        %v2044 = vpack.c.bf16 %v1992, %v1991
        %v2046 = vshrl.u32 %v2044, 16
        %v2048 = vrot.slane %v2046, 7
        %v2049 = vshll.u32 %v2044, 16
        %v2051 = vor.u32 %v2048, %v2049
        %v2054 = vsel %vm983, 0, %v2051
        %v2055 = vsel %vm983, %v2048, 0
        %v2057 = vshrl.u32 %v2054, 16
        %v2059 = vshll.u32 %v2054, 16
        %v2061 = vrot.slane %v2059, 1
        %v2062 = vor.u32 %v2057, %v2061
        %v2064 = vshll.u32 %v2055, 16
        %v2066 = vrot.slane %v2064, 1
        %v2067 = vsel %vm986, %v2062, %v2066
        %v2071 = vrot.slane %v2054, 1
        %v2072 = vrot.slane %v2055, 1
        %v2073 = vsel %vm1003, %v2071, %v2072
        %v2076 = vlaneseq
        %v2077 = vshrl.u32 %v2076, 7
        %v2078 = vsub.s32 0, %v2077
        %v2079 = vrot.slane %v2043, %v2078
        %v2129 = vunpack.c.l.b16 %v1994
        %v2130 = vunpack.c.l.b16 %v1995
        %v2131 = vunpack.c.l.b16 %v1996
        %v2132 = vunpack.c.l.b16 %v1997
        %v2133 = vunpack.c.l.b16 %v1998
        %v2134 = vunpack.c.l.b16 %v1999
        %v2135 = vunpack.c.l.b16 %v2000
        %v2136 = vunpack.c.l.b16 %v2001
        %v2137 = vunpack.c.l.b16 %v2002
        %v2138 = vunpack.c.l.b16 %v2003
        %v2139 = vunpack.c.l.b16 %v2004
        %v2140 = vunpack.c.l.b16 %v2005
        %v2141 = vunpack.c.l.b16 %v2006
        %v2142 = vunpack.c.l.b16 %v2007
        %v2143 = vunpack.c.l.b16 %v2008
        %v2144 = vunpack.c.l.b16 %v2009
        %v2145 = vunpack.c.l.b16 %v2010
        %v2146 = vunpack.c.l.b16 %v2011
        %v2147 = vunpack.c.l.b16 %v2012
        %v2148 = vunpack.c.l.b16 %v2013
        %v2149 = vunpack.c.l.b16 %v2014
        %v2150 = vunpack.c.l.b16 %v2015
        %v2151 = vunpack.c.l.b16 %v2016
        %v2152 = vunpack.c.l.b16 %v2017
        %v2153 = vunpack.c.l.b16 %v2018
        %v2154 = vunpack.c.l.b16 %v2019
        %v2155 = vunpack.c.l.b16 %v2020
        %v2156 = vunpack.c.l.b16 %v2021
        %v2157 = vunpack.c.l.b16 %v2022
        %v2158 = vunpack.c.l.b16 %v2023
        %v2159 = vunpack.c.l.b16 %v2024
        %v2160 = vunpack.c.l.b16 %v2025
        %v2161 = vunpack.c.l.b16 %v2026
        %v2162 = vunpack.c.l.b16 %v2027
        %v2163 = vunpack.c.l.b16 %v2028
        %v2164 = vunpack.c.l.b16 %v2029
        %v2165 = vunpack.c.l.b16 %v2030
        %v2166 = vunpack.c.l.b16 %v2031
        %v2167 = vunpack.c.l.b16 %v2032
        %v2168 = vunpack.c.l.b16 %v2033
        %v2169 = vunpack.c.l.b16 %v2034
        %v2170 = vunpack.c.l.b16 %v2035
        %v2171 = vunpack.c.l.b16 %v2036
        %v2172 = vunpack.c.l.b16 %v2037
        %v2173 = vunpack.c.l.b16 %v2038
        %v2174 = vunpack.c.l.b16 %v2039
        %v2175 = vunpack.c.l.b16 %v2040
        %v2176 = vunpack.c.l.b16 %v2041
        %v2177 = vpack.c.b16 %v2130, %v2129
        %v2178 = vpack.c.b16 %v2132, %v2131
        %v2179 = vpack.c.b16 %v2134, %v2133
        %v2180 = vpack.c.b16 %v2136, %v2135
        %v2181 = vpack.c.b16 %v2138, %v2137
        %v2182 = vpack.c.b16 %v2140, %v2139
        %v2183 = vpack.c.b16 %v2142, %v2141
        %v2184 = vpack.c.b16 %v2144, %v2143
        %v2185 = vpack.c.b16 %v2146, %v2145
        %v2186 = vpack.c.b16 %v2148, %v2147
        %v2187 = vpack.c.b16 %v2150, %v2149
        %v2188 = vpack.c.b16 %v2152, %v2151
        %v2189 = vpack.c.b16 %v2154, %v2153
        %v2190 = vpack.c.b16 %v2156, %v2155
        %v2191 = vpack.c.b16 %v2158, %v2157
        %v2192 = vpack.c.b16 %v2160, %v2159
        %v2193 = vpack.c.b16 %v2162, %v2161
        %v2194 = vpack.c.b16 %v2164, %v2163
        %v2195 = vpack.c.b16 %v2166, %v2165
        %v2196 = vpack.c.b16 %v2168, %v2167
        %v2197 = vpack.c.b16 %v2170, %v2169
        %v2198 = vpack.c.b16 %v2172, %v2171
        %v2199 = vpack.c.b16 %v2174, %v2173
        %v2200 = vpack.c.b16 %v2176, %v2175
        %2225 = vmatprep.subr.bf16.mxu0 0
        %2226 = vmatpush1.bf16.msra.mxu0 %v2177
        %2227 = vmatprep.subr.bf16.mxu0 0
        %2228 = vmatpush1.bf16.msra.mxu0 %v2178
        %2229 = vmatprep.subr.bf16.mxu0 0
        %2230 = vmatpush1.bf16.msra.mxu0 %v2179
        %2231 = vmatprep.subr.bf16.mxu0 0
        %2232 = vmatpush1.bf16.msra.mxu0 %v2180
        %2233 = vmatprep.subr.bf16.mxu0 0
        %2234 = vmatpush1.bf16.msra.mxu0 %v2181
        %2235 = vmatprep.subr.bf16.mxu0 0
        %2236 = vmatpush1.bf16.msra.mxu0 %v2182
        %2237 = vmatprep.subr.bf16.mxu0 0
        %2238 = vmatpush1.bf16.msra.mxu0 %v2183
        %2239 = vmatprep.subr.bf16.mxu0 0
        %2240 = vmatpush1.bf16.msra.mxu0 %v2184
        %2241 = vmatprep.subr.bf16.mxu0 0
        %2242 = vmatpush1.bf16.msra.mxu0 %v2185
        %2243 = vmatprep.subr.bf16.mxu0 0
        %2244 = vmatpush1.bf16.msra.mxu0 %v2186
        %2245 = vmatprep.subr.bf16.mxu0 0
        %2246 = vmatpush1.bf16.msra.mxu0 %v2187
        %2247 = vmatprep.subr.bf16.mxu0 0
        %2248 = vmatpush1.bf16.msra.mxu0 %v2188
        %2249 = vmatprep.subr.bf16.mxu0 0
        %2250 = vmatpush1.bf16.msra.mxu0 %v2189
        %2251 = vmatprep.subr.bf16.mxu0 0
        %2252 = vmatpush1.bf16.msra.mxu0 %v2190
        %2253 = vmatprep.subr.bf16.mxu0 0
        %2254 = vmatpush1.bf16.msra.mxu0 %v2191
        %2255 = vmatprep.subr.bf16.mxu0 0
        %2256 = vmatpush1.bf16.msra.mxu0 %v2192
        %2257 = vmatprep.mubr.bf16.mxu0 %v2067
        %2258 = vmatmul.mubr.bf16.gmra.mrb[0].mxu0 %v2054
        %v2259 = vpop.f32.mrb[0].mxu0
        %v2260 = vadd.f32 %v2079, %v2259
        %v2261 = vpop.f32.mrb[0].mxu0
        %v2262 = vpop.f32.mrb[0].mxu0
        %v2263 = vadd.f32 %v2079, %v2262
        %v2264 = vpop.f32.mrb[0].mxu0
        %2265 = vdwg.mxu0
        %2266 = vmatprep.subr.bf16.mxu0 0
        %2267 = vmatpush1.bf16.msra.mxu0 %v2193
        %2268 = vmatprep.subr.bf16.mxu0 0
        %2269 = vmatpush1.bf16.msra.mxu0 %v2194
        %2270 = vmatprep.subr.bf16.mxu0 0
        %2271 = vmatpush1.bf16.msra.mxu0 %v2195
        %2272 = vmatprep.subr.bf16.mxu0 0
        %2273 = vmatpush1.bf16.msra.mxu0 %v2196
        %2274 = vmatprep.subr.bf16.mxu0 0
        %2275 = vmatpush1.bf16.msra.mxu0 %v2197
        %2276 = vmatprep.subr.bf16.mxu0 0
        %2277 = vmatpush1.bf16.msra.mxu0 %v2198
        %2278 = vmatprep.subr.bf16.mxu0 0
        %2279 = vmatpush1.bf16.msra.mxu0 %v2199
        %2280 = vmatprep.subr.bf16.mxu0 0
        %2281 = vmatpush1.bf16.msra.mxu0 %v2200
        %2282 = vmatprep.subr.bf16.mxu0 0
        %2283 = vmatpush1.bf16.msra.mxu0 0
        %2284 = vmatprep.subr.bf16.mxu0 0
        %2285 = vmatpush1.bf16.msra.mxu0 0
        %2286 = vmatprep.subr.bf16.mxu0 0
        %2287 = vmatpush1.bf16.msra.mxu0 0
        %2288 = vmatprep.subr.bf16.mxu0 0
        %2289 = vmatpush1.bf16.msra.mxu0 0
        %2290 = vmatprep.subr.bf16.mxu0 0
        %2291 = vmatpush1.bf16.msra.mxu0 0
        %2292 = vmatprep.subr.bf16.mxu0 0
        %2293 = vmatpush1.bf16.msra.mxu0 0
        %2294 = vmatprep.subr.bf16.mxu0 0
        %2295 = vmatpush1.bf16.msra.mxu0 0
        %2296 = vmatprep.subr.bf16.mxu0 0
        %2297 = vmatpush1.bf16.msra.mxu0 0
        %2298 = vmatprep.mubr.bf16.mxu0 0
        %2299 = vmatmul.mubr.bf16.gmra.mrb[0].mxu0 %v2073
        %v2300 = vpop.f32.mrb[0].mxu0
        %v2301 = vadd.f32 %v2260, %v2300
        %v2302 = vpop.f32.mrb[0].mxu0
        %v2303 = vpop.f32.mrb[0].mxu0
        %v2304 = vadd.f32 %v2263, %v2303
        %v2305 = vpop.f32.mrb[0].mxu0
        %2306 = vdwg.mxu0
        %v2307 = vmax.f32 %v2301, 0.0
        %v2308 = vmax.f32 %v2304, 0.0
        %v2309 = vpack.c.bf16 %v2308, %v2307
        %s2310 = scalar_lea.vmem [#allocation11], 128
        %v2311 = vld [vmem:[%s2310] sm:$0xf]
        %v2312 = vld [vmem:[%s2310 + $0x4] sm:$0xf]
        %v2313 = vld [vmem:[%s2310 + $0x8] sm:$0xf]
        %v2314 = vld [vmem:[%s2310 + $0xc] sm:$0xf]
        %v2315 = vld [vmem:[%s2310 + $0x10] sm:$0xf]
        %v2316 = vld [vmem:[%s2310 + $0x14] sm:$0xf]
        %v2317 = vld [vmem:[%s2310 + $0x18] sm:$0xf]
        %v2318 = vld [vmem:[%s2310 + $0x1c] sm:$0xf]
        %v2319 = vld [vmem:[%s2310 + $0x20] sm:$0xf]
        %v2320 = vld [vmem:[%s2310 + $0x24] sm:$0xf]
        %v2321 = vld [vmem:[%s2310 + $0x28] sm:$0xf]
        %v2322 = vld [vmem:[%s2310 + $0x2c] sm:$0xf]
        %v2323 = vld [vmem:[%s2310 + $0x30] sm:$0xf]
        %v2324 = vld [vmem:[%s2310 + $0x34] sm:$0xf]
        %v2325 = vld [vmem:[%s2310 + $0x38] sm:$0xf]
        %v2326 = vld [vmem:[%s2310 + $0x3c] sm:$0xf]
        %v2343 = vunpack.c.l.b16 %v2311
        %v2344 = vunpack.c.l.b16 %v2312
        %v2345 = vunpack.c.l.b16 %v2313
        %v2346 = vunpack.c.l.b16 %v2314
        %v2347 = vunpack.c.l.b16 %v2315
        %v2348 = vunpack.c.l.b16 %v2316
        %v2349 = vunpack.c.l.b16 %v2317
        %v2350 = vunpack.c.l.b16 %v2318
        %v2351 = vunpack.c.l.b16 %v2319
        %v2352 = vunpack.c.l.b16 %v2320
        %v2353 = vunpack.c.l.b16 %v2321
        %v2354 = vunpack.c.l.b16 %v2322
        %v2355 = vunpack.c.l.b16 %v2323
        %v2356 = vunpack.c.l.b16 %v2324
        %v2357 = vunpack.c.l.b16 %v2325
        %v2358 = vunpack.c.l.b16 %v2326
        %v2359 = vpack.c.b16 %v2344, %v2343
        %v2360 = vpack.c.b16 %v2346, %v2345
        %v2361 = vpack.c.b16 %v2348, %v2347
        %v2362 = vpack.c.b16 %v2350, %v2349
        %v2363 = vpack.c.b16 %v2352, %v2351
        %v2364 = vpack.c.b16 %v2354, %v2353
        %v2365 = vpack.c.b16 %v2356, %v2355
        %v2366 = vpack.c.b16 %v2358, %v2357
        %2375 = vmatprep.subr.bf16.mxu0 0
        %2376 = vmatpush1.bf16.msra.mxu0 %v2359
        %2377 = vmatprep.subr.bf16.mxu0 0
        %2378 = vmatpush1.bf16.msra.mxu0 %v2360
        %2379 = vmatprep.subr.bf16.mxu0 0
        %2380 = vmatpush1.bf16.msra.mxu0 %v2361
        %2381 = vmatprep.subr.bf16.mxu0 0
        %2382 = vmatpush1.bf16.msra.mxu0 %v2362
        %2383 = vmatprep.subr.bf16.mxu0 0
        %2384 = vmatpush1.bf16.msra.mxu0 %v2363
        %2385 = vmatprep.subr.bf16.mxu0 0
        %2386 = vmatpush1.bf16.msra.mxu0 %v2364
        %2387 = vmatprep.subr.bf16.mxu0 0
        %2388 = vmatpush1.bf16.msra.mxu0 %v2365
        %2389 = vmatprep.subr.bf16.mxu0 0
        %2390 = vmatpush1.bf16.msra.mxu0 %v2366
        %2391 = vmatprep.subr.bf16.mxu0 0
        %2392 = vmatpush1.bf16.msra.mxu0 0
        %2393 = vmatprep.subr.bf16.mxu0 0
        %2394 = vmatpush1.bf16.msra.mxu0 0
        %2395 = vmatprep.subr.bf16.mxu0 0
        %2396 = vmatpush1.bf16.msra.mxu0 0
        %2397 = vmatprep.subr.bf16.mxu0 0
        %2398 = vmatpush1.bf16.msra.mxu0 0
        %2399 = vmatprep.subr.bf16.mxu0 0
        %2400 = vmatpush1.bf16.msra.mxu0 0
        %2401 = vmatprep.subr.bf16.mxu0 0
        %2402 = vmatpush1.bf16.msra.mxu0 0
        %2403 = vmatprep.subr.bf16.mxu0 0
        %2404 = vmatpush1.bf16.msra.mxu0 0
        %2405 = vmatprep.subr.bf16.mxu0 0
        %2406 = vmatpush1.bf16.msra.mxu0 0
        %2407 = vmatprep.mubr.bf16.mxu0 0
        %2408 = vmatmul.mubr.bf16.gmra.mrb[0].mxu0 %v2309
        %v2409 = vpop.f32.mrb[0].mxu0
        %v2410 = vadd.f32 0.0, %v2409
        %v2411 = vpop.f32.mrb[0].mxu0
        %v2412 = vpop.f32.mrb[0].mxu0
        %v2413 = vadd.f32 0.0, %v2412
        %v2414 = vpop.f32.mrb[0].mxu0
        %2415 = vdwg.mxu0
        %v2416 = vadd.f32 %v1989, %v2410
        %v2417 = vadd.f32 %v1990, %v2413
        %s2418 = scalar_lea.vmem [#allocation13], 2
        %v2419 = vld [vmem:[%s2418] sm:$0x1]
        %v2421 = vlaneseq
        %v2422 = vshrl.u32 %v2421, 7
        %v2423 = vsub.s32 0, %v2422
        %v2424 = vrot.slane %v2419, %v2423
        %v2426 = vadd.f32 %v2416, %v2424
        %v2427 = vadd.f32 %v2417, %v2424
        %v2428 = vpack.c.bf16 %v2427, %v2426
        %v2430 = vshrl.u32 %v2428, 16
        %v2432 = vrot.slane %v2430, 7
        %v2433 = vshll.u32 %v2428, 16
        %v2435 = vor.u32 %v2432, %v2433
        %v2438 = vsel %vm983, 0, %v2435
        %v2439 = vsel %vm983, %v2432, 0
        %v2440 = vld [vmem:[#allocation17] sm:$0x1]
        %v2442 = vshrl.u32 %v2438, 16
        %v2444 = vshll.u32 %v2438, 16
        %v2446 = vrot.slane %v2444, 1
        %v2447 = vor.u32 %v2442, %v2446
        %v2449 = vshll.u32 %v2439, 16
        %v2451 = vrot.slane %v2449, 1
        %v2452 = vsel %vm986, %v2447, %v2451
        %v2454 = vld [vmem:[#allocation14] sm:$0xf]
        %v2455 = vld [vmem:[#allocation14 + $0x4] sm:$0xf]
        %v2456 = vld [vmem:[#allocation14 + $0x8] sm:$0xf]
        %v2457 = vld [vmem:[#allocation14 + $0xc] sm:$0xf]
        %v2458 = vld [vmem:[#allocation14 + $0x10] sm:$0xf]
        %v2459 = vld [vmem:[#allocation14 + $0x14] sm:$0xf]
        %v2460 = vld [vmem:[#allocation14 + $0x18] sm:$0xf]
        %v2461 = vld [vmem:[#allocation14 + $0x1c] sm:$0xf]
        %v2462 = vld [vmem:[#allocation14 + $0x20] sm:$0xf]
        %v2463 = vld [vmem:[#allocation14 + $0x24] sm:$0xf]
        %v2464 = vld [vmem:[#allocation14 + $0x28] sm:$0xf]
        %v2465 = vld [vmem:[#allocation14 + $0x2c] sm:$0xf]
        %v2466 = vld [vmem:[#allocation14 + $0x30] sm:$0xf]
        %v2467 = vld [vmem:[#allocation14 + $0x34] sm:$0xf]
        %v2468 = vld [vmem:[#allocation14 + $0x38] sm:$0xf]
        %v2469 = vld [vmem:[#allocation14 + $0x3c] sm:$0xf]
        %v2470 = vld [vmem:[#allocation14 + $0x40] sm:$0xf]
        %v2471 = vld [vmem:[#allocation14 + $0x44] sm:$0xf]
        %v2472 = vld [vmem:[#allocation14 + $0x48] sm:$0xf]
        %v2473 = vld [vmem:[#allocation14 + $0x4c] sm:$0xf]
        %v2474 = vld [vmem:[#allocation14 + $0x50] sm:$0xf]
        %v2475 = vld [vmem:[#allocation14 + $0x54] sm:$0xf]
        %v2476 = vld [vmem:[#allocation14 + $0x58] sm:$0xf]
        %v2477 = vld [vmem:[#allocation14 + $0x5c] sm:$0xf]
        %v2478 = vld [vmem:[#allocation14 + $0x60] sm:$0xf]
        %v2479 = vld [vmem:[#allocation14 + $0x64] sm:$0xf]
        %v2480 = vld [vmem:[#allocation14 + $0x68] sm:$0xf]
        %v2481 = vld [vmem:[#allocation14 + $0x6c] sm:$0xf]
        %v2482 = vld [vmem:[#allocation14 + $0x70] sm:$0xf]
        %v2483 = vld [vmem:[#allocation14 + $0x74] sm:$0xf]
        %v2484 = vld [vmem:[#allocation14 + $0x78] sm:$0xf]
        %v2485 = vld [vmem:[#allocation14 + $0x7c] sm:$0xf]
        %v2487 = vlaneseq
        %v2488 = vshrl.u32 %v2487, 7
        %v2489 = vsub.s32 0, %v2488
        %v2490 = vrot.slane %v2440, %v2489
        %v2524 = vunpack.c.l.b16 %v2454
        %v2525 = vunpack.c.l.b16 %v2455
        %v2526 = vunpack.c.l.b16 %v2456
        %v2527 = vunpack.c.l.b16 %v2457
        %v2528 = vunpack.c.l.b16 %v2458
        %v2529 = vunpack.c.l.b16 %v2459
        %v2530 = vunpack.c.l.b16 %v2460
        %v2531 = vunpack.c.l.b16 %v2461
        %v2532 = vunpack.c.l.b16 %v2462
        %v2533 = vunpack.c.l.b16 %v2463
        %v2534 = vunpack.c.l.b16 %v2464
        %v2535 = vunpack.c.l.b16 %v2465
        %v2536 = vunpack.c.l.b16 %v2466
        %v2537 = vunpack.c.l.b16 %v2467
        %v2538 = vunpack.c.l.b16 %v2468
        %v2539 = vunpack.c.l.b16 %v2469
        %v2540 = vunpack.c.l.b16 %v2470
        %v2541 = vunpack.c.l.b16 %v2471
        %v2542 = vunpack.c.l.b16 %v2472
        %v2543 = vunpack.c.l.b16 %v2473
        %v2544 = vunpack.c.l.b16 %v2474
        %v2545 = vunpack.c.l.b16 %v2475
        %v2546 = vunpack.c.l.b16 %v2476
        %v2547 = vunpack.c.l.b16 %v2477
        %v2548 = vunpack.c.l.b16 %v2478
        %v2549 = vunpack.c.l.b16 %v2479
        %v2550 = vunpack.c.l.b16 %v2480
        %v2551 = vunpack.c.l.b16 %v2481
        %v2552 = vunpack.c.l.b16 %v2482
        %v2553 = vunpack.c.l.b16 %v2483
        %v2554 = vunpack.c.l.b16 %v2484
        %v2555 = vunpack.c.l.b16 %v2485
        %v2556 = vpack.c.b16 %v2525, %v2524
        %v2557 = vpack.c.b16 %v2527, %v2526
        %v2558 = vpack.c.b16 %v2529, %v2528
        %v2559 = vpack.c.b16 %v2531, %v2530
        %v2560 = vpack.c.b16 %v2533, %v2532
        %v2561 = vpack.c.b16 %v2535, %v2534
        %v2562 = vpack.c.b16 %v2537, %v2536
        %v2563 = vpack.c.b16 %v2539, %v2538
        %v2564 = vpack.c.b16 %v2541, %v2540
        %v2565 = vpack.c.b16 %v2543, %v2542
        %v2566 = vpack.c.b16 %v2545, %v2544
        %v2567 = vpack.c.b16 %v2547, %v2546
        %v2568 = vpack.c.b16 %v2549, %v2548
        %v2569 = vpack.c.b16 %v2551, %v2550
        %v2570 = vpack.c.b16 %v2553, %v2552
        %v2571 = vpack.c.b16 %v2555, %v2554
        %2588 = vmatprep.subr.bf16.mxu0 0
        %2589 = vmatpush1.bf16.msra.mxu0 %v2556
        %2590 = vmatprep.subr.bf16.mxu0 0
        %2591 = vmatpush1.bf16.msra.mxu0 %v2557
        %2592 = vmatprep.subr.bf16.mxu0 0
        %2593 = vmatpush1.bf16.msra.mxu0 %v2558
        %2594 = vmatprep.subr.bf16.mxu0 0
        %2595 = vmatpush1.bf16.msra.mxu0 %v2559
        %2596 = vmatprep.subr.bf16.mxu0 0
        %2597 = vmatpush1.bf16.msra.mxu0 %v2560
        %2598 = vmatprep.subr.bf16.mxu0 0
        %2599 = vmatpush1.bf16.msra.mxu0 %v2561
        %2600 = vmatprep.subr.bf16.mxu0 0
        %2601 = vmatpush1.bf16.msra.mxu0 %v2562
        %2602 = vmatprep.subr.bf16.mxu0 0
        %2603 = vmatpush1.bf16.msra.mxu0 %v2563
        %2604 = vmatprep.subr.bf16.mxu0 0
        %2605 = vmatpush1.bf16.msra.mxu0 %v2564
        %2606 = vmatprep.subr.bf16.mxu0 0
        %2607 = vmatpush1.bf16.msra.mxu0 %v2565
        %2608 = vmatprep.subr.bf16.mxu0 0
        %2609 = vmatpush1.bf16.msra.mxu0 %v2566
        %2610 = vmatprep.subr.bf16.mxu0 0
        %2611 = vmatpush1.bf16.msra.mxu0 %v2567
        %2612 = vmatprep.subr.bf16.mxu0 0
        %2613 = vmatpush1.bf16.msra.mxu0 %v2568
        %2614 = vmatprep.subr.bf16.mxu0 0
        %2615 = vmatpush1.bf16.msra.mxu0 %v2569
        %2616 = vmatprep.subr.bf16.mxu0 0
        %2617 = vmatpush1.bf16.msra.mxu0 %v2570
        %2618 = vmatprep.subr.bf16.mxu0 0
        %2619 = vmatpush1.bf16.msra.mxu0 %v2571
        %2620 = vmatprep.mubr.bf16.mxu0 %v2452
        %2621 = vmatmul.mubr.bf16.gmra.mrb[0].mxu0 %v2438
        %v2622 = vpop.f32.mrb[0].mxu0
        %v2623 = vadd.f32 %v2490, %v2622
        %v2624 = vpop.f32.mrb[0].mxu0
        %v2625 = vpop.f32.mrb[0].mxu0
        %v2626 = vadd.f32 %v2490, %v2625
        %v2627 = vpop.f32.mrb[0].mxu0
        %2628 = vdwg.mxu0
        %v2629 = vshrl.u32 %v2439, 16
        %v2631 = vld [vmem:[#allocation16] sm:$0xf]
        %v2632 = vld [vmem:[#allocation16 + $0x4] sm:$0xf]
        %v2633 = vld [vmem:[#allocation16 + $0x8] sm:$0xf]
        %v2634 = vld [vmem:[#allocation16 + $0xc] sm:$0xf]
        %v2635 = vld [vmem:[#allocation16 + $0x10] sm:$0xf]
        %v2636 = vld [vmem:[#allocation16 + $0x14] sm:$0xf]
        %v2637 = vld [vmem:[#allocation16 + $0x18] sm:$0xf]
        %v2638 = vld [vmem:[#allocation16 + $0x1c] sm:$0xf]
        %v2639 = vld [vmem:[#allocation16 + $0x20] sm:$0xf]
        %v2640 = vld [vmem:[#allocation16 + $0x24] sm:$0xf]
        %v2641 = vld [vmem:[#allocation16 + $0x28] sm:$0xf]
        %v2642 = vld [vmem:[#allocation16 + $0x2c] sm:$0xf]
        %v2643 = vld [vmem:[#allocation16 + $0x30] sm:$0xf]
        %v2644 = vld [vmem:[#allocation16 + $0x34] sm:$0xf]
        %v2645 = vld [vmem:[#allocation16 + $0x38] sm:$0xf]
        %v2646 = vld [vmem:[#allocation16 + $0x3c] sm:$0xf]
        %v2647 = vld [vmem:[#allocation16 + $0x40] sm:$0xf]
        %v2648 = vld [vmem:[#allocation16 + $0x44] sm:$0xf]
        %v2649 = vld [vmem:[#allocation16 + $0x48] sm:$0xf]
        %v2650 = vld [vmem:[#allocation16 + $0x4c] sm:$0xf]
        %v2651 = vld [vmem:[#allocation16 + $0x50] sm:$0xf]
        %v2652 = vld [vmem:[#allocation16 + $0x54] sm:$0xf]
        %v2653 = vld [vmem:[#allocation16 + $0x58] sm:$0xf]
        %v2654 = vld [vmem:[#allocation16 + $0x5c] sm:$0xf]
        %v2655 = vld [vmem:[#allocation16 + $0x60] sm:$0xf]
        %v2656 = vld [vmem:[#allocation16 + $0x64] sm:$0xf]
        %v2657 = vld [vmem:[#allocation16 + $0x68] sm:$0xf]
        %v2658 = vld [vmem:[#allocation16 + $0x6c] sm:$0xf]
        %v2659 = vld [vmem:[#allocation16 + $0x70] sm:$0xf]
        %v2660 = vld [vmem:[#allocation16 + $0x74] sm:$0xf]
        %v2661 = vld [vmem:[#allocation16 + $0x78] sm:$0xf]
        %v2662 = vld [vmem:[#allocation16 + $0x7c] sm:$0xf]
        %v2664 = vshrl.u32 %v2452, 16
        %v2666 = vshll.u32 %v2452, 16
        %v2668 = vrot.slane %v2666, 1
        %v2669 = vor.u32 %v2664, %v2668
        %v2671 = vshll.u32 %v2629, 16
        %v2673 = vrot.slane %v2671, 1
        %v2674 = vsel %vm986, %v2669, %v2673
        %v2708 = vunpack.c.l.b16 %v2631
        %v2709 = vunpack.c.l.b16 %v2632
        %v2710 = vunpack.c.l.b16 %v2633
        %v2711 = vunpack.c.l.b16 %v2634
        %v2712 = vunpack.c.l.b16 %v2635
        %v2713 = vunpack.c.l.b16 %v2636
        %v2714 = vunpack.c.l.b16 %v2637
        %v2715 = vunpack.c.l.b16 %v2638
        %v2716 = vunpack.c.l.b16 %v2639
        %v2717 = vunpack.c.l.b16 %v2640
        %v2718 = vunpack.c.l.b16 %v2641
        %v2719 = vunpack.c.l.b16 %v2642
        %v2720 = vunpack.c.l.b16 %v2643
        %v2721 = vunpack.c.l.b16 %v2644
        %v2722 = vunpack.c.l.b16 %v2645
        %v2723 = vunpack.c.l.b16 %v2646
        %v2724 = vunpack.c.l.b16 %v2647
        %v2725 = vunpack.c.l.b16 %v2648
        %v2726 = vunpack.c.l.b16 %v2649
        %v2727 = vunpack.c.l.b16 %v2650
        %v2728 = vunpack.c.l.b16 %v2651
        %v2729 = vunpack.c.l.b16 %v2652
        %v2730 = vunpack.c.l.b16 %v2653
        %v2731 = vunpack.c.l.b16 %v2654
        %v2732 = vunpack.c.l.b16 %v2655
        %v2733 = vunpack.c.l.b16 %v2656
        %v2734 = vunpack.c.l.b16 %v2657
        %v2735 = vunpack.c.l.b16 %v2658
        %v2736 = vunpack.c.l.b16 %v2659
        %v2737 = vunpack.c.l.b16 %v2660
        %v2738 = vunpack.c.l.b16 %v2661
        %v2739 = vunpack.c.l.b16 %v2662
        %v2740 = vpack.c.b16 %v2709, %v2708
        %v2741 = vpack.c.b16 %v2711, %v2710
        %v2742 = vpack.c.b16 %v2713, %v2712
        %v2743 = vpack.c.b16 %v2715, %v2714
        %v2744 = vpack.c.b16 %v2717, %v2716
        %v2745 = vpack.c.b16 %v2719, %v2718
        %v2746 = vpack.c.b16 %v2721, %v2720
        %v2747 = vpack.c.b16 %v2723, %v2722
        %v2748 = vpack.c.b16 %v2725, %v2724
        %v2749 = vpack.c.b16 %v2727, %v2726
        %v2750 = vpack.c.b16 %v2729, %v2728
        %v2751 = vpack.c.b16 %v2731, %v2730
        %v2752 = vpack.c.b16 %v2733, %v2732
        %v2753 = vpack.c.b16 %v2735, %v2734
        %v2754 = vpack.c.b16 %v2737, %v2736
        %v2755 = vpack.c.b16 %v2739, %v2738
        %2772 = vmatprep.subr.bf16.mxu0 0
        %2773 = vmatpush1.bf16.msra.mxu0 %v2740
        %2774 = vmatprep.subr.bf16.mxu0 0
        %2775 = vmatpush1.bf16.msra.mxu0 %v2741
        %2776 = vmatprep.subr.bf16.mxu0 0
        %2777 = vmatpush1.bf16.msra.mxu0 %v2742
        %2778 = vmatprep.subr.bf16.mxu0 0
        %2779 = vmatpush1.bf16.msra.mxu0 %v2743
        %2780 = vmatprep.subr.bf16.mxu0 0
        %2781 = vmatpush1.bf16.msra.mxu0 %v2744
        %2782 = vmatprep.subr.bf16.mxu0 0
        %2783 = vmatpush1.bf16.msra.mxu0 %v2745
        %2784 = vmatprep.subr.bf16.mxu0 0
        %2785 = vmatpush1.bf16.msra.mxu0 %v2746
        %2786 = vmatprep.subr.bf16.mxu0 0
        %2787 = vmatpush1.bf16.msra.mxu0 %v2747
        %2788 = vmatprep.subr.bf16.mxu0 0
        %2789 = vmatpush1.bf16.msra.mxu0 %v2748
        %2790 = vmatprep.subr.bf16.mxu0 0
        %2791 = vmatpush1.bf16.msra.mxu0 %v2749
        %2792 = vmatprep.subr.bf16.mxu0 0
        %2793 = vmatpush1.bf16.msra.mxu0 %v2750
        %2794 = vmatprep.subr.bf16.mxu0 0
        %2795 = vmatpush1.bf16.msra.mxu0 %v2751
        %2796 = vmatprep.subr.bf16.mxu0 0
        %2797 = vmatpush1.bf16.msra.mxu0 %v2752
        %2798 = vmatprep.subr.bf16.mxu0 0
        %2799 = vmatpush1.bf16.msra.mxu0 %v2753
        %2800 = vmatprep.subr.bf16.mxu0 0
        %2801 = vmatpush1.bf16.msra.mxu0 %v2754
        %2802 = vmatprep.subr.bf16.mxu0 0
        %2803 = vmatpush1.bf16.msra.mxu0 %v2755
        %2804 = vmatprep.mubr.bf16.mxu0 %v2674
        %2805 = vmatmul.mubr.bf16.gmra.mrb[0].mxu0 %v2452
        %v2806 = vpop.f32.mrb[0].mxu0
        %v2807 = vadd.f32 %v2490, %v2806
        %v2808 = vpop.f32.mrb[0].mxu0
        %v2809 = vpop.f32.mrb[0].mxu0
        %v2810 = vadd.f32 %v2490, %v2809
        %v2811 = vpop.f32.mrb[0].mxu0
        %2812 = vdwg.mxu0
        %v2813 = vlaneseq
        %v2814 = vshrl.u32 %v2813, 7
        %v2815 = vadd.s32 %v2814, 8
        %v2816 = vadd.s32 %v2814, 16
        %v2817 = vadd.s32 %v2814, 24
        %v2818 = vlaneseq
        %v2819 = vand.u32 %v2818, 127
        %v2820 = vmul.u32 %v2819, 2
        %vm2821 = vcmp.eq.s32.totalorder %v2814, %v2820
        %vm2822 = vcmp.eq.s32.totalorder %v2815, %v2820
        %vm2823 = vcmp.eq.s32.totalorder %v2816, %v2820
        %vm2824 = vcmp.eq.s32.totalorder %v2817, %v2820
        %v2825 = vsel %vm2821, 1.0, 0.0
        %v2826 = vsel %vm2822, 1.0, 0.0
        %v2827 = vsel %vm2823, 1.0, 0.0
        %v2828 = vsel %vm2824, 1.0, 0.0
        %v2829 = vadd.s32 %v2820, 1
        %vm2830 = vcmp.eq.s32.totalorder %v2814, %v2829
        %vm2831 = vcmp.eq.s32.totalorder %v2815, %v2829
        %vm2832 = vcmp.eq.s32.totalorder %v2816, %v2829
        %vm2833 = vcmp.eq.s32.totalorder %v2817, %v2829
        %v2834 = vsel %vm2830, 1.0, 0.0
        %v2835 = vsel %vm2831, 1.0, 0.0
        %v2836 = vsel %vm2832, 1.0, 0.0
        %v2837 = vsel %vm2833, 1.0, 0.0
        %vm2838 = vcmask 130048
        %v2840 = vsel %vm2838, %v2834, 0
        %v2843 = vsel %vm2838, %v2835, 0
        %v2846 = vsel %vm2838, %v2836, 0
        %v2849 = vsel %vm2838, %v2837, 0
        %2851 = vmatprep.subr.mxu0 0.0
        %2852 = vmatpush1.msra.mxu0 %v2807
        %2853 = vmatprep.subr.mxu0 0.0
        %2854 = vmatpush1.msra.mxu0 %v2810
        %2855 = vmatprep.subr.mxu0 0.0
        %2856 = vmatpush1.msra.mxu0 0.0
        %2857 = vmatprep.subr.mxu0 0.0
        %2858 = vmatpush1.msra.mxu0 0.0
        %2859 = vmatprep.subr.mxu0 0.0
        %2860 = vmatpush1.msra.mxu0 0.0
        %2861 = vmatprep.subr.mxu0 0.0
        %2862 = vmatpush1.msra.mxu0 0.0
        %2863 = vmatprep.subr.mxu0 0.0
        %2864 = vmatpush1.msra.mxu0 0.0
        %2865 = vmatprep.subr.mxu0 0.0
        %2866 = vmatpush1.msra.mxu0 0.0
        %2867 = vmatprep.subr.mxu0 0.0
        %2868 = vmatpush1.msra.mxu0 0.0
        %2869 = vmatprep.subr.mxu0 0.0
        %2870 = vmatpush1.msra.mxu0 0.0
        %2871 = vmatprep.subr.mxu0 0.0
        %2872 = vmatpush1.msra.mxu0 0.0
        %2873 = vmatprep.subr.mxu0 0.0
        %2874 = vmatpush1.msra.mxu0 0.0
        %2875 = vmatprep.subr.mxu0 0.0
        %2876 = vmatpush1.msra.mxu0 0.0
        %2877 = vmatprep.subr.mxu0 0.0
        %2878 = vmatpush1.msra.mxu0 0.0
        %2879 = vmatprep.subr.mxu0 0.0
        %2880 = vmatpush1.msra.mxu0 0.0
        %2881 = vmatprep.subr.mxu0 0.0
        %2882 = vmatpush1.msra.mxu0 0.0
        %2883 = vmatprep.subr.mxu0 0.0
        %2884 = vmatpush1.msra.mxu0 0.0
        %2885 = vmatprep.subr.mxu0 0.0
        %2886 = vmatpush1.msra.mxu0 0.0
        %2887 = vmatprep.subr.mxu0 0.0
        %2888 = vmatpush1.msra.mxu0 0.0
        %2889 = vmatprep.subr.mxu0 0.0
        %2890 = vmatpush1.msra.mxu0 0.0
        %2891 = vmatprep.subr.mxu0 0.0
        %2892 = vmatpush1.msra.mxu0 0.0
        %2893 = vmatprep.subr.mxu0 0.0
        %2894 = vmatpush1.msra.mxu0 0.0
        %2895 = vmatprep.subr.mxu0 0.0
        %2896 = vmatpush1.msra.mxu0 0.0
        %2897 = vmatprep.subr.mxu0 0.0
        %2898 = vmatpush1.msra.mxu0 0.0
        %2899 = vmatprep.subr.mxu0 0.0
        %2900 = vmatpush1.msra.mxu0 0.0
        %2901 = vmatprep.subr.mxu0 0.0
        %2902 = vmatpush1.msra.mxu0 0.0
        %2903 = vmatprep.subr.mxu0 0.0
        %2904 = vmatpush1.msra.mxu0 0.0
        %2905 = vmatprep.subr.mxu0 0.0
        %2906 = vmatpush1.msra.mxu0 0.0
        %2907 = vmatprep.subr.mxu0 0.0
        %2908 = vmatpush1.msra.mxu0 0.0
        %2909 = vmatprep.subr.mxu0 0.0
        %2910 = vmatpush1.msra.mxu0 0.0
        %2911 = vmatprep.subr.mxu0 0.0
        %2912 = vmatpush1.msra.mxu0 0.0
        %2913 = vmatprep.subr.mxu0 0.0
        %2914 = vmatpush1.msra.mxu0 0.0
        %2915 = vmatprep.mubr.f32.mxu0 0.0
        %2916 = vmatmul.mubr.f32.gmra.mrb[0].mxu0 %v2840
        %v2917 = vpop.f32.mrb[0].mxu0
        %v2918 = vadd.f32 0.0, %v2917
        %v2919 = vpop.f32.mrb[0].mxu0
        %2920 = vmatprep.mubr.f32.mxu0 0.0
        %2921 = vmatmul.mubr.f32.gmra.mrb[0].mxu0 %v2843
        %v2922 = vpop.f32.mrb[0].mxu0
        %v2923 = vadd.f32 0.0, %v2922
        %v2924 = vpop.f32.mrb[0].mxu0
        %2925 = vmatprep.mubr.f32.mxu0 0.0
        %2926 = vmatmul.mubr.f32.gmra.mrb[0].mxu0 %v2846
        %v2927 = vpop.f32.mrb[0].mxu0
        %v2928 = vadd.f32 0.0, %v2927
        %v2929 = vpop.f32.mrb[0].mxu0
        %2930 = vmatprep.mubr.f32.mxu0 0.0
        %2931 = vmatmul.mubr.f32.gmra.mrb[0].mxu0 %v2849
        %v2932 = vpop.f32.mrb[0].mxu0
        %v2933 = vadd.f32 0.0, %v2932
        %v2934 = vpop.f32.mrb[0].mxu0
        %2935 = vdwg.mxu0
        %v2937 = vsel %vm2838, %v2825, 0
        %v2940 = vsel %vm2838, %v2826, 0
        %v2943 = vsel %vm2838, %v2827, 0
        %v2946 = vsel %vm2838, %v2828, 0
        %2948 = vmatprep.subr.mxu0 0.0
        %2949 = vmatpush1.msra.mxu0 %v2623
        %2950 = vmatprep.subr.mxu0 0.0
        %2951 = vmatpush1.msra.mxu0 %v2626
        %2952 = vmatprep.subr.mxu0 0.0
        %2953 = vmatpush1.msra.mxu0 0.0
        %2954 = vmatprep.subr.mxu0 0.0
        %2955 = vmatpush1.msra.mxu0 0.0
        %2956 = vmatprep.subr.mxu0 0.0
        %2957 = vmatpush1.msra.mxu0 0.0
        %2958 = vmatprep.subr.mxu0 0.0
        %2959 = vmatpush1.msra.mxu0 0.0
        %2960 = vmatprep.subr.mxu0 0.0
        %2961 = vmatpush1.msra.mxu0 0.0
        %2962 = vmatprep.subr.mxu0 0.0
        %2963 = vmatpush1.msra.mxu0 0.0
        %2964 = vmatprep.subr.mxu0 0.0
        %2965 = vmatpush1.msra.mxu0 0.0
        %2966 = vmatprep.subr.mxu0 0.0
        %2967 = vmatpush1.msra.mxu0 0.0
        %2968 = vmatprep.subr.mxu0 0.0
        %2969 = vmatpush1.msra.mxu0 0.0
        %2970 = vmatprep.subr.mxu0 0.0
        %2971 = vmatpush1.msra.mxu0 0.0
        %2972 = vmatprep.subr.mxu0 0.0
        %2973 = vmatpush1.msra.mxu0 0.0
        %2974 = vmatprep.subr.mxu0 0.0
        %2975 = vmatpush1.msra.mxu0 0.0
        %2976 = vmatprep.subr.mxu0 0.0
        %2977 = vmatpush1.msra.mxu0 0.0
        %2978 = vmatprep.subr.mxu0 0.0
        %2979 = vmatpush1.msra.mxu0 0.0
        %2980 = vmatprep.subr.mxu0 0.0
        %2981 = vmatpush1.msra.mxu0 0.0
        %2982 = vmatprep.subr.mxu0 0.0
        %2983 = vmatpush1.msra.mxu0 0.0
        %2984 = vmatprep.subr.mxu0 0.0
        %2985 = vmatpush1.msra.mxu0 0.0
        %2986 = vmatprep.subr.mxu0 0.0
        %2987 = vmatpush1.msra.mxu0 0.0
        %2988 = vmatprep.subr.mxu0 0.0
        %2989 = vmatpush1.msra.mxu0 0.0
        %2990 = vmatprep.subr.mxu0 0.0
        %2991 = vmatpush1.msra.mxu0 0.0
        %2992 = vmatprep.subr.mxu0 0.0
        %2993 = vmatpush1.msra.mxu0 0.0
        %2994 = vmatprep.subr.mxu0 0.0
        %2995 = vmatpush1.msra.mxu0 0.0
        %2996 = vmatprep.subr.mxu0 0.0
        %2997 = vmatpush1.msra.mxu0 0.0
        %2998 = vmatprep.subr.mxu0 0.0
        %2999 = vmatpush1.msra.mxu0 0.0
        %3000 = vmatprep.subr.mxu0 0.0
        %3001 = vmatpush1.msra.mxu0 0.0
        %3002 = vmatprep.subr.mxu0 0.0
        %3003 = vmatpush1.msra.mxu0 0.0
        %3004 = vmatprep.subr.mxu0 0.0
        %3005 = vmatpush1.msra.mxu0 0.0
        %3006 = vmatprep.subr.mxu0 0.0
        %3007 = vmatpush1.msra.mxu0 0.0
        %3008 = vmatprep.subr.mxu0 0.0
        %3009 = vmatpush1.msra.mxu0 0.0
        %3010 = vmatprep.subr.mxu0 0.0
        %3011 = vmatpush1.msra.mxu0 0.0
        %3012 = vmatprep.mubr.f32.mxu0 0.0
        %3013 = vmatmul.mubr.f32.gmra.mrb[0].mxu0 %v2937
        %v3014 = vpop.f32.mrb[0].mxu0
        %v3015 = vadd.f32 %v2918, %v3014
        %v3016 = vpop.f32.mrb[0].mxu0
        %3017 = vmatprep.mubr.f32.mxu0 0.0
        %3018 = vmatmul.mubr.f32.gmra.mrb[0].mxu0 %v2940
        %v3019 = vpop.f32.mrb[0].mxu0
        %v3020 = vadd.f32 %v2923, %v3019
        %v3021 = vpop.f32.mrb[0].mxu0
        %3022 = vmatprep.mubr.f32.mxu0 0.0
        %3023 = vmatmul.mubr.f32.gmra.mrb[0].mxu0 %v2943
        %v3024 = vpop.f32.mrb[0].mxu0
        %v3025 = vadd.f32 %v2928, %v3024
        %v3026 = vpop.f32.mrb[0].mxu0
        %3027 = vmatprep.mubr.f32.mxu0 0.0
        %3028 = vmatmul.mubr.f32.gmra.mrb[0].mxu0 %v2946
        %v3029 = vpop.f32.mrb[0].mxu0
        %v3030 = vadd.f32 %v2933, %v3029
        %v3031 = vpop.f32.mrb[0].mxu0
        %3032 = vdwg.mxu0
        %v3033 = vmax.f32 %v3015, 0.0
        %v3034 = vmax.f32 %v3020, 0.0
        %v3035 = vmax.f32 %v3025, 0.0
        %v3036 = vmax.f32 %v3030, 0.0
        %v3037 = vld [vmem:[#allocation19] sm:$0xf]
        %v3038 = vld [vmem:[#allocation19 + $0x4] sm:$0xf]
        %v3039 = vld [vmem:[#allocation19 + $0x8] sm:$0xf]
        %v3040 = vld [vmem:[#allocation19 + $0xc] sm:$0xf]
        %v3041 = vld [vmem:[#allocation19 + $0x10] sm:$0xf]
        %v3042 = vld [vmem:[#allocation19 + $0x14] sm:$0xf]
        %v3043 = vld [vmem:[#allocation19 + $0x18] sm:$0xf]
        %v3044 = vld [vmem:[#allocation19 + $0x1c] sm:$0xf]
        %v3045 = vld [vmem:[#allocation19 + $0x20] sm:$0xf]
        %v3046 = vld [vmem:[#allocation19 + $0x24] sm:$0xf]
        %v3047 = vld [vmem:[#allocation19 + $0x28] sm:$0xf]
        %v3048 = vld [vmem:[#allocation19 + $0x2c] sm:$0xf]
        %v3049 = vld [vmem:[#allocation19 + $0x30] sm:$0xf]
        %v3050 = vld [vmem:[#allocation19 + $0x34] sm:$0xf]
        %v3051 = vld [vmem:[#allocation19 + $0x38] sm:$0xf]
        %v3052 = vld [vmem:[#allocation19 + $0x3c] sm:$0xf]
        %v3053 = vld [vmem:[#allocation19 + $0x40] sm:$0xf]
        %v3054 = vld [vmem:[#allocation19 + $0x44] sm:$0xf]
        %v3055 = vld [vmem:[#allocation19 + $0x48] sm:$0xf]
        %v3056 = vld [vmem:[#allocation19 + $0x4c] sm:$0xf]
        %v3057 = vld [vmem:[#allocation19 + $0x50] sm:$0xf]
        %v3058 = vld [vmem:[#allocation19 + $0x54] sm:$0xf]
        %v3059 = vld [vmem:[#allocation19 + $0x58] sm:$0xf]
        %v3060 = vld [vmem:[#allocation19 + $0x5c] sm:$0xf]
        %v3061 = vld [vmem:[#allocation19 + $0x60] sm:$0xf]
        %v3062 = vld [vmem:[#allocation19 + $0x64] sm:$0xf]
        %v3063 = vld [vmem:[#allocation19 + $0x68] sm:$0xf]
        %v3064 = vld [vmem:[#allocation19 + $0x6c] sm:$0xf]
        %v3065 = vld [vmem:[#allocation19 + $0x70] sm:$0xf]
        %v3066 = vld [vmem:[#allocation19 + $0x74] sm:$0xf]
        %v3067 = vld [vmem:[#allocation19 + $0x78] sm:$0xf]
        %v3068 = vld [vmem:[#allocation19 + $0x7c] sm:$0xf]
        %v3069 = vld [vmem:[#allocation19 + $0x80] sm:$0xf]
        %v3070 = vld [vmem:[#allocation19 + $0x84] sm:$0xf]
        %v3071 = vld [vmem:[#allocation19 + $0x88] sm:$0xf]
        %v3072 = vld [vmem:[#allocation19 + $0x8c] sm:$0xf]
        %v3073 = vld [vmem:[#allocation19 + $0x90] sm:$0xf]
        %v3074 = vld [vmem:[#allocation19 + $0x94] sm:$0xf]
        %v3075 = vld [vmem:[#allocation19 + $0x98] sm:$0xf]
        %v3076 = vld [vmem:[#allocation19 + $0x9c] sm:$0xf]
        %v3077 = vld [vmem:[#allocation19 + $0xa0] sm:$0xf]
        %v3078 = vld [vmem:[#allocation19 + $0xa4] sm:$0xf]
        %v3079 = vld [vmem:[#allocation19 + $0xa8] sm:$0xf]
        %v3080 = vld [vmem:[#allocation19 + $0xac] sm:$0xf]
        %v3081 = vld [vmem:[#allocation19 + $0xb0] sm:$0xf]
        %v3082 = vld [vmem:[#allocation19 + $0xb4] sm:$0xf]
        %v3083 = vld [vmem:[#allocation19 + $0xb8] sm:$0xf]
        %v3084 = vld [vmem:[#allocation19 + $0xbc] sm:$0xf]
        %v3085 = vld [vmem:[#allocation20] sm:$0x1]
        %v3086 = vpack.c.bf16 %v3034, %v3033
        %v3087 = vpack.c.bf16 %v3036, %v3035
        %v3089 = vshrl.u32 %v3086, 16
        %v3091 = vrot.slane %v3089, 3
        %v3092 = vshll.u32 %v3086, 16
        %v3094 = vrot.slane %v3092, 4
        %v3095 = vor.u32 %v3091, %v3094
        %v3097 = vshrl.u32 %v3087, 16
        %v3099 = vrot.slane %v3097, 3
        %v3100 = vshll.u32 %v3087, 16
        %v3102 = vrot.slane %v3100, 4
        %v3103 = vor.u32 %v3099, %v3102
        %v3104 = vsel %vm1165, %v3095, %v3103
        %v3108 = vsel %vm1166, 0, %v3095
        %v3109 = vsel %vm1166, %v3103, 0
        %v3111 = vshrl.u32 %v3108, 16
        %v3113 = vrot.slane %v3111, 4
        %v3114 = vshll.u32 %v3108, 16
        %v3116 = vrot.slane %v3114, 5
        %v3117 = vor.u32 %v3113, %v3116
        %v3119 = vshrl.u32 %v3104, 16
        %v3121 = vrot.slane %v3119, 4
        %v3122 = vshll.u32 %v3104, 16
        %v3124 = vrot.slane %v3122, 5
        %v3125 = vor.u32 %v3121, %v3124
        %v3126 = vsel %vm1169, %v3117, %v3125
        %v3128 = vshrl.u32 %v3109, 16
        %v3130 = vrot.slane %v3128, 4
        %v3131 = vshll.u32 %v3109, 16
        %v3133 = vrot.slane %v3131, 5
        %v3134 = vor.u32 %v3130, %v3133
        %v3135 = vsel %vm1169, %v3125, %v3134
        %v3139 = vrot.slane %v3104, 1
        %v3140 = vrot.slane %v3109, 1
        %v3141 = vsel %vm1003, %v3139, %v3140
        %v3142 = vsel %vm1003, %v3140, %v1191
        %v3146 = vlaneseq
        %v3147 = vshrl.u32 %v3146, 7
        %v3148 = vsub.s32 0, %v3147
        %v3149 = vrot.slane %v3085, %v3148
        %v3199 = vunpack.c.l.b16 %v3037
        %v3200 = vunpack.c.l.b16 %v3038
        %v3201 = vunpack.c.l.b16 %v3039
        %v3202 = vunpack.c.l.b16 %v3040
        %v3203 = vunpack.c.l.b16 %v3041
        %v3204 = vunpack.c.l.b16 %v3042
        %v3205 = vunpack.c.l.b16 %v3043
        %v3206 = vunpack.c.l.b16 %v3044
        %v3207 = vunpack.c.l.b16 %v3045
        %v3208 = vunpack.c.l.b16 %v3046
        %v3209 = vunpack.c.l.b16 %v3047
        %v3210 = vunpack.c.l.b16 %v3048
        %v3211 = vunpack.c.l.b16 %v3049
        %v3212 = vunpack.c.l.b16 %v3050
        %v3213 = vunpack.c.l.b16 %v3051
        %v3214 = vunpack.c.l.b16 %v3052
        %v3215 = vunpack.c.l.b16 %v3053
        %v3216 = vunpack.c.l.b16 %v3054
        %v3217 = vunpack.c.l.b16 %v3055
        %v3218 = vunpack.c.l.b16 %v3056
        %v3219 = vunpack.c.l.b16 %v3057
        %v3220 = vunpack.c.l.b16 %v3058
        %v3221 = vunpack.c.l.b16 %v3059
        %v3222 = vunpack.c.l.b16 %v3060
        %v3223 = vunpack.c.l.b16 %v3061
        %v3224 = vunpack.c.l.b16 %v3062
        %v3225 = vunpack.c.l.b16 %v3063
        %v3226 = vunpack.c.l.b16 %v3064
        %v3227 = vunpack.c.l.b16 %v3065
        %v3228 = vunpack.c.l.b16 %v3066
        %v3229 = vunpack.c.l.b16 %v3067
        %v3230 = vunpack.c.l.b16 %v3068
        %v3231 = vunpack.c.l.b16 %v3069
        %v3232 = vunpack.c.l.b16 %v3070
        %v3233 = vunpack.c.l.b16 %v3071
        %v3234 = vunpack.c.l.b16 %v3072
        %v3235 = vunpack.c.l.b16 %v3073
        %v3236 = vunpack.c.l.b16 %v3074
        %v3237 = vunpack.c.l.b16 %v3075
        %v3238 = vunpack.c.l.b16 %v3076
        %v3239 = vunpack.c.l.b16 %v3077
        %v3240 = vunpack.c.l.b16 %v3078
        %v3241 = vunpack.c.l.b16 %v3079
        %v3242 = vunpack.c.l.b16 %v3080
        %v3243 = vunpack.c.l.b16 %v3081
        %v3244 = vunpack.c.l.b16 %v3082
        %v3245 = vunpack.c.l.b16 %v3083
        %v3246 = vunpack.c.l.b16 %v3084
        %v3247 = vpack.c.b16 %v3200, %v3199
        %v3248 = vpack.c.b16 %v3202, %v3201
        %v3249 = vpack.c.b16 %v3204, %v3203
        %v3250 = vpack.c.b16 %v3206, %v3205
        %v3251 = vpack.c.b16 %v3208, %v3207
        %v3252 = vpack.c.b16 %v3210, %v3209
        %v3253 = vpack.c.b16 %v3212, %v3211
        %v3254 = vpack.c.b16 %v3214, %v3213
        %v3255 = vpack.c.b16 %v3216, %v3215
        %v3256 = vpack.c.b16 %v3218, %v3217
        %v3257 = vpack.c.b16 %v3220, %v3219
        %v3258 = vpack.c.b16 %v3222, %v3221
        %v3259 = vpack.c.b16 %v3224, %v3223
        %v3260 = vpack.c.b16 %v3226, %v3225
        %v3261 = vpack.c.b16 %v3228, %v3227
        %v3262 = vpack.c.b16 %v3230, %v3229
        %v3263 = vpack.c.b16 %v3232, %v3231
        %v3264 = vpack.c.b16 %v3234, %v3233
        %v3265 = vpack.c.b16 %v3236, %v3235
        %v3266 = vpack.c.b16 %v3238, %v3237
        %v3267 = vpack.c.b16 %v3240, %v3239
        %v3268 = vpack.c.b16 %v3242, %v3241
        %v3269 = vpack.c.b16 %v3244, %v3243
        %v3270 = vpack.c.b16 %v3246, %v3245
        %3295 = vmatprep.subr.bf16.mxu0 0
        %3296 = vmatpush1.bf16.msra.mxu0 %v3247
        %3297 = vmatprep.subr.bf16.mxu0 0
        %3298 = vmatpush1.bf16.msra.mxu0 %v3248
        %3299 = vmatprep.subr.bf16.mxu0 0
        %3300 = vmatpush1.bf16.msra.mxu0 %v3249
        %3301 = vmatprep.subr.bf16.mxu0 0
        %3302 = vmatpush1.bf16.msra.mxu0 %v3250
        %3303 = vmatprep.subr.bf16.mxu0 0
        %3304 = vmatpush1.bf16.msra.mxu0 %v3251
        %3305 = vmatprep.subr.bf16.mxu0 0
        %3306 = vmatpush1.bf16.msra.mxu0 %v3252
        %3307 = vmatprep.subr.bf16.mxu0 0
        %3308 = vmatpush1.bf16.msra.mxu0 %v3253
        %3309 = vmatprep.subr.bf16.mxu0 0
        %3310 = vmatpush1.bf16.msra.mxu0 %v3254
        %3311 = vmatprep.subr.bf16.mxu0 0
        %3312 = vmatpush1.bf16.msra.mxu0 %v3255
        %3313 = vmatprep.subr.bf16.mxu0 0
        %3314 = vmatpush1.bf16.msra.mxu0 %v3256
        %3315 = vmatprep.subr.bf16.mxu0 0
        %3316 = vmatpush1.bf16.msra.mxu0 %v3257
        %3317 = vmatprep.subr.bf16.mxu0 0
        %3318 = vmatpush1.bf16.msra.mxu0 %v3258
        %3319 = vmatprep.subr.bf16.mxu0 0
        %3320 = vmatpush1.bf16.msra.mxu0 %v3259
        %3321 = vmatprep.subr.bf16.mxu0 0
        %3322 = vmatpush1.bf16.msra.mxu0 %v3260
        %3323 = vmatprep.subr.bf16.mxu0 0
        %3324 = vmatpush1.bf16.msra.mxu0 %v3261
        %3325 = vmatprep.subr.bf16.mxu0 0
        %3326 = vmatpush1.bf16.msra.mxu0 %v3262
        %3327 = vmatprep.mubr.bf16.mxu0 %v3126
        %3328 = vmatmul.mubr.bf16.gmra.mrb[0].mxu0 %v3108
        %v3329 = vpop.f32.mrb[0].mxu0
        %v3330 = vadd.f32 %v3149, %v3329
        %v3331 = vpop.f32.mrb[0].mxu0
        %v3332 = vpop.f32.mrb[0].mxu0
        %v3333 = vadd.f32 %v3149, %v3332
        %v3334 = vpop.f32.mrb[0].mxu0
        %3335 = vmatprep.mubr.bf16.mxu0 %v3135
        %3336 = vmatmul.mubr.bf16.gmra.mrb[0].mxu0 %v3104
        %v3337 = vpop.f32.mrb[0].mxu0
        %v3338 = vadd.f32 %v3149, %v3337
        %v3339 = vpop.f32.mrb[0].mxu0
        %v3340 = vpop.f32.mrb[0].mxu0
        %v3341 = vadd.f32 %v3149, %v3340
        %v3342 = vpop.f32.mrb[0].mxu0
        %3343 = vdwg.mxu0
        %3344 = vmatprep.subr.bf16.mxu0 0
        %3345 = vmatpush1.bf16.msra.mxu0 %v3263
        %3346 = vmatprep.subr.bf16.mxu0 0
        %3347 = vmatpush1.bf16.msra.mxu0 %v3264
        %3348 = vmatprep.subr.bf16.mxu0 0
        %3349 = vmatpush1.bf16.msra.mxu0 %v3265
        %3350 = vmatprep.subr.bf16.mxu0 0
        %3351 = vmatpush1.bf16.msra.mxu0 %v3266
        %3352 = vmatprep.subr.bf16.mxu0 0
        %3353 = vmatpush1.bf16.msra.mxu0 %v3267
        %3354 = vmatprep.subr.bf16.mxu0 0
        %3355 = vmatpush1.bf16.msra.mxu0 %v3268
        %3356 = vmatprep.subr.bf16.mxu0 0
        %3357 = vmatpush1.bf16.msra.mxu0 %v3269
        %3358 = vmatprep.subr.bf16.mxu0 0
        %3359 = vmatpush1.bf16.msra.mxu0 %v3270
        %3360 = vmatprep.subr.bf16.mxu0 0
        %3361 = vmatpush1.bf16.msra.mxu0 0
        %3362 = vmatprep.subr.bf16.mxu0 0
        %3363 = vmatpush1.bf16.msra.mxu0 0
        %3364 = vmatprep.subr.bf16.mxu0 0
        %3365 = vmatpush1.bf16.msra.mxu0 0
        %3366 = vmatprep.subr.bf16.mxu0 0
        %3367 = vmatpush1.bf16.msra.mxu0 0
        %3368 = vmatprep.subr.bf16.mxu0 0
        %3369 = vmatpush1.bf16.msra.mxu0 0
        %3370 = vmatprep.subr.bf16.mxu0 0
        %3371 = vmatpush1.bf16.msra.mxu0 0
        %3372 = vmatprep.subr.bf16.mxu0 0
        %3373 = vmatpush1.bf16.msra.mxu0 0
        %3374 = vmatprep.subr.bf16.mxu0 0
        %3375 = vmatpush1.bf16.msra.mxu0 0
        %3376 = vmatprep.mubr.bf16.mxu0 0
        %3377 = vmatmul.mubr.bf16.gmra.mrb[0].mxu0 %v3141
        %v3378 = vpop.f32.mrb[0].mxu0
        %v3379 = vadd.f32 %v3330, %v3378
        %v3380 = vpop.f32.mrb[0].mxu0
        %v3381 = vpop.f32.mrb[0].mxu0
        %v3382 = vadd.f32 %v3333, %v3381
        %v3383 = vpop.f32.mrb[0].mxu0
        %3384 = vmatprep.mubr.bf16.mxu0 0
        %3385 = vmatmul.mubr.bf16.gmra.mrb[0].mxu0 %v3142
        %v3386 = vpop.f32.mrb[0].mxu0
        %v3387 = vadd.f32 %v3338, %v3386
        %v3388 = vpop.f32.mrb[0].mxu0
        %v3389 = vpop.f32.mrb[0].mxu0
        %v3390 = vadd.f32 %v3341, %v3389
        %v3391 = vpop.f32.mrb[0].mxu0
        %3392 = vdwg.mxu0
        %v3393 = vmax.f32 %v3379, 0.0
        %v3394 = vmax.f32 %v3382, 0.0
        %v3395 = vmax.f32 %v3387, 0.0
        %v3396 = vmax.f32 %v3390, 0.0
        %v3397 = vpack.c.bf16 %v3394, %v3393
        %v3398 = vpack.c.bf16 %v3396, %v3395
        %v3399 = vld [vmem:[#allocation22] sm:$0xf]
        %v3400 = vld [vmem:[#allocation22 + $0x4] sm:$0xf]
        %v3401 = vld [vmem:[#allocation22 + $0x8] sm:$0xf]
        %v3402 = vld [vmem:[#allocation22 + $0xc] sm:$0xf]
        %v3403 = vld [vmem:[#allocation22 + $0x10] sm:$0xf]
        %v3404 = vld [vmem:[#allocation22 + $0x14] sm:$0xf]
        %v3405 = vld [vmem:[#allocation22 + $0x18] sm:$0xf]
        %v3406 = vld [vmem:[#allocation22 + $0x1c] sm:$0xf]
        %v3407 = vld [vmem:[#allocation22 + $0x20] sm:$0xf]
        %v3408 = vld [vmem:[#allocation22 + $0x24] sm:$0xf]
        %v3409 = vld [vmem:[#allocation22 + $0x28] sm:$0xf]
        %v3410 = vld [vmem:[#allocation22 + $0x2c] sm:$0xf]
        %v3411 = vld [vmem:[#allocation22 + $0x30] sm:$0xf]
        %v3412 = vld [vmem:[#allocation22 + $0x34] sm:$0xf]
        %v3413 = vld [vmem:[#allocation22 + $0x38] sm:$0xf]
        %v3414 = vld [vmem:[#allocation22 + $0x3c] sm:$0xf]
        %v3431 = vunpack.c.l.b16 %v3399
        %v3432 = vunpack.c.l.b16 %v3400
        %v3433 = vunpack.c.l.b16 %v3401
        %v3434 = vunpack.c.l.b16 %v3402
        %v3435 = vunpack.c.l.b16 %v3403
        %v3436 = vunpack.c.l.b16 %v3404
        %v3437 = vunpack.c.l.b16 %v3405
        %v3438 = vunpack.c.l.b16 %v3406
        %v3439 = vunpack.c.l.b16 %v3407
        %v3440 = vunpack.c.l.b16 %v3408
        %v3441 = vunpack.c.l.b16 %v3409
        %v3442 = vunpack.c.l.b16 %v3410
        %v3443 = vunpack.c.l.b16 %v3411
        %v3444 = vunpack.c.l.b16 %v3412
        %v3445 = vunpack.c.l.b16 %v3413
        %v3446 = vunpack.c.l.b16 %v3414
        %v3447 = vpack.c.b16 %v3432, %v3431
        %v3448 = vpack.c.b16 %v3434, %v3433
        %v3449 = vpack.c.b16 %v3436, %v3435
        %v3450 = vpack.c.b16 %v3438, %v3437
        %v3451 = vpack.c.b16 %v3440, %v3439
        %v3452 = vpack.c.b16 %v3442, %v3441
        %v3453 = vpack.c.b16 %v3444, %v3443
        %v3454 = vpack.c.b16 %v3446, %v3445
        %3463 = vmatprep.subr.bf16.mxu0 0
        %3464 = vmatpush1.bf16.msra.mxu0 %v3447
        %3465 = vmatprep.subr.bf16.mxu0 0
        %3466 = vmatpush1.bf16.msra.mxu0 %v3448
        %3467 = vmatprep.subr.bf16.mxu0 0
        %3468 = vmatpush1.bf16.msra.mxu0 %v3449
        %3469 = vmatprep.subr.bf16.mxu0 0
        %3470 = vmatpush1.bf16.msra.mxu0 %v3450
        %3471 = vmatprep.subr.bf16.mxu0 0
        %3472 = vmatpush1.bf16.msra.mxu0 %v3451
        %3473 = vmatprep.subr.bf16.mxu0 0
        %3474 = vmatpush1.bf16.msra.mxu0 %v3452
        %3475 = vmatprep.subr.bf16.mxu0 0
        %3476 = vmatpush1.bf16.msra.mxu0 %v3453
        %3477 = vmatprep.subr.bf16.mxu0 0
        %3478 = vmatpush1.bf16.msra.mxu0 %v3454
        %3479 = vmatprep.subr.bf16.mxu0 0
        %3480 = vmatpush1.bf16.msra.mxu0 0
        %3481 = vmatprep.subr.bf16.mxu0 0
        %3482 = vmatpush1.bf16.msra.mxu0 0
        %3483 = vmatprep.subr.bf16.mxu0 0
        %3484 = vmatpush1.bf16.msra.mxu0 0
        %3485 = vmatprep.subr.bf16.mxu0 0
        %3486 = vmatpush1.bf16.msra.mxu0 0
        %3487 = vmatprep.subr.bf16.mxu0 0
        %3488 = vmatpush1.bf16.msra.mxu0 0
        %3489 = vmatprep.subr.bf16.mxu0 0
        %3490 = vmatpush1.bf16.msra.mxu0 0
        %3491 = vmatprep.subr.bf16.mxu0 0
        %3492 = vmatpush1.bf16.msra.mxu0 0
        %3493 = vmatprep.subr.bf16.mxu0 0
        %3494 = vmatpush1.bf16.msra.mxu0 0
        %3495 = vmatprep.mubr.bf16.mxu0 0
        %3496 = vmatmul.mubr.bf16.gmra.mrb[0].mxu0 %v3397
        %v3497 = vpop.f32.mrb[0].mxu0
        %v3498 = vadd.f32 0.0, %v3497
        %v3499 = vpop.f32.mrb[0].mxu0
        %v3500 = vpop.f32.mrb[0].mxu0
        %v3501 = vadd.f32 0.0, %v3500
        %v3502 = vpop.f32.mrb[0].mxu0
        %3503 = vmatprep.mubr.bf16.mxu0 0
        %3504 = vmatmul.mubr.bf16.gmra.mrb[0].mxu0 %v3398
        %v3505 = vpop.f32.mrb[0].mxu0
        %v3506 = vadd.f32 0.0, %v3505
        %v3507 = vpop.f32.mrb[0].mxu0
        %v3508 = vpop.f32.mrb[0].mxu0
        %v3509 = vadd.f32 0.0, %v3508
        %v3510 = vpop.f32.mrb[0].mxu0
        %3511 = vdwg.mxu0
        %v3512 = vadd.f32 %v3015, %v3498
        %v3513 = vadd.f32 %v3020, %v3501
        %v3514 = vadd.f32 %v3025, %v3506
        %v3515 = vadd.f32 %v3030, %v3509
        %v3516 = vld [vmem:[#allocation23] sm:$0x1]
        %v3518 = vlaneseq
        %v3519 = vshrl.u32 %v3518, 7
        %v3520 = vsub.s32 0, %v3519
        %v3521 = vrot.slane %v3516, %v3520
        %v3523 = vadd.f32 %v3512, %v3521
        %v3524 = vadd.f32 %v3513, %v3521
        %v3525 = vadd.f32 %v3514, %v3521
        %v3526 = vadd.f32 %v3515, %v3521
        %v3527 = vmax.f32 %v3523, 0.0
        %v3528 = vmax.f32 %v3524, 0.0
        %v3529 = vmax.f32 %v3525, 0.0
        %v3530 = vmax.f32 %v3526, 0.0
        %s3531 = scalar_lea.vmem [#allocation19], 192
        %v3532 = vld [vmem:[%s3531] sm:$0xf]
        %v3533 = vld [vmem:[%s3531 + $0x4] sm:$0xf]
        %v3534 = vld [vmem:[%s3531 + $0x8] sm:$0xf]
        %v3535 = vld [vmem:[%s3531 + $0xc] sm:$0xf]
        %v3536 = vld [vmem:[%s3531 + $0x10] sm:$0xf]
        %v3537 = vld [vmem:[%s3531 + $0x14] sm:$0xf]
        %v3538 = vld [vmem:[%s3531 + $0x18] sm:$0xf]
        %v3539 = vld [vmem:[%s3531 + $0x1c] sm:$0xf]
        %v3540 = vld [vmem:[%s3531 + $0x20] sm:$0xf]
        %v3541 = vld [vmem:[%s3531 + $0x24] sm:$0xf]
        %v3542 = vld [vmem:[%s3531 + $0x28] sm:$0xf]
        %v3543 = vld [vmem:[%s3531 + $0x2c] sm:$0xf]
        %v3544 = vld [vmem:[%s3531 + $0x30] sm:$0xf]
        %v3545 = vld [vmem:[%s3531 + $0x34] sm:$0xf]
        %v3546 = vld [vmem:[%s3531 + $0x38] sm:$0xf]
        %v3547 = vld [vmem:[%s3531 + $0x3c] sm:$0xf]
        %v3548 = vld [vmem:[%s3531 + $0x40] sm:$0xf]
        %v3549 = vld [vmem:[%s3531 + $0x44] sm:$0xf]
        %v3550 = vld [vmem:[%s3531 + $0x48] sm:$0xf]
        %v3551 = vld [vmem:[%s3531 + $0x4c] sm:$0xf]
        %v3552 = vld [vmem:[%s3531 + $0x50] sm:$0xf]
        %v3553 = vld [vmem:[%s3531 + $0x54] sm:$0xf]
        %v3554 = vld [vmem:[%s3531 + $0x58] sm:$0xf]
        %v3555 = vld [vmem:[%s3531 + $0x5c] sm:$0xf]
        %v3556 = vld [vmem:[%s3531 + $0x60] sm:$0xf]
        %v3557 = vld [vmem:[%s3531 + $0x64] sm:$0xf]
        %v3558 = vld [vmem:[%s3531 + $0x68] sm:$0xf]
        %v3559 = vld [vmem:[%s3531 + $0x6c] sm:$0xf]
        %v3560 = vld [vmem:[%s3531 + $0x70] sm:$0xf]
        %v3561 = vld [vmem:[%s3531 + $0x74] sm:$0xf]
        %v3562 = vld [vmem:[%s3531 + $0x78] sm:$0xf]
        %v3563 = vld [vmem:[%s3531 + $0x7c] sm:$0xf]
        %v3564 = vld [vmem:[%s3531 + $0x80] sm:$0xf]
        %v3565 = vld [vmem:[%s3531 + $0x84] sm:$0xf]
        %v3566 = vld [vmem:[%s3531 + $0x88] sm:$0xf]
        %v3567 = vld [vmem:[%s3531 + $0x8c] sm:$0xf]
        %v3568 = vld [vmem:[%s3531 + $0x90] sm:$0xf]
        %v3569 = vld [vmem:[%s3531 + $0x94] sm:$0xf]
        %v3570 = vld [vmem:[%s3531 + $0x98] sm:$0xf]
        %v3571 = vld [vmem:[%s3531 + $0x9c] sm:$0xf]
        %v3572 = vld [vmem:[%s3531 + $0xa0] sm:$0xf]
        %v3573 = vld [vmem:[%s3531 + $0xa4] sm:$0xf]
        %v3574 = vld [vmem:[%s3531 + $0xa8] sm:$0xf]
        %v3575 = vld [vmem:[%s3531 + $0xac] sm:$0xf]
        %v3576 = vld [vmem:[%s3531 + $0xb0] sm:$0xf]
        %v3577 = vld [vmem:[%s3531 + $0xb4] sm:$0xf]
        %v3578 = vld [vmem:[%s3531 + $0xb8] sm:$0xf]
        %v3579 = vld [vmem:[%s3531 + $0xbc] sm:$0xf]
        %s3580 = scalar_lea.vmem [#allocation20], 1
        %v3581 = vld [vmem:[%s3580] sm:$0x1]
        %v3582 = vpack.c.bf16 %v3528, %v3527
        %v3583 = vpack.c.bf16 %v3530, %v3529
        %v3585 = vshrl.u32 %v3582, 16
        %v3587 = vrot.slane %v3585, 6
        %v3588 = vshll.u32 %v3582, 16
        %v3590 = vrot.slane %v3588, 7
        %v3591 = vor.u32 %v3587, %v3590
        %v3593 = vshrl.u32 %v3583, 16
        %v3595 = vrot.slane %v3593, 6
        %v3596 = vshll.u32 %v3583, 16
        %v3598 = vrot.slane %v3596, 7
        %v3599 = vor.u32 %v3595, %v3598
        %v3600 = vsel %vm1609, %v3591, %v3599
        %v3604 = vsel %vm1610, 0, %v3591
        %v3605 = vsel %vm1610, %v3599, 0
        %v3607 = vshrl.u32 %v3604, 16
        %v3609 = vrot.slane %v3607, 1
        %v3610 = vshll.u32 %v3604, 16
        %v3612 = vrot.slane %v3610, 2
        %v3613 = vor.u32 %v3609, %v3612
        %v3615 = vshrl.u32 %v3600, 16
        %v3617 = vrot.slane %v3615, 1
        %v3618 = vshll.u32 %v3600, 16
        %v3620 = vrot.slane %v3618, 2
        %v3621 = vor.u32 %v3617, %v3620
        %v3622 = vsel %vm1613, %v3613, %v3621
        %v3624 = vshrl.u32 %v3605, 16
        %v3626 = vrot.slane %v3624, 1
        %v3627 = vshll.u32 %v3605, 16
        %v3629 = vrot.slane %v3627, 2
        %v3630 = vor.u32 %v3626, %v3629
        %v3631 = vsel %vm1613, %v3621, %v3630
        %v3636 = vrot.slane %v3604, 3
        %v3637 = vrot.slane %v3600, 3
        %v3638 = vsel %vm1164, %v3636, %v3637
        %v3639 = vrot.slane %v3605, 3
        %v3640 = vsel %vm1164, %v3637, %v3639
        %v3644 = vlaneseq
        %v3645 = vshrl.u32 %v3644, 7
        %v3646 = vsub.s32 0, %v3645
        %v3647 = vrot.slane %v3581, %v3646
        %v3697 = vunpack.c.l.b16 %v3532
        %v3698 = vunpack.c.l.b16 %v3533
        %v3699 = vunpack.c.l.b16 %v3534
        %v3700 = vunpack.c.l.b16 %v3535
        %v3701 = vunpack.c.l.b16 %v3536
        %v3702 = vunpack.c.l.b16 %v3537
        %v3703 = vunpack.c.l.b16 %v3538
        %v3704 = vunpack.c.l.b16 %v3539
        %v3705 = vunpack.c.l.b16 %v3540
        %v3706 = vunpack.c.l.b16 %v3541
        %v3707 = vunpack.c.l.b16 %v3542
        %v3708 = vunpack.c.l.b16 %v3543
        %v3709 = vunpack.c.l.b16 %v3544
        %v3710 = vunpack.c.l.b16 %v3545
        %v3711 = vunpack.c.l.b16 %v3546
        %v3712 = vunpack.c.l.b16 %v3547
        %v3713 = vunpack.c.l.b16 %v3548
        %v3714 = vunpack.c.l.b16 %v3549
        %v3715 = vunpack.c.l.b16 %v3550
        %v3716 = vunpack.c.l.b16 %v3551
        %v3717 = vunpack.c.l.b16 %v3552
        %v3718 = vunpack.c.l.b16 %v3553
        %v3719 = vunpack.c.l.b16 %v3554
        %v3720 = vunpack.c.l.b16 %v3555
        %v3721 = vunpack.c.l.b16 %v3556
        %v3722 = vunpack.c.l.b16 %v3557
        %v3723 = vunpack.c.l.b16 %v3558
        %v3724 = vunpack.c.l.b16 %v3559
        %v3725 = vunpack.c.l.b16 %v3560
        %v3726 = vunpack.c.l.b16 %v3561
        %v3727 = vunpack.c.l.b16 %v3562
        %v3728 = vunpack.c.l.b16 %v3563
        %v3729 = vunpack.c.l.b16 %v3564
        %v3730 = vunpack.c.l.b16 %v3565
        %v3731 = vunpack.c.l.b16 %v3566
        %v3732 = vunpack.c.l.b16 %v3567
        %v3733 = vunpack.c.l.b16 %v3568
        %v3734 = vunpack.c.l.b16 %v3569
        %v3735 = vunpack.c.l.b16 %v3570
        %v3736 = vunpack.c.l.b16 %v3571
        %v3737 = vunpack.c.l.b16 %v3572
        %v3738 = vunpack.c.l.b16 %v3573
        %v3739 = vunpack.c.l.b16 %v3574
        %v3740 = vunpack.c.l.b16 %v3575
        %v3741 = vunpack.c.l.b16 %v3576
        %v3742 = vunpack.c.l.b16 %v3577
        %v3743 = vunpack.c.l.b16 %v3578
        %v3744 = vunpack.c.l.b16 %v3579
        %v3745 = vpack.c.b16 %v3698, %v3697
        %v3746 = vpack.c.b16 %v3700, %v3699
        %v3747 = vpack.c.b16 %v3702, %v3701
        %v3748 = vpack.c.b16 %v3704, %v3703
        %v3749 = vpack.c.b16 %v3706, %v3705
        %v3750 = vpack.c.b16 %v3708, %v3707
        %v3751 = vpack.c.b16 %v3710, %v3709
        %v3752 = vpack.c.b16 %v3712, %v3711
        %v3753 = vpack.c.b16 %v3714, %v3713
        %v3754 = vpack.c.b16 %v3716, %v3715
        %v3755 = vpack.c.b16 %v3718, %v3717
        %v3756 = vpack.c.b16 %v3720, %v3719
        %v3757 = vpack.c.b16 %v3722, %v3721
        %v3758 = vpack.c.b16 %v3724, %v3723
        %v3759 = vpack.c.b16 %v3726, %v3725
        %v3760 = vpack.c.b16 %v3728, %v3727
        %v3761 = vpack.c.b16 %v3730, %v3729
        %v3762 = vpack.c.b16 %v3732, %v3731
        %v3763 = vpack.c.b16 %v3734, %v3733
        %v3764 = vpack.c.b16 %v3736, %v3735
        %v3765 = vpack.c.b16 %v3738, %v3737
        %v3766 = vpack.c.b16 %v3740, %v3739
        %v3767 = vpack.c.b16 %v3742, %v3741
        %v3768 = vpack.c.b16 %v3744, %v3743
        %3793 = vmatprep.subr.bf16.mxu0 0
        %3794 = vmatpush1.bf16.msra.mxu0 %v3745
        %3795 = vmatprep.subr.bf16.mxu0 0
        %3796 = vmatpush1.bf16.msra.mxu0 %v3746
        %3797 = vmatprep.subr.bf16.mxu0 0
        %3798 = vmatpush1.bf16.msra.mxu0 %v3747
        %3799 = vmatprep.subr.bf16.mxu0 0
        %3800 = vmatpush1.bf16.msra.mxu0 %v3748
        %3801 = vmatprep.subr.bf16.mxu0 0
        %3802 = vmatpush1.bf16.msra.mxu0 %v3749
        %3803 = vmatprep.subr.bf16.mxu0 0
        %3804 = vmatpush1.bf16.msra.mxu0 %v3750
        %3805 = vmatprep.subr.bf16.mxu0 0
        %3806 = vmatpush1.bf16.msra.mxu0 %v3751
        %3807 = vmatprep.subr.bf16.mxu0 0
        %3808 = vmatpush1.bf16.msra.mxu0 %v3752
        %3809 = vmatprep.subr.bf16.mxu0 0
        %3810 = vmatpush1.bf16.msra.mxu0 %v3753
        %3811 = vmatprep.subr.bf16.mxu0 0
        %3812 = vmatpush1.bf16.msra.mxu0 %v3754
        %3813 = vmatprep.subr.bf16.mxu0 0
        %3814 = vmatpush1.bf16.msra.mxu0 %v3755
        %3815 = vmatprep.subr.bf16.mxu0 0
        %3816 = vmatpush1.bf16.msra.mxu0 %v3756
        %3817 = vmatprep.subr.bf16.mxu0 0
        %3818 = vmatpush1.bf16.msra.mxu0 %v3757
        %3819 = vmatprep.subr.bf16.mxu0 0
        %3820 = vmatpush1.bf16.msra.mxu0 %v3758
        %3821 = vmatprep.subr.bf16.mxu0 0
        %3822 = vmatpush1.bf16.msra.mxu0 %v3759
        %3823 = vmatprep.subr.bf16.mxu0 0
        %3824 = vmatpush1.bf16.msra.mxu0 %v3760
        %3825 = vmatprep.mubr.bf16.mxu0 %v3622
        %3826 = vmatmul.mubr.bf16.gmra.mrb[0].mxu0 %v3604
        %v3827 = vpop.f32.mrb[0].mxu0
        %v3828 = vadd.f32 %v3647, %v3827
        %v3829 = vpop.f32.mrb[0].mxu0
        %v3830 = vpop.f32.mrb[0].mxu0
        %v3831 = vadd.f32 %v3647, %v3830
        %v3832 = vpop.f32.mrb[0].mxu0
        %3833 = vmatprep.mubr.bf16.mxu0 %v3631
        %3834 = vmatmul.mubr.bf16.gmra.mrb[0].mxu0 %v3600
        %v3835 = vpop.f32.mrb[0].mxu0
        %v3836 = vadd.f32 %v3647, %v3835
        %v3837 = vpop.f32.mrb[0].mxu0
        %v3838 = vpop.f32.mrb[0].mxu0
        %v3839 = vadd.f32 %v3647, %v3838
        %v3840 = vpop.f32.mrb[0].mxu0
        %3841 = vdwg.mxu0
        %3842 = vmatprep.subr.bf16.mxu0 0
        %3843 = vmatpush1.bf16.msra.mxu0 %v3761
        %3844 = vmatprep.subr.bf16.mxu0 0
        %3845 = vmatpush1.bf16.msra.mxu0 %v3762
        %3846 = vmatprep.subr.bf16.mxu0 0
        %3847 = vmatpush1.bf16.msra.mxu0 %v3763
        %3848 = vmatprep.subr.bf16.mxu0 0
        %3849 = vmatpush1.bf16.msra.mxu0 %v3764
        %3850 = vmatprep.subr.bf16.mxu0 0
        %3851 = vmatpush1.bf16.msra.mxu0 %v3765
        %3852 = vmatprep.subr.bf16.mxu0 0
        %3853 = vmatpush1.bf16.msra.mxu0 %v3766
        %3854 = vmatprep.subr.bf16.mxu0 0
        %3855 = vmatpush1.bf16.msra.mxu0 %v3767
        %3856 = vmatprep.subr.bf16.mxu0 0
        %3857 = vmatpush1.bf16.msra.mxu0 %v3768
        %3858 = vmatprep.subr.bf16.mxu0 0
        %3859 = vmatpush1.bf16.msra.mxu0 0
        %3860 = vmatprep.subr.bf16.mxu0 0
        %3861 = vmatpush1.bf16.msra.mxu0 0
        %3862 = vmatprep.subr.bf16.mxu0 0
        %3863 = vmatpush1.bf16.msra.mxu0 0
        %3864 = vmatprep.subr.bf16.mxu0 0
        %3865 = vmatpush1.bf16.msra.mxu0 0
        %3866 = vmatprep.subr.bf16.mxu0 0
        %3867 = vmatpush1.bf16.msra.mxu0 0
        %3868 = vmatprep.subr.bf16.mxu0 0
        %3869 = vmatpush1.bf16.msra.mxu0 0
        %3870 = vmatprep.subr.bf16.mxu0 0
        %3871 = vmatpush1.bf16.msra.mxu0 0
        %3872 = vmatprep.subr.bf16.mxu0 0
        %3873 = vmatpush1.bf16.msra.mxu0 0
        %3874 = vmatprep.mubr.bf16.mxu0 0
        %3875 = vmatmul.mubr.bf16.gmra.mrb[0].mxu0 %v3638
        %v3876 = vpop.f32.mrb[0].mxu0
        %v3877 = vadd.f32 %v3828, %v3876
        %v3878 = vpop.f32.mrb[0].mxu0
        %v3879 = vpop.f32.mrb[0].mxu0
        %v3880 = vadd.f32 %v3831, %v3879
        %v3881 = vpop.f32.mrb[0].mxu0
        %3882 = vmatprep.mubr.bf16.mxu0 0
        %3883 = vmatmul.mubr.bf16.gmra.mrb[0].mxu0 %v3640
        %v3884 = vpop.f32.mrb[0].mxu0
        %v3885 = vadd.f32 %v3836, %v3884
        %v3886 = vpop.f32.mrb[0].mxu0
        %v3887 = vpop.f32.mrb[0].mxu0
        %v3888 = vadd.f32 %v3839, %v3887
        %v3889 = vpop.f32.mrb[0].mxu0
        %3890 = vdwg.mxu0
        %v3891 = vmax.f32 %v3877, 0.0
        %v3892 = vmax.f32 %v3880, 0.0
        %v3893 = vmax.f32 %v3885, 0.0
        %v3894 = vmax.f32 %v3888, 0.0
        %v3895 = vpack.c.bf16 %v3892, %v3891
        %v3896 = vpack.c.bf16 %v3894, %v3893
        %s3897 = scalar_lea.vmem [#allocation22], 64
        %v3898 = vld [vmem:[%s3897] sm:$0xf]
        %v3899 = vld [vmem:[%s3897 + $0x4] sm:$0xf]
        %v3900 = vld [vmem:[%s3897 + $0x8] sm:$0xf]
        %v3901 = vld [vmem:[%s3897 + $0xc] sm:$0xf]
        %v3902 = vld [vmem:[%s3897 + $0x10] sm:$0xf]
        %v3903 = vld [vmem:[%s3897 + $0x14] sm:$0xf]
        %v3904 = vld [vmem:[%s3897 + $0x18] sm:$0xf]
        %v3905 = vld [vmem:[%s3897 + $0x1c] sm:$0xf]
        %v3906 = vld [vmem:[%s3897 + $0x20] sm:$0xf]
        %v3907 = vld [vmem:[%s3897 + $0x24] sm:$0xf]
        %v3908 = vld [vmem:[%s3897 + $0x28] sm:$0xf]
        %v3909 = vld [vmem:[%s3897 + $0x2c] sm:$0xf]
        %v3910 = vld [vmem:[%s3897 + $0x30] sm:$0xf]
        %v3911 = vld [vmem:[%s3897 + $0x34] sm:$0xf]
        %v3912 = vld [vmem:[%s3897 + $0x38] sm:$0xf]
        %v3913 = vld [vmem:[%s3897 + $0x3c] sm:$0xf]
        %v3930 = vunpack.c.l.b16 %v3898
        %v3931 = vunpack.c.l.b16 %v3899
        %v3932 = vunpack.c.l.b16 %v3900
        %v3933 = vunpack.c.l.b16 %v3901
        %v3934 = vunpack.c.l.b16 %v3902
        %v3935 = vunpack.c.l.b16 %v3903
        %v3936 = vunpack.c.l.b16 %v3904
        %v3937 = vunpack.c.l.b16 %v3905
        %v3938 = vunpack.c.l.b16 %v3906
        %v3939 = vunpack.c.l.b16 %v3907
        %v3940 = vunpack.c.l.b16 %v3908
        %v3941 = vunpack.c.l.b16 %v3909
        %v3942 = vunpack.c.l.b16 %v3910
        %v3943 = vunpack.c.l.b16 %v3911
        %v3944 = vunpack.c.l.b16 %v3912
        %v3945 = vunpack.c.l.b16 %v3913
        %v3946 = vpack.c.b16 %v3931, %v3930
        %v3947 = vpack.c.b16 %v3933, %v3932
        %v3948 = vpack.c.b16 %v3935, %v3934
        %v3949 = vpack.c.b16 %v3937, %v3936
        %v3950 = vpack.c.b16 %v3939, %v3938
        %v3951 = vpack.c.b16 %v3941, %v3940
        %v3952 = vpack.c.b16 %v3943, %v3942
        %v3953 = vpack.c.b16 %v3945, %v3944
        %3962 = vmatprep.subr.bf16.mxu0 0
        %3963 = vmatpush1.bf16.msra.mxu0 %v3946
        %3964 = vmatprep.subr.bf16.mxu0 0
        %3965 = vmatpush1.bf16.msra.mxu0 %v3947
        %3966 = vmatprep.subr.bf16.mxu0 0
        %3967 = vmatpush1.bf16.msra.mxu0 %v3948
        %3968 = vmatprep.subr.bf16.mxu0 0
        %3969 = vmatpush1.bf16.msra.mxu0 %v3949
        %3970 = vmatprep.subr.bf16.mxu0 0
        %3971 = vmatpush1.bf16.msra.mxu0 %v3950
        %3972 = vmatprep.subr.bf16.mxu0 0
        %3973 = vmatpush1.bf16.msra.mxu0 %v3951
        %3974 = vmatprep.subr.bf16.mxu0 0
        %3975 = vmatpush1.bf16.msra.mxu0 %v3952
        %3976 = vmatprep.subr.bf16.mxu0 0
        %3977 = vmatpush1.bf16.msra.mxu0 %v3953
        %3978 = vmatprep.subr.bf16.mxu0 0
        %3979 = vmatpush1.bf16.msra.mxu0 0
        %3980 = vmatprep.subr.bf16.mxu0 0
        %3981 = vmatpush1.bf16.msra.mxu0 0
        %3982 = vmatprep.subr.bf16.mxu0 0
        %3983 = vmatpush1.bf16.msra.mxu0 0
        %3984 = vmatprep.subr.bf16.mxu0 0
        %3985 = vmatpush1.bf16.msra.mxu0 0
        %3986 = vmatprep.subr.bf16.mxu0 0
        %3987 = vmatpush1.bf16.msra.mxu0 0
        %3988 = vmatprep.subr.bf16.mxu0 0
        %3989 = vmatpush1.bf16.msra.mxu0 0
        %3990 = vmatprep.subr.bf16.mxu0 0
        %3991 = vmatpush1.bf16.msra.mxu0 0
        %3992 = vmatprep.subr.bf16.mxu0 0
        %3993 = vmatpush1.bf16.msra.mxu0 0
        %3994 = vmatprep.mubr.bf16.mxu0 0
        %3995 = vmatmul.mubr.bf16.gmra.mrb[0].mxu0 %v3895
        %v3996 = vpop.f32.mrb[0].mxu0
        %v3997 = vadd.f32 0.0, %v3996
        %v3998 = vpop.f32.mrb[0].mxu0
        %v3999 = vpop.f32.mrb[0].mxu0
        %v4000 = vadd.f32 0.0, %v3999
        %v4001 = vpop.f32.mrb[0].mxu0
        %4002 = vmatprep.mubr.bf16.mxu0 0
        %4003 = vmatmul.mubr.bf16.gmra.mrb[0].mxu0 %v3896
        %v4004 = vpop.f32.mrb[0].mxu0
        %v4005 = vadd.f32 0.0, %v4004
        %v4006 = vpop.f32.mrb[0].mxu0
        %v4007 = vpop.f32.mrb[0].mxu0
        %v4008 = vadd.f32 0.0, %v4007
        %v4009 = vpop.f32.mrb[0].mxu0
        %4010 = vdwg.mxu0
        %v4011 = vadd.f32 %v3523, %v3997
        %v4012 = vadd.f32 %v3524, %v4000
        %v4013 = vadd.f32 %v3525, %v4005
        %v4014 = vadd.f32 %v3526, %v4008
        %s4015 = scalar_lea.vmem [#allocation23], 1
        %v4016 = vld [vmem:[%s4015] sm:$0x1]
        %v4018 = vlaneseq
        %v4019 = vshrl.u32 %v4018, 7
        %v4020 = vsub.s32 0, %v4019
        %v4021 = vrot.slane %v4016, %v4020
        %v4023 = vadd.f32 %v4011, %v4021
        %v4024 = vadd.f32 %v4012, %v4021
        %v4025 = vadd.f32 %v4013, %v4021
        %v4026 = vadd.f32 %v4014, %v4021
        %v4027 = vmax.f32 %v4023, 0.0
        %v4028 = vmax.f32 %v4024, 0.0
        %v4029 = vmax.f32 %v4025, 0.0
        %v4030 = vmax.f32 %v4026, 0.0
        %s4031 = scalar_lea.vmem [#allocation19], 384
        %v4032 = vld [vmem:[%s4031] sm:$0xf]
        %v4033 = vld [vmem:[%s4031 + $0x4] sm:$0xf]
        %v4034 = vld [vmem:[%s4031 + $0x8] sm:$0xf]
        %v4035 = vld [vmem:[%s4031 + $0xc] sm:$0xf]
        %v4036 = vld [vmem:[%s4031 + $0x10] sm:$0xf]
        %v4037 = vld [vmem:[%s4031 + $0x14] sm:$0xf]
        %v4038 = vld [vmem:[%s4031 + $0x18] sm:$0xf]
        %v4039 = vld [vmem:[%s4031 + $0x1c] sm:$0xf]
        %v4040 = vld [vmem:[%s4031 + $0x20] sm:$0xf]
        %v4041 = vld [vmem:[%s4031 + $0x24] sm:$0xf]
        %v4042 = vld [vmem:[%s4031 + $0x28] sm:$0xf]
        %v4043 = vld [vmem:[%s4031 + $0x2c] sm:$0xf]
        %v4044 = vld [vmem:[%s4031 + $0x30] sm:$0xf]
        %v4045 = vld [vmem:[%s4031 + $0x34] sm:$0xf]
        %v4046 = vld [vmem:[%s4031 + $0x38] sm:$0xf]
        %v4047 = vld [vmem:[%s4031 + $0x3c] sm:$0xf]
        %v4048 = vld [vmem:[%s4031 + $0x40] sm:$0xf]
        %v4049 = vld [vmem:[%s4031 + $0x44] sm:$0xf]
        %v4050 = vld [vmem:[%s4031 + $0x48] sm:$0xf]
        %v4051 = vld [vmem:[%s4031 + $0x4c] sm:$0xf]
        %v4052 = vld [vmem:[%s4031 + $0x50] sm:$0xf]
        %v4053 = vld [vmem:[%s4031 + $0x54] sm:$0xf]
        %v4054 = vld [vmem:[%s4031 + $0x58] sm:$0xf]
        %v4055 = vld [vmem:[%s4031 + $0x5c] sm:$0xf]
        %v4056 = vld [vmem:[%s4031 + $0x60] sm:$0xf]
        %v4057 = vld [vmem:[%s4031 + $0x64] sm:$0xf]
        %v4058 = vld [vmem:[%s4031 + $0x68] sm:$0xf]
        %v4059 = vld [vmem:[%s4031 + $0x6c] sm:$0xf]
        %v4060 = vld [vmem:[%s4031 + $0x70] sm:$0xf]
        %v4061 = vld [vmem:[%s4031 + $0x74] sm:$0xf]
        %v4062 = vld [vmem:[%s4031 + $0x78] sm:$0xf]
        %v4063 = vld [vmem:[%s4031 + $0x7c] sm:$0xf]
        %v4064 = vld [vmem:[%s4031 + $0x80] sm:$0xf]
        %v4065 = vld [vmem:[%s4031 + $0x84] sm:$0xf]
        %v4066 = vld [vmem:[%s4031 + $0x88] sm:$0xf]
        %v4067 = vld [vmem:[%s4031 + $0x8c] sm:$0xf]
        %v4068 = vld [vmem:[%s4031 + $0x90] sm:$0xf]
        %v4069 = vld [vmem:[%s4031 + $0x94] sm:$0xf]
        %v4070 = vld [vmem:[%s4031 + $0x98] sm:$0xf]
        %v4071 = vld [vmem:[%s4031 + $0x9c] sm:$0xf]
        %v4072 = vld [vmem:[%s4031 + $0xa0] sm:$0xf]
        %v4073 = vld [vmem:[%s4031 + $0xa4] sm:$0xf]
        %v4074 = vld [vmem:[%s4031 + $0xa8] sm:$0xf]
        %v4075 = vld [vmem:[%s4031 + $0xac] sm:$0xf]
        %v4076 = vld [vmem:[%s4031 + $0xb0] sm:$0xf]
        %v4077 = vld [vmem:[%s4031 + $0xb4] sm:$0xf]
        %v4078 = vld [vmem:[%s4031 + $0xb8] sm:$0xf]
        %v4079 = vld [vmem:[%s4031 + $0xbc] sm:$0xf]
        %s4080 = scalar_lea.vmem [#allocation20], 2
        %v4081 = vld [vmem:[%s4080] sm:$0x1]
        %v4082 = vpack.c.bf16 %v4028, %v4027
        %v4083 = vpack.c.bf16 %v4030, %v4029
        %v4085 = vshrl.u32 %v4082, 16
        %v4087 = vrot.slane %v4085, 7
        %v4088 = vshll.u32 %v4082, 16
        %v4090 = vor.u32 %v4087, %v4088
        %v4092 = vshrl.u32 %v4083, 16
        %v4094 = vrot.slane %v4092, 7
        %v4095 = vshll.u32 %v4083, 16
        %v4097 = vor.u32 %v4094, %v4095
        %v4098 = vsel %vm982, %v4087, %v4097
        %v4102 = vsel %vm983, 0, %v4090
        %v4103 = vsel %vm983, %v4094, 0
        %v4105 = vshrl.u32 %v4102, 16
        %v4107 = vshll.u32 %v4102, 16
        %v4109 = vrot.slane %v4107, 1
        %v4110 = vor.u32 %v4105, %v4109
        %v4112 = vshll.u32 %v4098, 16
        %v4114 = vrot.slane %v4112, 1
        %v4115 = vsel %vm986, %v4110, %v4114
        %v4116 = vshrl.u32 %v4098, 16
        %v4118 = vor.u32 %v4116, %v4114
        %v4120 = vshll.u32 %v4103, 16
        %v4122 = vrot.slane %v4120, 1
        %v4123 = vsel %vm986, %v4118, %v4122
        %v4128 = vrot.slane %v4102, 1
        %v4129 = vrot.slane %v4098, 1
        %v4130 = vsel %vm1003, %v4128, %v4129
        %v4131 = vrot.slane %v4103, 1
        %v4132 = vsel %vm1003, %v4129, %v4131
        %v4136 = vlaneseq
        %v4137 = vshrl.u32 %v4136, 7
        %v4138 = vsub.s32 0, %v4137
        %v4139 = vrot.slane %v4081, %v4138
        %v4189 = vunpack.c.l.b16 %v4032
        %v4190 = vunpack.c.l.b16 %v4033
        %v4191 = vunpack.c.l.b16 %v4034
        %v4192 = vunpack.c.l.b16 %v4035
        %v4193 = vunpack.c.l.b16 %v4036
        %v4194 = vunpack.c.l.b16 %v4037
        %v4195 = vunpack.c.l.b16 %v4038
        %v4196 = vunpack.c.l.b16 %v4039
        %v4197 = vunpack.c.l.b16 %v4040
        %v4198 = vunpack.c.l.b16 %v4041
        %v4199 = vunpack.c.l.b16 %v4042
        %v4200 = vunpack.c.l.b16 %v4043
        %v4201 = vunpack.c.l.b16 %v4044
        %v4202 = vunpack.c.l.b16 %v4045
        %v4203 = vunpack.c.l.b16 %v4046
        %v4204 = vunpack.c.l.b16 %v4047
        %v4205 = vunpack.c.l.b16 %v4048
        %v4206 = vunpack.c.l.b16 %v4049
        %v4207 = vunpack.c.l.b16 %v4050
        %v4208 = vunpack.c.l.b16 %v4051
        %v4209 = vunpack.c.l.b16 %v4052
        %v4210 = vunpack.c.l.b16 %v4053
        %v4211 = vunpack.c.l.b16 %v4054
        %v4212 = vunpack.c.l.b16 %v4055
        %v4213 = vunpack.c.l.b16 %v4056
        %v4214 = vunpack.c.l.b16 %v4057
        %v4215 = vunpack.c.l.b16 %v4058
        %v4216 = vunpack.c.l.b16 %v4059
        %v4217 = vunpack.c.l.b16 %v4060
        %v4218 = vunpack.c.l.b16 %v4061
        %v4219 = vunpack.c.l.b16 %v4062
        %v4220 = vunpack.c.l.b16 %v4063
        %v4221 = vunpack.c.l.b16 %v4064
        %v4222 = vunpack.c.l.b16 %v4065
        %v4223 = vunpack.c.l.b16 %v4066
        %v4224 = vunpack.c.l.b16 %v4067
        %v4225 = vunpack.c.l.b16 %v4068
        %v4226 = vunpack.c.l.b16 %v4069
        %v4227 = vunpack.c.l.b16 %v4070
        %v4228 = vunpack.c.l.b16 %v4071
        %v4229 = vunpack.c.l.b16 %v4072
        %v4230 = vunpack.c.l.b16 %v4073
        %v4231 = vunpack.c.l.b16 %v4074
        %v4232 = vunpack.c.l.b16 %v4075
        %v4233 = vunpack.c.l.b16 %v4076
        %v4234 = vunpack.c.l.b16 %v4077
        %v4235 = vunpack.c.l.b16 %v4078
        %v4236 = vunpack.c.l.b16 %v4079
        %v4237 = vpack.c.b16 %v4190, %v4189
        %v4238 = vpack.c.b16 %v4192, %v4191
        %v4239 = vpack.c.b16 %v4194, %v4193
        %v4240 = vpack.c.b16 %v4196, %v4195
        %v4241 = vpack.c.b16 %v4198, %v4197
        %v4242 = vpack.c.b16 %v4200, %v4199
        %v4243 = vpack.c.b16 %v4202, %v4201
        %v4244 = vpack.c.b16 %v4204, %v4203
        %v4245 = vpack.c.b16 %v4206, %v4205
        %v4246 = vpack.c.b16 %v4208, %v4207
        %v4247 = vpack.c.b16 %v4210, %v4209
        %v4248 = vpack.c.b16 %v4212, %v4211
        %v4249 = vpack.c.b16 %v4214, %v4213
        %v4250 = vpack.c.b16 %v4216, %v4215
        %v4251 = vpack.c.b16 %v4218, %v4217
        %v4252 = vpack.c.b16 %v4220, %v4219
        %v4253 = vpack.c.b16 %v4222, %v4221
        %v4254 = vpack.c.b16 %v4224, %v4223
        %v4255 = vpack.c.b16 %v4226, %v4225
        %v4256 = vpack.c.b16 %v4228, %v4227
        %v4257 = vpack.c.b16 %v4230, %v4229
        %v4258 = vpack.c.b16 %v4232, %v4231
        %v4259 = vpack.c.b16 %v4234, %v4233
        %v4260 = vpack.c.b16 %v4236, %v4235
        %4285 = vmatprep.subr.bf16.mxu0 0
        %4286 = vmatpush1.bf16.msra.mxu0 %v4237
        %4287 = vmatprep.subr.bf16.mxu0 0
        %4288 = vmatpush1.bf16.msra.mxu0 %v4238
        %4289 = vmatprep.subr.bf16.mxu0 0
        %4290 = vmatpush1.bf16.msra.mxu0 %v4239
        %4291 = vmatprep.subr.bf16.mxu0 0
        %4292 = vmatpush1.bf16.msra.mxu0 %v4240
        %4293 = vmatprep.subr.bf16.mxu0 0
        %4294 = vmatpush1.bf16.msra.mxu0 %v4241
        %4295 = vmatprep.subr.bf16.mxu0 0
        %4296 = vmatpush1.bf16.msra.mxu0 %v4242
        %4297 = vmatprep.subr.bf16.mxu0 0
        %4298 = vmatpush1.bf16.msra.mxu0 %v4243
        %4299 = vmatprep.subr.bf16.mxu0 0
        %4300 = vmatpush1.bf16.msra.mxu0 %v4244
        %4301 = vmatprep.subr.bf16.mxu0 0
        %4302 = vmatpush1.bf16.msra.mxu0 %v4245
        %4303 = vmatprep.subr.bf16.mxu0 0
        %4304 = vmatpush1.bf16.msra.mxu0 %v4246
        %4305 = vmatprep.subr.bf16.mxu0 0
        %4306 = vmatpush1.bf16.msra.mxu0 %v4247
        %4307 = vmatprep.subr.bf16.mxu0 0
        %4308 = vmatpush1.bf16.msra.mxu0 %v4248
        %4309 = vmatprep.subr.bf16.mxu0 0
        %4310 = vmatpush1.bf16.msra.mxu0 %v4249
        %4311 = vmatprep.subr.bf16.mxu0 0
        %4312 = vmatpush1.bf16.msra.mxu0 %v4250
        %4313 = vmatprep.subr.bf16.mxu0 0
        %4314 = vmatpush1.bf16.msra.mxu0 %v4251
        %4315 = vmatprep.subr.bf16.mxu0 0
        %4316 = vmatpush1.bf16.msra.mxu0 %v4252
        %4317 = vmatprep.mubr.bf16.mxu0 %v4115
        %4318 = vmatmul.mubr.bf16.gmra.mrb[0].mxu0 %v4102
        %v4319 = vpop.f32.mrb[0].mxu0
        %v4320 = vadd.f32 %v4139, %v4319
        %v4321 = vpop.f32.mrb[0].mxu0
        %v4322 = vpop.f32.mrb[0].mxu0
        %v4323 = vadd.f32 %v4139, %v4322
        %v4324 = vpop.f32.mrb[0].mxu0
        %4325 = vmatprep.mubr.bf16.mxu0 %v4123
        %4326 = vmatmul.mubr.bf16.gmra.mrb[0].mxu0 %v4098
        %v4327 = vpop.f32.mrb[0].mxu0
        %v4328 = vadd.f32 %v4139, %v4327
        %v4329 = vpop.f32.mrb[0].mxu0
        %v4330 = vpop.f32.mrb[0].mxu0
        %v4331 = vadd.f32 %v4139, %v4330
        %v4332 = vpop.f32.mrb[0].mxu0
        %4333 = vdwg.mxu0
        %4334 = vmatprep.subr.bf16.mxu0 0
        %4335 = vmatpush1.bf16.msra.mxu0 %v4253
        %4336 = vmatprep.subr.bf16.mxu0 0
        %4337 = vmatpush1.bf16.msra.mxu0 %v4254
        %4338 = vmatprep.subr.bf16.mxu0 0
        %4339 = vmatpush1.bf16.msra.mxu0 %v4255
        %4340 = vmatprep.subr.bf16.mxu0 0
        %4341 = vmatpush1.bf16.msra.mxu0 %v4256
        %4342 = vmatprep.subr.bf16.mxu0 0
        %4343 = vmatpush1.bf16.msra.mxu0 %v4257
        %4344 = vmatprep.subr.bf16.mxu0 0
        %4345 = vmatpush1.bf16.msra.mxu0 %v4258
        %4346 = vmatprep.subr.bf16.mxu0 0
        %4347 = vmatpush1.bf16.msra.mxu0 %v4259
        %4348 = vmatprep.subr.bf16.mxu0 0
        %4349 = vmatpush1.bf16.msra.mxu0 %v4260
        %4350 = vmatprep.subr.bf16.mxu0 0
        %4351 = vmatpush1.bf16.msra.mxu0 0
        %4352 = vmatprep.subr.bf16.mxu0 0
        %4353 = vmatpush1.bf16.msra.mxu0 0
        %4354 = vmatprep.subr.bf16.mxu0 0
        %4355 = vmatpush1.bf16.msra.mxu0 0
        %4356 = vmatprep.subr.bf16.mxu0 0
        %4357 = vmatpush1.bf16.msra.mxu0 0
        %4358 = vmatprep.subr.bf16.mxu0 0
        %4359 = vmatpush1.bf16.msra.mxu0 0
        %4360 = vmatprep.subr.bf16.mxu0 0
        %4361 = vmatpush1.bf16.msra.mxu0 0
        %4362 = vmatprep.subr.bf16.mxu0 0
        %4363 = vmatpush1.bf16.msra.mxu0 0
        %4364 = vmatprep.subr.bf16.mxu0 0
        %4365 = vmatpush1.bf16.msra.mxu0 0
        %4366 = vmatprep.mubr.bf16.mxu0 0
        %4367 = vmatmul.mubr.bf16.gmra.mrb[0].mxu0 %v4130
        %v4368 = vpop.f32.mrb[0].mxu0
        %v4369 = vadd.f32 %v4320, %v4368
        %v4370 = vpop.f32.mrb[0].mxu0
        %v4371 = vpop.f32.mrb[0].mxu0
        %v4372 = vadd.f32 %v4323, %v4371
        %v4373 = vpop.f32.mrb[0].mxu0
        %4374 = vmatprep.mubr.bf16.mxu0 0
        %4375 = vmatmul.mubr.bf16.gmra.mrb[0].mxu0 %v4132
        %v4376 = vpop.f32.mrb[0].mxu0
        %v4377 = vadd.f32 %v4328, %v4376
        %v4378 = vpop.f32.mrb[0].mxu0
        %v4379 = vpop.f32.mrb[0].mxu0
        %v4380 = vadd.f32 %v4331, %v4379
        %v4381 = vpop.f32.mrb[0].mxu0
        %4382 = vdwg.mxu0
        %v4383 = vmax.f32 %v4369, 0.0
        %v4384 = vmax.f32 %v4372, 0.0
        %v4385 = vmax.f32 %v4377, 0.0
        %v4386 = vmax.f32 %v4380, 0.0
        %v4387 = vpack.c.bf16 %v4384, %v4383
        %v4388 = vpack.c.bf16 %v4386, %v4385
        %s4389 = scalar_lea.vmem [#allocation22], 128
        %v4390 = vld [vmem:[%s4389] sm:$0xf]
        %v4391 = vld [vmem:[%s4389 + $0x4] sm:$0xf]
        %v4392 = vld [vmem:[%s4389 + $0x8] sm:$0xf]
        %v4393 = vld [vmem:[%s4389 + $0xc] sm:$0xf]
        %v4394 = vld [vmem:[%s4389 + $0x10] sm:$0xf]
        %v4395 = vld [vmem:[%s4389 + $0x14] sm:$0xf]
        %v4396 = vld [vmem:[%s4389 + $0x18] sm:$0xf]
        %v4397 = vld [vmem:[%s4389 + $0x1c] sm:$0xf]
        %v4398 = vld [vmem:[%s4389 + $0x20] sm:$0xf]
        %v4399 = vld [vmem:[%s4389 + $0x24] sm:$0xf]
        %v4400 = vld [vmem:[%s4389 + $0x28] sm:$0xf]
        %v4401 = vld [vmem:[%s4389 + $0x2c] sm:$0xf]
        %v4402 = vld [vmem:[%s4389 + $0x30] sm:$0xf]
        %v4403 = vld [vmem:[%s4389 + $0x34] sm:$0xf]
        %v4404 = vld [vmem:[%s4389 + $0x38] sm:$0xf]
        %v4405 = vld [vmem:[%s4389 + $0x3c] sm:$0xf]
        %v4422 = vunpack.c.l.b16 %v4390
        %v4423 = vunpack.c.l.b16 %v4391
        %v4424 = vunpack.c.l.b16 %v4392
        %v4425 = vunpack.c.l.b16 %v4393
        %v4426 = vunpack.c.l.b16 %v4394
        %v4427 = vunpack.c.l.b16 %v4395
        %v4428 = vunpack.c.l.b16 %v4396
        %v4429 = vunpack.c.l.b16 %v4397
        %v4430 = vunpack.c.l.b16 %v4398
        %v4431 = vunpack.c.l.b16 %v4399
        %v4432 = vunpack.c.l.b16 %v4400
        %v4433 = vunpack.c.l.b16 %v4401
        %v4434 = vunpack.c.l.b16 %v4402
        %v4435 = vunpack.c.l.b16 %v4403
        %v4436 = vunpack.c.l.b16 %v4404
        %v4437 = vunpack.c.l.b16 %v4405
        %v4438 = vpack.c.b16 %v4423, %v4422
        %v4439 = vpack.c.b16 %v4425, %v4424
        %v4440 = vpack.c.b16 %v4427, %v4426
        %v4441 = vpack.c.b16 %v4429, %v4428
        %v4442 = vpack.c.b16 %v4431, %v4430
        %v4443 = vpack.c.b16 %v4433, %v4432
        %v4444 = vpack.c.b16 %v4435, %v4434
        %v4445 = vpack.c.b16 %v4437, %v4436
        %4454 = vmatprep.subr.bf16.mxu0 0
        %4455 = vmatpush1.bf16.msra.mxu0 %v4438
        %4456 = vmatprep.subr.bf16.mxu0 0
        %4457 = vmatpush1.bf16.msra.mxu0 %v4439
        %4458 = vmatprep.subr.bf16.mxu0 0
        %4459 = vmatpush1.bf16.msra.mxu0 %v4440
        %4460 = vmatprep.subr.bf16.mxu0 0
        %4461 = vmatpush1.bf16.msra.mxu0 %v4441
        %4462 = vmatprep.subr.bf16.mxu0 0
        %4463 = vmatpush1.bf16.msra.mxu0 %v4442
        %4464 = vmatprep.subr.bf16.mxu0 0
        %4465 = vmatpush1.bf16.msra.mxu0 %v4443
        %4466 = vmatprep.subr.bf16.mxu0 0
        %4467 = vmatpush1.bf16.msra.mxu0 %v4444
        %4468 = vmatprep.subr.bf16.mxu0 0
        %4469 = vmatpush1.bf16.msra.mxu0 %v4445
        %4470 = vmatprep.subr.bf16.mxu0 0
        %4471 = vmatpush1.bf16.msra.mxu0 0
        %4472 = vmatprep.subr.bf16.mxu0 0
        %4473 = vmatpush1.bf16.msra.mxu0 0
        %4474 = vmatprep.subr.bf16.mxu0 0
        %4475 = vmatpush1.bf16.msra.mxu0 0
        %4476 = vmatprep.subr.bf16.mxu0 0
        %4477 = vmatpush1.bf16.msra.mxu0 0
        %4478 = vmatprep.subr.bf16.mxu0 0
        %4479 = vmatpush1.bf16.msra.mxu0 0
        %4480 = vmatprep.subr.bf16.mxu0 0
        %4481 = vmatpush1.bf16.msra.mxu0 0
        %4482 = vmatprep.subr.bf16.mxu0 0
        %4483 = vmatpush1.bf16.msra.mxu0 0
        %4484 = vmatprep.subr.bf16.mxu0 0
        %4485 = vmatpush1.bf16.msra.mxu0 0
        %4486 = vmatprep.mubr.bf16.mxu0 0
        %4487 = vmatmul.mubr.bf16.gmra.mrb[0].mxu0 %v4387
        %v4488 = vpop.f32.mrb[0].mxu0
        %v4489 = vadd.f32 0.0, %v4488
        %v4490 = vpop.f32.mrb[0].mxu0
        %v4491 = vpop.f32.mrb[0].mxu0
        %v4492 = vadd.f32 0.0, %v4491
        %v4493 = vpop.f32.mrb[0].mxu0
        %4494 = vmatprep.mubr.bf16.mxu0 0
        %4495 = vmatmul.mubr.bf16.gmra.mrb[0].mxu0 %v4388
        %v4496 = vpop.f32.mrb[0].mxu0
        %v4497 = vadd.f32 0.0, %v4496
        %v4498 = vpop.f32.mrb[0].mxu0
        %v4499 = vpop.f32.mrb[0].mxu0
        %v4500 = vadd.f32 0.0, %v4499
        %v4501 = vpop.f32.mrb[0].mxu0
        %4502 = vdwg.mxu0
        %v4503 = vadd.f32 %v4023, %v4489
        %v4504 = vadd.f32 %v4024, %v4492
        %v4505 = vadd.f32 %v4025, %v4497
        %v4506 = vadd.f32 %v4026, %v4500
        %s4507 = scalar_lea.vmem [#allocation23], 2
        %v4508 = vld [vmem:[%s4507] sm:$0x1]
        %v4510 = vlaneseq
        %v4511 = vshrl.u32 %v4510, 7
        %v4512 = vsub.s32 0, %v4511
        %v4513 = vrot.slane %v4508, %v4512
        %v4515 = vadd.f32 %v4503, %v4513
        %v4516 = vadd.f32 %v4504, %v4513
        %v4517 = vadd.f32 %v4505, %v4513
        %v4518 = vadd.f32 %v4506, %v4513
        %v4519 = vpack.c.bf16 %v4516, %v4515
        %v4520 = vpack.c.bf16 %v4518, %v4517
        %v4522 = vshrl.u32 %v4519, 16
        %v4524 = vrot.slane %v4522, 7
        %v4525 = vshll.u32 %v4519, 16
        %v4527 = vor.u32 %v4524, %v4525
        %v4529 = vshrl.u32 %v4520, 16
        %v4531 = vrot.slane %v4529, 7
        %v4532 = vshll.u32 %v4520, 16
        %v4534 = vor.u32 %v4531, %v4532
        %v4535 = vsel %vm982, %v4524, %v4534
        %v4539 = vsel %vm983, 0, %v4527
        %v4540 = vsel %vm983, %v4531, 0
        %v4541 = vld [vmem:[#allocation28] sm:$0x1]
        %v4543 = vshrl.u32 %v4539, 16
        %v4545 = vshll.u32 %v4539, 16
        %v4547 = vrot.slane %v4545, 1
        %v4548 = vor.u32 %v4543, %v4547
        %v4550 = vshll.u32 %v4535, 16
        %v4552 = vrot.slane %v4550, 1
        %v4553 = vsel %vm986, %v4548, %v4552
        %v4554 = vshrl.u32 %v4535, 16
        %v4556 = vor.u32 %v4554, %v4552
        %v4558 = vshll.u32 %v4540, 16
        %v4560 = vrot.slane %v4558, 1
        %v4561 = vsel %vm986, %v4556, %v4560
        %v4564 = vld [vmem:[#allocation25] sm:$0xf]
        %v4565 = vld [vmem:[#allocation25 + $0x4] sm:$0xf]
        %v4566 = vld [vmem:[#allocation25 + $0x8] sm:$0xf]
        %v4567 = vld [vmem:[#allocation25 + $0xc] sm:$0xf]
        %v4568 = vld [vmem:[#allocation25 + $0x10] sm:$0xf]
        %v4569 = vld [vmem:[#allocation25 + $0x14] sm:$0xf]
        %v4570 = vld [vmem:[#allocation25 + $0x18] sm:$0xf]
        %v4571 = vld [vmem:[#allocation25 + $0x1c] sm:$0xf]
        %v4572 = vld [vmem:[#allocation25 + $0x20] sm:$0xf]
        %v4573 = vld [vmem:[#allocation25 + $0x24] sm:$0xf]
        %v4574 = vld [vmem:[#allocation25 + $0x28] sm:$0xf]
        %v4575 = vld [vmem:[#allocation25 + $0x2c] sm:$0xf]
        %v4576 = vld [vmem:[#allocation25 + $0x30] sm:$0xf]
        %v4577 = vld [vmem:[#allocation25 + $0x34] sm:$0xf]
        %v4578 = vld [vmem:[#allocation25 + $0x38] sm:$0xf]
        %v4579 = vld [vmem:[#allocation25 + $0x3c] sm:$0xf]
        %v4580 = vld [vmem:[#allocation25 + $0x40] sm:$0xf]
        %v4581 = vld [vmem:[#allocation25 + $0x44] sm:$0xf]
        %v4582 = vld [vmem:[#allocation25 + $0x48] sm:$0xf]
        %v4583 = vld [vmem:[#allocation25 + $0x4c] sm:$0xf]
        %v4584 = vld [vmem:[#allocation25 + $0x50] sm:$0xf]
        %v4585 = vld [vmem:[#allocation25 + $0x54] sm:$0xf]
        %v4586 = vld [vmem:[#allocation25 + $0x58] sm:$0xf]
        %v4587 = vld [vmem:[#allocation25 + $0x5c] sm:$0xf]
        %v4588 = vld [vmem:[#allocation25 + $0x60] sm:$0xf]
        %v4589 = vld [vmem:[#allocation25 + $0x64] sm:$0xf]
        %v4590 = vld [vmem:[#allocation25 + $0x68] sm:$0xf]
        %v4591 = vld [vmem:[#allocation25 + $0x6c] sm:$0xf]
        %v4592 = vld [vmem:[#allocation25 + $0x70] sm:$0xf]
        %v4593 = vld [vmem:[#allocation25 + $0x74] sm:$0xf]
        %v4594 = vld [vmem:[#allocation25 + $0x78] sm:$0xf]
        %v4595 = vld [vmem:[#allocation25 + $0x7c] sm:$0xf]
        %v4597 = vlaneseq
        %v4598 = vshrl.u32 %v4597, 7
        %v4599 = vsub.s32 0, %v4598
        %v4600 = vrot.slane %v4541, %v4599
        %v4634 = vunpack.c.l.b16 %v4564
        %v4635 = vunpack.c.l.b16 %v4565
        %v4636 = vunpack.c.l.b16 %v4566
        %v4637 = vunpack.c.l.b16 %v4567
        %v4638 = vunpack.c.l.b16 %v4568
        %v4639 = vunpack.c.l.b16 %v4569
        %v4640 = vunpack.c.l.b16 %v4570
        %v4641 = vunpack.c.l.b16 %v4571
        %v4642 = vunpack.c.l.b16 %v4572
        %v4643 = vunpack.c.l.b16 %v4573
        %v4644 = vunpack.c.l.b16 %v4574
        %v4645 = vunpack.c.l.b16 %v4575
        %v4646 = vunpack.c.l.b16 %v4576
        %v4647 = vunpack.c.l.b16 %v4577
        %v4648 = vunpack.c.l.b16 %v4578
        %v4649 = vunpack.c.l.b16 %v4579
        %v4650 = vunpack.c.l.b16 %v4580
        %v4651 = vunpack.c.l.b16 %v4581
        %v4652 = vunpack.c.l.b16 %v4582
        %v4653 = vunpack.c.l.b16 %v4583
        %v4654 = vunpack.c.l.b16 %v4584
        %v4655 = vunpack.c.l.b16 %v4585
        %v4656 = vunpack.c.l.b16 %v4586
        %v4657 = vunpack.c.l.b16 %v4587
        %v4658 = vunpack.c.l.b16 %v4588
        %v4659 = vunpack.c.l.b16 %v4589
        %v4660 = vunpack.c.l.b16 %v4590
        %v4661 = vunpack.c.l.b16 %v4591
        %v4662 = vunpack.c.l.b16 %v4592
        %v4663 = vunpack.c.l.b16 %v4593
        %v4664 = vunpack.c.l.b16 %v4594
        %v4665 = vunpack.c.l.b16 %v4595
        %v4666 = vpack.c.b16 %v4635, %v4634
        %v4667 = vpack.c.b16 %v4637, %v4636
        %v4668 = vpack.c.b16 %v4639, %v4638
        %v4669 = vpack.c.b16 %v4641, %v4640
        %v4670 = vpack.c.b16 %v4643, %v4642
        %v4671 = vpack.c.b16 %v4645, %v4644
        %v4672 = vpack.c.b16 %v4647, %v4646
        %v4673 = vpack.c.b16 %v4649, %v4648
        %v4674 = vpack.c.b16 %v4651, %v4650
        %v4675 = vpack.c.b16 %v4653, %v4652
        %v4676 = vpack.c.b16 %v4655, %v4654
        %v4677 = vpack.c.b16 %v4657, %v4656
        %v4678 = vpack.c.b16 %v4659, %v4658
        %v4679 = vpack.c.b16 %v4661, %v4660
        %v4680 = vpack.c.b16 %v4663, %v4662
        %v4681 = vpack.c.b16 %v4665, %v4664
        %4698 = vmatprep.subr.bf16.mxu0 0
        %4699 = vmatpush1.bf16.msra.mxu0 %v4666
        %4700 = vmatprep.subr.bf16.mxu0 0
        %4701 = vmatpush1.bf16.msra.mxu0 %v4667
        %4702 = vmatprep.subr.bf16.mxu0 0
        %4703 = vmatpush1.bf16.msra.mxu0 %v4668
        %4704 = vmatprep.subr.bf16.mxu0 0
        %4705 = vmatpush1.bf16.msra.mxu0 %v4669
        %4706 = vmatprep.subr.bf16.mxu0 0
        %4707 = vmatpush1.bf16.msra.mxu0 %v4670
        %4708 = vmatprep.subr.bf16.mxu0 0
        %4709 = vmatpush1.bf16.msra.mxu0 %v4671
        %4710 = vmatprep.subr.bf16.mxu0 0
        %4711 = vmatpush1.bf16.msra.mxu0 %v4672
        %4712 = vmatprep.subr.bf16.mxu0 0
        %4713 = vmatpush1.bf16.msra.mxu0 %v4673
        %4714 = vmatprep.subr.bf16.mxu0 0
        %4715 = vmatpush1.bf16.msra.mxu0 %v4674
        %4716 = vmatprep.subr.bf16.mxu0 0
        %4717 = vmatpush1.bf16.msra.mxu0 %v4675
        %4718 = vmatprep.subr.bf16.mxu0 0
        %4719 = vmatpush1.bf16.msra.mxu0 %v4676
        %4720 = vmatprep.subr.bf16.mxu0 0
        %4721 = vmatpush1.bf16.msra.mxu0 %v4677
        %4722 = vmatprep.subr.bf16.mxu0 0
        %4723 = vmatpush1.bf16.msra.mxu0 %v4678
        %4724 = vmatprep.subr.bf16.mxu0 0
        %4725 = vmatpush1.bf16.msra.mxu0 %v4679
        %4726 = vmatprep.subr.bf16.mxu0 0
        %4727 = vmatpush1.bf16.msra.mxu0 %v4680
        %4728 = vmatprep.subr.bf16.mxu0 0
        %4729 = vmatpush1.bf16.msra.mxu0 %v4681
        %4730 = vmatprep.mubr.bf16.mxu0 %v4553
        %4731 = vmatmul.mubr.bf16.gmra.mrb[0].mxu0 %v4539
        %v4732 = vpop.f32.mrb[0].mxu0
        %v4733 = vadd.f32 %v4600, %v4732
        %v4734 = vpop.f32.mrb[0].mxu0
        %v4735 = vpop.f32.mrb[0].mxu0
        %v4736 = vadd.f32 %v4600, %v4735
        %v4737 = vpop.f32.mrb[0].mxu0
        %4738 = vmatprep.mubr.bf16.mxu0 %v4561
        %4739 = vmatmul.mubr.bf16.gmra.mrb[0].mxu0 %v4535
        %v4740 = vpop.f32.mrb[0].mxu0
        %v4741 = vadd.f32 %v4600, %v4740
        %v4742 = vpop.f32.mrb[0].mxu0
        %v4743 = vpop.f32.mrb[0].mxu0
        %v4744 = vadd.f32 %v4600, %v4743
        %v4745 = vpop.f32.mrb[0].mxu0
        %4746 = vdwg.mxu0
        %v4747 = vshrl.u32 %v4540, 16
        %v4749 = vld [vmem:[#allocation26] sm:$0xf]
        %v4750 = vld [vmem:[#allocation26 + $0x4] sm:$0xf]
        %v4751 = vld [vmem:[#allocation26 + $0x8] sm:$0xf]
        %v4752 = vld [vmem:[#allocation26 + $0xc] sm:$0xf]
        %v4753 = vld [vmem:[#allocation26 + $0x10] sm:$0xf]
        %v4754 = vld [vmem:[#allocation26 + $0x14] sm:$0xf]
        %v4755 = vld [vmem:[#allocation26 + $0x18] sm:$0xf]
        %v4756 = vld [vmem:[#allocation26 + $0x1c] sm:$0xf]
        %v4757 = vld [vmem:[#allocation26 + $0x20] sm:$0xf]
        %v4758 = vld [vmem:[#allocation26 + $0x24] sm:$0xf]
        %v4759 = vld [vmem:[#allocation26 + $0x28] sm:$0xf]
        %v4760 = vld [vmem:[#allocation26 + $0x2c] sm:$0xf]
        %v4761 = vld [vmem:[#allocation26 + $0x30] sm:$0xf]
        %v4762 = vld [vmem:[#allocation26 + $0x34] sm:$0xf]
        %v4763 = vld [vmem:[#allocation26 + $0x38] sm:$0xf]
        %v4764 = vld [vmem:[#allocation26 + $0x3c] sm:$0xf]
        %v4765 = vld [vmem:[#allocation26 + $0x40] sm:$0xf]
        %v4766 = vld [vmem:[#allocation26 + $0x44] sm:$0xf]
        %v4767 = vld [vmem:[#allocation26 + $0x48] sm:$0xf]
        %v4768 = vld [vmem:[#allocation26 + $0x4c] sm:$0xf]
        %v4769 = vld [vmem:[#allocation26 + $0x50] sm:$0xf]
        %v4770 = vld [vmem:[#allocation26 + $0x54] sm:$0xf]
        %v4771 = vld [vmem:[#allocation26 + $0x58] sm:$0xf]
        %v4772 = vld [vmem:[#allocation26 + $0x5c] sm:$0xf]
        %v4773 = vld [vmem:[#allocation26 + $0x60] sm:$0xf]
        %v4774 = vld [vmem:[#allocation26 + $0x64] sm:$0xf]
        %v4775 = vld [vmem:[#allocation26 + $0x68] sm:$0xf]
        %v4776 = vld [vmem:[#allocation26 + $0x6c] sm:$0xf]
        %v4777 = vld [vmem:[#allocation26 + $0x70] sm:$0xf]
        %v4778 = vld [vmem:[#allocation26 + $0x74] sm:$0xf]
        %v4779 = vld [vmem:[#allocation26 + $0x78] sm:$0xf]
        %v4780 = vld [vmem:[#allocation26 + $0x7c] sm:$0xf]
        %v4782 = vshrl.u32 %v4553, 16
        %v4784 = vshll.u32 %v4553, 16
        %v4786 = vrot.slane %v4784, 1
        %v4787 = vor.u32 %v4782, %v4786
        %v4789 = vshll.u32 %v4561, 16
        %v4791 = vrot.slane %v4789, 1
        %v4792 = vsel %vm986, %v4787, %v4791
        %v4793 = vshrl.u32 %v4561, 16
        %v4795 = vor.u32 %v4793, %v4791
        %v4797 = vshll.u32 %v4747, 16
        %v4799 = vrot.slane %v4797, 1
        %v4800 = vsel %vm986, %v4795, %v4799
        %v4835 = vunpack.c.l.b16 %v4749
        %v4836 = vunpack.c.l.b16 %v4750
        %v4837 = vunpack.c.l.b16 %v4751
        %v4838 = vunpack.c.l.b16 %v4752
        %v4839 = vunpack.c.l.b16 %v4753
        %v4840 = vunpack.c.l.b16 %v4754
        %v4841 = vunpack.c.l.b16 %v4755
        %v4842 = vunpack.c.l.b16 %v4756
        %v4843 = vunpack.c.l.b16 %v4757
        %v4844 = vunpack.c.l.b16 %v4758
        %v4845 = vunpack.c.l.b16 %v4759
        %v4846 = vunpack.c.l.b16 %v4760
        %v4847 = vunpack.c.l.b16 %v4761
        %v4848 = vunpack.c.l.b16 %v4762
        %v4849 = vunpack.c.l.b16 %v4763
        %v4850 = vunpack.c.l.b16 %v4764
        %v4851 = vunpack.c.l.b16 %v4765
        %v4852 = vunpack.c.l.b16 %v4766
        %v4853 = vunpack.c.l.b16 %v4767
        %v4854 = vunpack.c.l.b16 %v4768
        %v4855 = vunpack.c.l.b16 %v4769
        %v4856 = vunpack.c.l.b16 %v4770
        %v4857 = vunpack.c.l.b16 %v4771
        %v4858 = vunpack.c.l.b16 %v4772
        %v4859 = vunpack.c.l.b16 %v4773
        %v4860 = vunpack.c.l.b16 %v4774
        %v4861 = vunpack.c.l.b16 %v4775
        %v4862 = vunpack.c.l.b16 %v4776
        %v4863 = vunpack.c.l.b16 %v4777
        %v4864 = vunpack.c.l.b16 %v4778
        %v4865 = vunpack.c.l.b16 %v4779
        %v4866 = vunpack.c.l.b16 %v4780
        %v4867 = vpack.c.b16 %v4836, %v4835
        %v4868 = vpack.c.b16 %v4838, %v4837
        %v4869 = vpack.c.b16 %v4840, %v4839
        %v4870 = vpack.c.b16 %v4842, %v4841
        %v4871 = vpack.c.b16 %v4844, %v4843
        %v4872 = vpack.c.b16 %v4846, %v4845
        %v4873 = vpack.c.b16 %v4848, %v4847
        %v4874 = vpack.c.b16 %v4850, %v4849
        %v4875 = vpack.c.b16 %v4852, %v4851
        %v4876 = vpack.c.b16 %v4854, %v4853
        %v4877 = vpack.c.b16 %v4856, %v4855
        %v4878 = vpack.c.b16 %v4858, %v4857
        %v4879 = vpack.c.b16 %v4860, %v4859
        %v4880 = vpack.c.b16 %v4862, %v4861
        %v4881 = vpack.c.b16 %v4864, %v4863
        %v4882 = vpack.c.b16 %v4866, %v4865
        %4899 = vmatprep.subr.bf16.mxu0 0
        %4900 = vmatpush1.bf16.msra.mxu0 %v4867
        %4901 = vmatprep.subr.bf16.mxu0 0
        %4902 = vmatpush1.bf16.msra.mxu0 %v4868
        %4903 = vmatprep.subr.bf16.mxu0 0
        %4904 = vmatpush1.bf16.msra.mxu0 %v4869
        %4905 = vmatprep.subr.bf16.mxu0 0
        %4906 = vmatpush1.bf16.msra.mxu0 %v4870
        %4907 = vmatprep.subr.bf16.mxu0 0
        %4908 = vmatpush1.bf16.msra.mxu0 %v4871
        %4909 = vmatprep.subr.bf16.mxu0 0
        %4910 = vmatpush1.bf16.msra.mxu0 %v4872
        %4911 = vmatprep.subr.bf16.mxu0 0
        %4912 = vmatpush1.bf16.msra.mxu0 %v4873
        %4913 = vmatprep.subr.bf16.mxu0 0
        %4914 = vmatpush1.bf16.msra.mxu0 %v4874
        %4915 = vmatprep.subr.bf16.mxu0 0
        %4916 = vmatpush1.bf16.msra.mxu0 %v4875
        %4917 = vmatprep.subr.bf16.mxu0 0
        %4918 = vmatpush1.bf16.msra.mxu0 %v4876
        %4919 = vmatprep.subr.bf16.mxu0 0
        %4920 = vmatpush1.bf16.msra.mxu0 %v4877
        %4921 = vmatprep.subr.bf16.mxu0 0
        %4922 = vmatpush1.bf16.msra.mxu0 %v4878
        %4923 = vmatprep.subr.bf16.mxu0 0
        %4924 = vmatpush1.bf16.msra.mxu0 %v4879
        %4925 = vmatprep.subr.bf16.mxu0 0
        %4926 = vmatpush1.bf16.msra.mxu0 %v4880
        %4927 = vmatprep.subr.bf16.mxu0 0
        %4928 = vmatpush1.bf16.msra.mxu0 %v4881
        %4929 = vmatprep.subr.bf16.mxu0 0
        %4930 = vmatpush1.bf16.msra.mxu0 %v4882
        %4931 = vmatprep.mubr.bf16.mxu0 %v4792
        %4932 = vmatmul.mubr.bf16.gmra.mrb[0].mxu0 %v4553
        %v4933 = vpop.f32.mrb[0].mxu0
        %v4934 = vadd.f32 %v4600, %v4933
        %v4935 = vpop.f32.mrb[0].mxu0
        %v4936 = vpop.f32.mrb[0].mxu0
        %v4937 = vadd.f32 %v4600, %v4936
        %v4938 = vpop.f32.mrb[0].mxu0
        %4939 = vmatprep.mubr.bf16.mxu0 %v4800
        %4940 = vmatmul.mubr.bf16.gmra.mrb[0].mxu0 %v4561
        %v4941 = vpop.f32.mrb[0].mxu0
        %v4942 = vadd.f32 %v4600, %v4941
        %v4943 = vpop.f32.mrb[0].mxu0
        %v4944 = vpop.f32.mrb[0].mxu0
        %v4945 = vadd.f32 %v4600, %v4944
        %v4946 = vpop.f32.mrb[0].mxu0
        %4947 = vdwg.mxu0
        %v4948 = vadd.s32 %v2814, 32
        %v4949 = vadd.s32 %v2814, 40
        %v4950 = vadd.s32 %v2814, 48
        %v4951 = vadd.s32 %v2814, 56
        %vm4952 = vcmp.eq.s32.totalorder %v4948, %v2820
        %vm4953 = vcmp.eq.s32.totalorder %v4949, %v2820
        %vm4954 = vcmp.eq.s32.totalorder %v4950, %v2820
        %vm4955 = vcmp.eq.s32.totalorder %v4951, %v2820
        %v4956 = vsel %vm4952, 1.0, 0.0
        %v4957 = vsel %vm4953, 1.0, 0.0
        %v4958 = vsel %vm4954, 1.0, 0.0
        %v4959 = vsel %vm4955, 1.0, 0.0
        %vm4960 = vcmp.eq.s32.totalorder %v4948, %v2829
        %vm4961 = vcmp.eq.s32.totalorder %v4949, %v2829
        %vm4962 = vcmp.eq.s32.totalorder %v4950, %v2829
        %vm4963 = vcmp.eq.s32.totalorder %v4951, %v2829
        %v4964 = vsel %vm4960, 1.0, 0.0
        %v4965 = vsel %vm4961, 1.0, 0.0
        %v4966 = vsel %vm4962, 1.0, 0.0
        %v4967 = vsel %vm4963, 1.0, 0.0
        %v4968 = vsel %vm1009, %v2834, 0
        %v4970 = vsel %vm1009, %v2835, 0
        %v4972 = vsel %vm1009, %v2836, 0
        %v4974 = vsel %vm1009, %v2837, 0
        %v4977 = vsel %vm1009, %v4964, 0
        %v4980 = vsel %vm1009, %v4965, 0
        %v4983 = vsel %vm1009, %v4966, 0
        %v4986 = vsel %vm1009, %v4967, 0
        %4988 = vmatprep.subr.mxu0 0.0
        %4989 = vmatpush1.msra.mxu0 %v4934
        %4990 = vmatprep.subr.mxu0 0.0
        %4991 = vmatpush1.msra.mxu0 %v4937
        %4992 = vmatprep.subr.mxu0 0.0
        %4993 = vmatpush1.msra.mxu0 %v4942
        %4994 = vmatprep.subr.mxu0 0.0
        %4995 = vmatpush1.msra.mxu0 %v4945
        %4996 = vmatprep.subr.mxu0 0.0
        %4997 = vmatpush1.msra.mxu0 0.0
        %4998 = vmatprep.subr.mxu0 0.0
        %4999 = vmatpush1.msra.mxu0 0.0
        %5000 = vmatprep.subr.mxu0 0.0
        %5001 = vmatpush1.msra.mxu0 0.0
        %5002 = vmatprep.subr.mxu0 0.0
        %5003 = vmatpush1.msra.mxu0 0.0
        %5004 = vmatprep.subr.mxu0 0.0
        %5005 = vmatpush1.msra.mxu0 0.0
        %5006 = vmatprep.subr.mxu0 0.0
        %5007 = vmatpush1.msra.mxu0 0.0
        %5008 = vmatprep.subr.mxu0 0.0
        %5009 = vmatpush1.msra.mxu0 0.0
        %5010 = vmatprep.subr.mxu0 0.0
        %5011 = vmatpush1.msra.mxu0 0.0
        %5012 = vmatprep.subr.mxu0 0.0
        %5013 = vmatpush1.msra.mxu0 0.0
        %5014 = vmatprep.subr.mxu0 0.0
        %5015 = vmatpush1.msra.mxu0 0.0
        %5016 = vmatprep.subr.mxu0 0.0
        %5017 = vmatpush1.msra.mxu0 0.0
        %5018 = vmatprep.subr.mxu0 0.0
        %5019 = vmatpush1.msra.mxu0 0.0
        %5020 = vmatprep.subr.mxu0 0.0
        %5021 = vmatpush1.msra.mxu0 0.0
        %5022 = vmatprep.subr.mxu0 0.0
        %5023 = vmatpush1.msra.mxu0 0.0
        %5024 = vmatprep.subr.mxu0 0.0
        %5025 = vmatpush1.msra.mxu0 0.0
        %5026 = vmatprep.subr.mxu0 0.0
        %5027 = vmatpush1.msra.mxu0 0.0
        %5028 = vmatprep.subr.mxu0 0.0
        %5029 = vmatpush1.msra.mxu0 0.0
        %5030 = vmatprep.subr.mxu0 0.0
        %5031 = vmatpush1.msra.mxu0 0.0
        %5032 = vmatprep.subr.mxu0 0.0
        %5033 = vmatpush1.msra.mxu0 0.0
        %5034 = vmatprep.subr.mxu0 0.0
        %5035 = vmatpush1.msra.mxu0 0.0
        %5036 = vmatprep.subr.mxu0 0.0
        %5037 = vmatpush1.msra.mxu0 0.0
        %5038 = vmatprep.subr.mxu0 0.0
        %5039 = vmatpush1.msra.mxu0 0.0
        %5040 = vmatprep.subr.mxu0 0.0
        %5041 = vmatpush1.msra.mxu0 0.0
        %5042 = vmatprep.subr.mxu0 0.0
        %5043 = vmatpush1.msra.mxu0 0.0
        %5044 = vmatprep.subr.mxu0 0.0
        %5045 = vmatpush1.msra.mxu0 0.0
        %5046 = vmatprep.subr.mxu0 0.0
        %5047 = vmatpush1.msra.mxu0 0.0
        %5048 = vmatprep.subr.mxu0 0.0
        %5049 = vmatpush1.msra.mxu0 0.0
        %5050 = vmatprep.subr.mxu0 0.0
        %5051 = vmatpush1.msra.mxu0 0.0
        %5052 = vmatprep.mubr.f32.mxu0 0.0
        %5053 = vmatmul.mubr.f32.gmra.mrb[0].mxu0 %v4968
        %v5054 = vpop.f32.mrb[0].mxu0
        %v5055 = vadd.f32 0.0, %v5054
        %v5056 = vpop.f32.mrb[0].mxu0
        %5057 = vmatprep.mubr.f32.mxu0 0.0
        %5058 = vmatmul.mubr.f32.gmra.mrb[0].mxu0 %v4970
        %v5059 = vpop.f32.mrb[0].mxu0
        %v5060 = vadd.f32 0.0, %v5059
        %v5061 = vpop.f32.mrb[0].mxu0
        %5062 = vmatprep.mubr.f32.mxu0 0.0
        %5063 = vmatmul.mubr.f32.gmra.mrb[0].mxu0 %v4972
        %v5064 = vpop.f32.mrb[0].mxu0
        %v5065 = vadd.f32 0.0, %v5064
        %v5066 = vpop.f32.mrb[0].mxu0
        %5067 = vmatprep.mubr.f32.mxu0 0.0
        %5068 = vmatmul.mubr.f32.gmra.mrb[0].mxu0 %v4974
        %v5069 = vpop.f32.mrb[0].mxu0
        %v5070 = vadd.f32 0.0, %v5069
        %v5071 = vpop.f32.mrb[0].mxu0
        %5072 = vmatprep.mubr.f32.mxu0 0.0
        %5073 = vmatmul.mubr.f32.gmra.mrb[0].mxu0 %v4977
        %v5074 = vpop.f32.mrb[0].mxu0
        %v5075 = vadd.f32 0.0, %v5074
        %v5076 = vpop.f32.mrb[0].mxu0
        %5077 = vmatprep.mubr.f32.mxu0 0.0
        %5078 = vmatmul.mubr.f32.gmra.mrb[0].mxu0 %v4980
        %v5079 = vpop.f32.mrb[0].mxu0
        %v5080 = vadd.f32 0.0, %v5079
        %v5081 = vpop.f32.mrb[0].mxu0
        %5082 = vmatprep.mubr.f32.mxu0 0.0
        %5083 = vmatmul.mubr.f32.gmra.mrb[0].mxu0 %v4983
        %v5084 = vpop.f32.mrb[0].mxu0
        %v5085 = vadd.f32 0.0, %v5084
        %v5086 = vpop.f32.mrb[0].mxu0
        %5087 = vmatprep.mubr.f32.mxu0 0.0
        %5088 = vmatmul.mubr.f32.gmra.mrb[0].mxu0 %v4986
        %v5089 = vpop.f32.mrb[0].mxu0
        %v5090 = vadd.f32 0.0, %v5089
        %v5091 = vpop.f32.mrb[0].mxu0
        %5092 = vdwg.mxu0
        %v5093 = vsel %vm1009, %v2825, 0
        %v5095 = vsel %vm1009, %v2826, 0
        %v5097 = vsel %vm1009, %v2827, 0
        %v5099 = vsel %vm1009, %v2828, 0
        %v5102 = vsel %vm1009, %v4956, 0
        %v5105 = vsel %vm1009, %v4957, 0
        %v5108 = vsel %vm1009, %v4958, 0
        %v5111 = vsel %vm1009, %v4959, 0
        %5113 = vmatprep.subr.mxu0 0.0
        %5114 = vmatpush1.msra.mxu0 %v4733
        %5115 = vmatprep.subr.mxu0 0.0
        %5116 = vmatpush1.msra.mxu0 %v4736
        %5117 = vmatprep.subr.mxu0 0.0
        %5118 = vmatpush1.msra.mxu0 %v4741
        %5119 = vmatprep.subr.mxu0 0.0
        %5120 = vmatpush1.msra.mxu0 %v4744
        %5121 = vmatprep.subr.mxu0 0.0
        %5122 = vmatpush1.msra.mxu0 0.0
        %5123 = vmatprep.subr.mxu0 0.0
        %5124 = vmatpush1.msra.mxu0 0.0
        %5125 = vmatprep.subr.mxu0 0.0
        %5126 = vmatpush1.msra.mxu0 0.0
        %5127 = vmatprep.subr.mxu0 0.0
        %5128 = vmatpush1.msra.mxu0 0.0
        %5129 = vmatprep.subr.mxu0 0.0
        %5130 = vmatpush1.msra.mxu0 0.0
        %5131 = vmatprep.subr.mxu0 0.0
        %5132 = vmatpush1.msra.mxu0 0.0
        %5133 = vmatprep.subr.mxu0 0.0
        %5134 = vmatpush1.msra.mxu0 0.0
        %5135 = vmatprep.subr.mxu0 0.0
        %5136 = vmatpush1.msra.mxu0 0.0
        %5137 = vmatprep.subr.mxu0 0.0
        %5138 = vmatpush1.msra.mxu0 0.0
        %5139 = vmatprep.subr.mxu0 0.0
        %5140 = vmatpush1.msra.mxu0 0.0
        %5141 = vmatprep.subr.mxu0 0.0
        %5142 = vmatpush1.msra.mxu0 0.0
        %5143 = vmatprep.subr.mxu0 0.0
        %5144 = vmatpush1.msra.mxu0 0.0
        %5145 = vmatprep.subr.mxu0 0.0
        %5146 = vmatpush1.msra.mxu0 0.0
        %5147 = vmatprep.subr.mxu0 0.0
        %5148 = vmatpush1.msra.mxu0 0.0
        %5149 = vmatprep.subr.mxu0 0.0
        %5150 = vmatpush1.msra.mxu0 0.0
        %5151 = vmatprep.subr.mxu0 0.0
        %5152 = vmatpush1.msra.mxu0 0.0
        %5153 = vmatprep.subr.mxu0 0.0
        %5154 = vmatpush1.msra.mxu0 0.0
        %5155 = vmatprep.subr.mxu0 0.0
        %5156 = vmatpush1.msra.mxu0 0.0
        %5157 = vmatprep.subr.mxu0 0.0
        %5158 = vmatpush1.msra.mxu0 0.0
        %5159 = vmatprep.subr.mxu0 0.0
        %5160 = vmatpush1.msra.mxu0 0.0
        %5161 = vmatprep.subr.mxu0 0.0
        %5162 = vmatpush1.msra.mxu0 0.0
        %5163 = vmatprep.subr.mxu0 0.0
        %5164 = vmatpush1.msra.mxu0 0.0
        %5165 = vmatprep.subr.mxu0 0.0
        %5166 = vmatpush1.msra.mxu0 0.0
        %5167 = vmatprep.subr.mxu0 0.0
        %5168 = vmatpush1.msra.mxu0 0.0
        %5169 = vmatprep.subr.mxu0 0.0
        %5170 = vmatpush1.msra.mxu0 0.0
        %5171 = vmatprep.subr.mxu0 0.0
        %5172 = vmatpush1.msra.mxu0 0.0
        %5173 = vmatprep.subr.mxu0 0.0
        %5174 = vmatpush1.msra.mxu0 0.0
        %5175 = vmatprep.subr.mxu0 0.0
        %5176 = vmatpush1.msra.mxu0 0.0
        %5177 = vmatprep.mubr.f32.mxu0 0.0
        %5178 = vmatmul.mubr.f32.gmra.mrb[0].mxu0 %v5093
        %v5179 = vpop.f32.mrb[0].mxu0
        %v5180 = vadd.f32 %v5055, %v5179
        %v5181 = vpop.f32.mrb[0].mxu0
        %5182 = vmatprep.mubr.f32.mxu0 0.0
        %5183 = vmatmul.mubr.f32.gmra.mrb[0].mxu0 %v5095
        %v5184 = vpop.f32.mrb[0].mxu0
        %v5185 = vadd.f32 %v5060, %v5184
        %v5186 = vpop.f32.mrb[0].mxu0
        %5187 = vmatprep.mubr.f32.mxu0 0.0
        %5188 = vmatmul.mubr.f32.gmra.mrb[0].mxu0 %v5097
        %v5189 = vpop.f32.mrb[0].mxu0
        %v5190 = vadd.f32 %v5065, %v5189
        %v5191 = vpop.f32.mrb[0].mxu0
        %5192 = vmatprep.mubr.f32.mxu0 0.0
        %5193 = vmatmul.mubr.f32.gmra.mrb[0].mxu0 %v5099
        %v5194 = vpop.f32.mrb[0].mxu0
        %v5195 = vadd.f32 %v5070, %v5194
        %v5196 = vpop.f32.mrb[0].mxu0
        %5197 = vmatprep.mubr.f32.mxu0 0.0
        %5198 = vmatmul.mubr.f32.gmra.mrb[0].mxu0 %v5102
        %v5199 = vpop.f32.mrb[0].mxu0
        %v5200 = vadd.f32 %v5075, %v5199
        %v5201 = vpop.f32.mrb[0].mxu0
        %5202 = vmatprep.mubr.f32.mxu0 0.0
        %5203 = vmatmul.mubr.f32.gmra.mrb[0].mxu0 %v5105
        %v5204 = vpop.f32.mrb[0].mxu0
        %v5205 = vadd.f32 %v5080, %v5204
        %v5206 = vpop.f32.mrb[0].mxu0
        %5207 = vmatprep.mubr.f32.mxu0 0.0
        %5208 = vmatmul.mubr.f32.gmra.mrb[0].mxu0 %v5108
        %v5209 = vpop.f32.mrb[0].mxu0
        %v5210 = vadd.f32 %v5085, %v5209
        %v5211 = vpop.f32.mrb[0].mxu0
        %5212 = vmatprep.mubr.f32.mxu0 0.0
        %5213 = vmatmul.mubr.f32.gmra.mrb[0].mxu0 %v5111
        %v5214 = vpop.f32.mrb[0].mxu0
        %v5215 = vadd.f32 %v5090, %v5214
        %v5216 = vpop.f32.mrb[0].mxu0
        %5217 = vdwg.mxu0
        %v5218 = vld [vmem:[#allocation29] sm:$0xf]
        %v5219 = vld [vmem:[#allocation29 + $0x4] sm:$0xf]
        %v5220 = vld [vmem:[#allocation29 + $0x8] sm:$0xf]
        %v5221 = vld [vmem:[#allocation29 + $0xc] sm:$0xf]
        %v5222 = vld [vmem:[#allocation29 + $0x10] sm:$0xf]
        %v5223 = vld [vmem:[#allocation29 + $0x14] sm:$0xf]
        %v5224 = vld [vmem:[#allocation29 + $0x18] sm:$0xf]
        %v5225 = vld [vmem:[#allocation29 + $0x1c] sm:$0xf]
        %v5226 = vld [vmem:[#allocation29 + $0x20] sm:$0xf]
        %v5227 = vld [vmem:[#allocation29 + $0x24] sm:$0xf]
        %v5228 = vld [vmem:[#allocation29 + $0x28] sm:$0xf]
        %v5229 = vld [vmem:[#allocation29 + $0x2c] sm:$0xf]
        %v5230 = vld [vmem:[#allocation29 + $0x30] sm:$0xf]
        %v5231 = vld [vmem:[#allocation29 + $0x34] sm:$0xf]
        %v5232 = vld [vmem:[#allocation29 + $0x38] sm:$0xf]
        %v5233 = vld [vmem:[#allocation29 + $0x3c] sm:$0xf]
        %v5234 = vld [vmem:[#allocation29 + $0x40] sm:$0xf]
        %v5235 = vld [vmem:[#allocation29 + $0x44] sm:$0xf]
        %v5236 = vld [vmem:[#allocation29 + $0x48] sm:$0xf]
        %v5237 = vld [vmem:[#allocation29 + $0x4c] sm:$0xf]
        %v5238 = vld [vmem:[#allocation29 + $0x50] sm:$0xf]
        %v5239 = vld [vmem:[#allocation29 + $0x54] sm:$0xf]
        %v5240 = vld [vmem:[#allocation29 + $0x58] sm:$0xf]
        %v5241 = vld [vmem:[#allocation29 + $0x5c] sm:$0xf]
        %v5242 = vld [vmem:[#allocation29 + $0x60] sm:$0xf]
        %v5243 = vld [vmem:[#allocation29 + $0x64] sm:$0xf]
        %v5244 = vld [vmem:[#allocation29 + $0x68] sm:$0xf]
        %v5245 = vld [vmem:[#allocation29 + $0x6c] sm:$0xf]
        %v5246 = vld [vmem:[#allocation29 + $0x70] sm:$0xf]
        %v5247 = vld [vmem:[#allocation29 + $0x74] sm:$0xf]
        %v5248 = vld [vmem:[#allocation29 + $0x78] sm:$0xf]
        %v5249 = vld [vmem:[#allocation29 + $0x7c] sm:$0xf]
        %v5250 = vld [vmem:[#allocation29 + $0x80] sm:$0xf]
        %v5251 = vld [vmem:[#allocation29 + $0x84] sm:$0xf]
        %v5252 = vld [vmem:[#allocation29 + $0x88] sm:$0xf]
        %v5253 = vld [vmem:[#allocation29 + $0x8c] sm:$0xf]
        %v5254 = vld [vmem:[#allocation29 + $0x90] sm:$0xf]
        %v5255 = vld [vmem:[#allocation29 + $0x94] sm:$0xf]
        %v5256 = vld [vmem:[#allocation29 + $0x98] sm:$0xf]
        %v5257 = vld [vmem:[#allocation29 + $0x9c] sm:$0xf]
        %v5258 = vld [vmem:[#allocation29 + $0xa0] sm:$0xf]
        %v5259 = vld [vmem:[#allocation29 + $0xa4] sm:$0xf]
        %v5260 = vld [vmem:[#allocation29 + $0xa8] sm:$0xf]
        %v5261 = vld [vmem:[#allocation29 + $0xac] sm:$0xf]
        %v5262 = vld [vmem:[#allocation29 + $0xb0] sm:$0xf]
        %v5263 = vld [vmem:[#allocation29 + $0xb4] sm:$0xf]
        %v5264 = vld [vmem:[#allocation29 + $0xb8] sm:$0xf]
        %v5265 = vld [vmem:[#allocation29 + $0xbc] sm:$0xf]
        %v5266 = vld [vmem:[#allocation31] sm:$0x1]
        %v5267 = vpack.c.bf16 %v5185, %v5180
        %v5268 = vpack.c.bf16 %v5195, %v5190
        %v5269 = vpack.c.bf16 %v5205, %v5200
        %v5270 = vpack.c.bf16 %v5215, %v5210
        %v5272 = vshrl.u32 %v5267, 16
        %v5274 = vrot.slane %v5272, 7
        %v5275 = vshll.u32 %v5267, 16
        %v5277 = vor.u32 %v5274, %v5275
        %v5279 = vshrl.u32 %v5268, 16
        %v5281 = vrot.slane %v5279, 7
        %v5282 = vshll.u32 %v5268, 16
        %v5284 = vor.u32 %v5281, %v5282
        %v5285 = vsel %vm982, %v5274, %v5284
        %v5287 = vshrl.u32 %v5269, 16
        %v5289 = vrot.slane %v5287, 7
        %v5290 = vshll.u32 %v5269, 16
        %v5292 = vor.u32 %v5289, %v5290
        %v5293 = vsel %vm982, %v5281, %v5292
        %v5295 = vshrl.u32 %v5270, 16
        %v5297 = vrot.slane %v5295, 7
        %v5298 = vshll.u32 %v5270, 16
        %v5300 = vor.u32 %v5297, %v5298
        %v5301 = vsel %vm982, %v5289, %v5300
        %v5307 = vsel %vm983, 0, %v5277
        %v5308 = vsel %vm983, %v5297, 0
        %v5310 = vshrl.u32 %v5307, 16
        %v5312 = vshll.u32 %v5307, 16
        %v5314 = vrot.slane %v5312, 1
        %v5315 = vor.u32 %v5310, %v5314
        %v5317 = vshll.u32 %v5285, 16
        %v5319 = vrot.slane %v5317, 1
        %v5320 = vsel %vm986, %v5315, %v5319
        %v5321 = vshrl.u32 %v5285, 16
        %v5323 = vor.u32 %v5321, %v5319
        %v5325 = vshll.u32 %v5293, 16
        %v5327 = vrot.slane %v5325, 1
        %v5328 = vsel %vm986, %v5323, %v5327
        %v5329 = vshrl.u32 %v5293, 16
        %v5331 = vor.u32 %v5329, %v5327
        %v5333 = vshll.u32 %v5301, 16
        %v5335 = vrot.slane %v5333, 1
        %v5336 = vsel %vm986, %v5331, %v5335
        %v5337 = vshrl.u32 %v5301, 16
        %v5339 = vor.u32 %v5337, %v5335
        %v5341 = vshll.u32 %v5308, 16
        %v5343 = vrot.slane %v5341, 1
        %v5344 = vsel %vm986, %v5339, %v5343
        %v5351 = vrot.slane %v5307, 1
        %v5352 = vrot.slane %v5285, 1
        %v5353 = vsel %vm1003, %v5351, %v5352
        %v5354 = vrot.slane %v5293, 1
        %v5355 = vsel %vm1003, %v5352, %v5354
        %v5356 = vrot.slane %v5301, 1
        %v5357 = vsel %vm1003, %v5354, %v5356
        %v5358 = vrot.slane %v5308, 1
        %v5359 = vsel %vm1003, %v5356, %v5358
        %v5365 = vlaneseq
        %v5366 = vshrl.u32 %v5365, 7
        %v5367 = vsub.s32 0, %v5366
        %v5368 = vrot.slane %v5266, %v5367
        %v5418 = vunpack.c.l.b16 %v5218
        %v5419 = vunpack.c.l.b16 %v5219
        %v5420 = vunpack.c.l.b16 %v5220
        %v5421 = vunpack.c.l.b16 %v5221
        %v5422 = vunpack.c.l.b16 %v5222
        %v5423 = vunpack.c.l.b16 %v5223
        %v5424 = vunpack.c.l.b16 %v5224
        %v5425 = vunpack.c.l.b16 %v5225
        %v5426 = vunpack.c.l.b16 %v5226
        %v5427 = vunpack.c.l.b16 %v5227
        %v5428 = vunpack.c.l.b16 %v5228
        %v5429 = vunpack.c.l.b16 %v5229
        %v5430 = vunpack.c.l.b16 %v5230
        %v5431 = vunpack.c.l.b16 %v5231
        %v5432 = vunpack.c.l.b16 %v5232
        %v5433 = vunpack.c.l.b16 %v5233
        %v5434 = vunpack.c.l.b16 %v5234
        %v5435 = vunpack.c.l.b16 %v5235
        %v5436 = vunpack.c.l.b16 %v5236
        %v5437 = vunpack.c.l.b16 %v5237
        %v5438 = vunpack.c.l.b16 %v5238
        %v5439 = vunpack.c.l.b16 %v5239
        %v5440 = vunpack.c.l.b16 %v5240
        %v5441 = vunpack.c.l.b16 %v5241
        %v5442 = vunpack.c.l.b16 %v5242
        %v5443 = vunpack.c.l.b16 %v5243
        %v5444 = vunpack.c.l.b16 %v5244
        %v5445 = vunpack.c.l.b16 %v5245
        %v5446 = vunpack.c.l.b16 %v5246
        %v5447 = vunpack.c.l.b16 %v5247
        %v5448 = vunpack.c.l.b16 %v5248
        %v5449 = vunpack.c.l.b16 %v5249
        %v5450 = vunpack.c.l.b16 %v5250
        %v5451 = vunpack.c.l.b16 %v5251
        %v5452 = vunpack.c.l.b16 %v5252
        %v5453 = vunpack.c.l.b16 %v5253
        %v5454 = vunpack.c.l.b16 %v5254
        %v5455 = vunpack.c.l.b16 %v5255
        %v5456 = vunpack.c.l.b16 %v5256
        %v5457 = vunpack.c.l.b16 %v5257
        %v5458 = vunpack.c.l.b16 %v5258
        %v5459 = vunpack.c.l.b16 %v5259
        %v5460 = vunpack.c.l.b16 %v5260
        %v5461 = vunpack.c.l.b16 %v5261
        %v5462 = vunpack.c.l.b16 %v5262
        %v5463 = vunpack.c.l.b16 %v5263
        %v5464 = vunpack.c.l.b16 %v5264
        %v5465 = vunpack.c.l.b16 %v5265
        %v5466 = vpack.c.b16 %v5419, %v5418
        %v5467 = vpack.c.b16 %v5421, %v5420
        %v5468 = vpack.c.b16 %v5423, %v5422
        %v5469 = vpack.c.b16 %v5425, %v5424
        %v5470 = vpack.c.b16 %v5427, %v5426
        %v5471 = vpack.c.b16 %v5429, %v5428
        %v5472 = vpack.c.b16 %v5431, %v5430
        %v5473 = vpack.c.b16 %v5433, %v5432
        %v5474 = vpack.c.b16 %v5435, %v5434
        %v5475 = vpack.c.b16 %v5437, %v5436
        %v5476 = vpack.c.b16 %v5439, %v5438
        %v5477 = vpack.c.b16 %v5441, %v5440
        %v5478 = vpack.c.b16 %v5443, %v5442
        %v5479 = vpack.c.b16 %v5445, %v5444
        %v5480 = vpack.c.b16 %v5447, %v5446
        %v5481 = vpack.c.b16 %v5449, %v5448
        %v5482 = vpack.c.b16 %v5451, %v5450
        %v5483 = vpack.c.b16 %v5453, %v5452
        %v5484 = vpack.c.b16 %v5455, %v5454
        %v5485 = vpack.c.b16 %v5457, %v5456
        %v5486 = vpack.c.b16 %v5459, %v5458
        %v5487 = vpack.c.b16 %v5461, %v5460
        %v5488 = vpack.c.b16 %v5463, %v5462
        %v5489 = vpack.c.b16 %v5465, %v5464
        %5514 = vmatprep.subr.bf16.mxu0 0
        %5515 = vmatpush1.bf16.msra.mxu0 %v5466
        %5516 = vmatprep.subr.bf16.mxu0 0
        %5517 = vmatpush1.bf16.msra.mxu0 %v5467
        %5518 = vmatprep.subr.bf16.mxu0 0
        %5519 = vmatpush1.bf16.msra.mxu0 %v5468
        %5520 = vmatprep.subr.bf16.mxu0 0
        %5521 = vmatpush1.bf16.msra.mxu0 %v5469
        %5522 = vmatprep.subr.bf16.mxu0 0
        %5523 = vmatpush1.bf16.msra.mxu0 %v5470
        %5524 = vmatprep.subr.bf16.mxu0 0
        %5525 = vmatpush1.bf16.msra.mxu0 %v5471
        %5526 = vmatprep.subr.bf16.mxu0 0
        %5527 = vmatpush1.bf16.msra.mxu0 %v5472
        %5528 = vmatprep.subr.bf16.mxu0 0
        %5529 = vmatpush1.bf16.msra.mxu0 %v5473
        %5530 = vmatprep.subr.bf16.mxu0 0
        %5531 = vmatpush1.bf16.msra.mxu0 %v5474
        %5532 = vmatprep.subr.bf16.mxu0 0
        %5533 = vmatpush1.bf16.msra.mxu0 %v5475
        %5534 = vmatprep.subr.bf16.mxu0 0
        %5535 = vmatpush1.bf16.msra.mxu0 %v5476
        %5536 = vmatprep.subr.bf16.mxu0 0
        %5537 = vmatpush1.bf16.msra.mxu0 %v5477
        %5538 = vmatprep.subr.bf16.mxu0 0
        %5539 = vmatpush1.bf16.msra.mxu0 %v5478
        %5540 = vmatprep.subr.bf16.mxu0 0
        %5541 = vmatpush1.bf16.msra.mxu0 %v5479
        %5542 = vmatprep.subr.bf16.mxu0 0
        %5543 = vmatpush1.bf16.msra.mxu0 %v5480
        %5544 = vmatprep.subr.bf16.mxu0 0
        %5545 = vmatpush1.bf16.msra.mxu0 %v5481
        %5546 = vmatprep.mubr.bf16.mxu0 %v5320
        %5547 = vmatmul.mubr.bf16.gmra.mrb[0].mxu0 %v5307
        %v5548 = vpop.f32.mrb[0].mxu0
        %v5549 = vadd.f32 %v5368, %v5548
        %v5550 = vpop.f32.mrb[0].mxu0
        %v5551 = vpop.f32.mrb[0].mxu0
        %v5552 = vadd.f32 %v5368, %v5551
        %v5553 = vpop.f32.mrb[0].mxu0
        %5554 = vmatprep.mubr.bf16.mxu0 %v5328
        %5555 = vmatmul.mubr.bf16.gmra.mrb[0].mxu0 %v5285
        %v5556 = vpop.f32.mrb[0].mxu0
        %v5557 = vadd.f32 %v5368, %v5556
        %v5558 = vpop.f32.mrb[0].mxu0
        %v5559 = vpop.f32.mrb[0].mxu0
        %v5560 = vadd.f32 %v5368, %v5559
        %v5561 = vpop.f32.mrb[0].mxu0
        %5562 = vmatprep.mubr.bf16.mxu0 %v5336
        %5563 = vmatmul.mubr.bf16.gmra.mrb[0].mxu0 %v5293
        %v5564 = vpop.f32.mrb[0].mxu0
        %v5565 = vadd.f32 %v5368, %v5564
        %v5566 = vpop.f32.mrb[0].mxu0
        %v5567 = vpop.f32.mrb[0].mxu0
        %v5568 = vadd.f32 %v5368, %v5567
        %v5569 = vpop.f32.mrb[0].mxu0
        %5570 = vmatprep.mubr.bf16.mxu0 %v5344
        %5571 = vmatmul.mubr.bf16.gmra.mrb[0].mxu0 %v5301
        %v5572 = vpop.f32.mrb[0].mxu0
        %v5573 = vadd.f32 %v5368, %v5572
        %v5574 = vpop.f32.mrb[0].mxu0
        %v5575 = vpop.f32.mrb[0].mxu0
        %v5576 = vadd.f32 %v5368, %v5575
        %v5577 = vpop.f32.mrb[0].mxu0
        %5578 = vdwg.mxu0
        %5579 = vmatprep.subr.bf16.mxu0 0
        %5580 = vmatpush1.bf16.msra.mxu0 %v5482
        %5581 = vmatprep.subr.bf16.mxu0 0
        %5582 = vmatpush1.bf16.msra.mxu0 %v5483
        %5583 = vmatprep.subr.bf16.mxu0 0
        %5584 = vmatpush1.bf16.msra.mxu0 %v5484
        %5585 = vmatprep.subr.bf16.mxu0 0
        %5586 = vmatpush1.bf16.msra.mxu0 %v5485
        %5587 = vmatprep.subr.bf16.mxu0 0
        %5588 = vmatpush1.bf16.msra.mxu0 %v5486
        %5589 = vmatprep.subr.bf16.mxu0 0
        %5590 = vmatpush1.bf16.msra.mxu0 %v5487
        %5591 = vmatprep.subr.bf16.mxu0 0
        %5592 = vmatpush1.bf16.msra.mxu0 %v5488
        %5593 = vmatprep.subr.bf16.mxu0 0
        %5594 = vmatpush1.bf16.msra.mxu0 %v5489
        %5595 = vmatprep.subr.bf16.mxu0 0
        %5596 = vmatpush1.bf16.msra.mxu0 0
        %5597 = vmatprep.subr.bf16.mxu0 0
        %5598 = vmatpush1.bf16.msra.mxu0 0
        %5599 = vmatprep.subr.bf16.mxu0 0
        %5600 = vmatpush1.bf16.msra.mxu0 0
        %5601 = vmatprep.subr.bf16.mxu0 0
        %5602 = vmatpush1.bf16.msra.mxu0 0
        %5603 = vmatprep.subr.bf16.mxu0 0
        %5604 = vmatpush1.bf16.msra.mxu0 0
        %5605 = vmatprep.subr.bf16.mxu0 0
        %5606 = vmatpush1.bf16.msra.mxu0 0
        %5607 = vmatprep.subr.bf16.mxu0 0
        %5608 = vmatpush1.bf16.msra.mxu0 0
        %5609 = vmatprep.subr.bf16.mxu0 0
        %5610 = vmatpush1.bf16.msra.mxu0 0
        %5611 = vmatprep.mubr.bf16.mxu0 0
        %5612 = vmatmul.mubr.bf16.gmra.mrb[0].mxu0 %v5353
        %v5613 = vpop.f32.mrb[0].mxu0
        %v5614 = vadd.f32 %v5549, %v5613
        %v5615 = vpop.f32.mrb[0].mxu0
        %v5616 = vpop.f32.mrb[0].mxu0
        %v5617 = vadd.f32 %v5552, %v5616
        %v5618 = vpop.f32.mrb[0].mxu0
        %5619 = vmatprep.mubr.bf16.mxu0 0
        %5620 = vmatmul.mubr.bf16.gmra.mrb[0].mxu0 %v5355
        %v5621 = vpop.f32.mrb[0].mxu0
        %v5622 = vadd.f32 %v5557, %v5621
        %v5623 = vpop.f32.mrb[0].mxu0
        %v5624 = vpop.f32.mrb[0].mxu0
        %v5625 = vadd.f32 %v5560, %v5624
        %v5626 = vpop.f32.mrb[0].mxu0
        %5627 = vmatprep.mubr.bf16.mxu0 0
        %5628 = vmatmul.mubr.bf16.gmra.mrb[0].mxu0 %v5357
        %v5629 = vpop.f32.mrb[0].mxu0
        %v5630 = vadd.f32 %v5565, %v5629
        %v5631 = vpop.f32.mrb[0].mxu0
        %v5632 = vpop.f32.mrb[0].mxu0
        %v5633 = vadd.f32 %v5568, %v5632
        %v5634 = vpop.f32.mrb[0].mxu0
        %5635 = vmatprep.mubr.bf16.mxu0 0
        %5636 = vmatmul.mubr.bf16.gmra.mrb[0].mxu0 %v5359
        %v5637 = vpop.f32.mrb[0].mxu0
        %v5638 = vadd.f32 %v5573, %v5637
        %v5639 = vpop.f32.mrb[0].mxu0
        %v5640 = vpop.f32.mrb[0].mxu0
        %v5641 = vadd.f32 %v5576, %v5640
        %v5642 = vpop.f32.mrb[0].mxu0
        %5643 = vdwg.mxu0
        %v5644 = vmax.f32 %v5614, 0.0
        %v5645 = vmax.f32 %v5617, 0.0
        %v5646 = vmax.f32 %v5622, 0.0
        %v5647 = vmax.f32 %v5625, 0.0
        %v5648 = vmax.f32 %v5630, 0.0
        %v5649 = vmax.f32 %v5633, 0.0
        %v5650 = vmax.f32 %v5638, 0.0
        %v5651 = vmax.f32 %v5641, 0.0
        %v5652 = vld [vmem:[#allocation32] sm:$0xf]
        %v5653 = vld [vmem:[#allocation32 + $0x4] sm:$0xf]
        %v5654 = vld [vmem:[#allocation32 + $0x8] sm:$0xf]
        %v5655 = vld [vmem:[#allocation32 + $0xc] sm:$0xf]
        %v5656 = vld [vmem:[#allocation32 + $0x10] sm:$0xf]
        %v5657 = vld [vmem:[#allocation32 + $0x14] sm:$0xf]
        %v5658 = vld [vmem:[#allocation32 + $0x18] sm:$0xf]
        %v5659 = vld [vmem:[#allocation32 + $0x1c] sm:$0xf]
        %v5660 = vld [vmem:[#allocation32 + $0x20] sm:$0xf]
        %v5661 = vld [vmem:[#allocation32 + $0x24] sm:$0xf]
        %v5662 = vld [vmem:[#allocation32 + $0x28] sm:$0xf]
        %v5663 = vld [vmem:[#allocation32 + $0x2c] sm:$0xf]
        %v5664 = vld [vmem:[#allocation32 + $0x30] sm:$0xf]
        %v5665 = vld [vmem:[#allocation32 + $0x34] sm:$0xf]
        %v5666 = vld [vmem:[#allocation32 + $0x38] sm:$0xf]
        %v5667 = vld [vmem:[#allocation32 + $0x3c] sm:$0xf]
        %v5668 = vld [vmem:[#allocation32 + $0x40] sm:$0xf]
        %v5669 = vld [vmem:[#allocation32 + $0x44] sm:$0xf]
        %v5670 = vld [vmem:[#allocation32 + $0x48] sm:$0xf]
        %v5671 = vld [vmem:[#allocation32 + $0x4c] sm:$0xf]
        %v5672 = vld [vmem:[#allocation32 + $0x50] sm:$0xf]
        %v5673 = vld [vmem:[#allocation32 + $0x54] sm:$0xf]
        %v5674 = vld [vmem:[#allocation32 + $0x58] sm:$0xf]
        %v5675 = vld [vmem:[#allocation32 + $0x5c] sm:$0xf]
        %v5676 = vld [vmem:[#allocation32 + $0x60] sm:$0xf]
        %v5677 = vld [vmem:[#allocation32 + $0x64] sm:$0xf]
        %v5678 = vld [vmem:[#allocation32 + $0x68] sm:$0xf]
        %v5679 = vld [vmem:[#allocation32 + $0x6c] sm:$0xf]
        %v5680 = vld [vmem:[#allocation32 + $0x70] sm:$0xf]
        %v5681 = vld [vmem:[#allocation32 + $0x74] sm:$0xf]
        %v5682 = vld [vmem:[#allocation32 + $0x78] sm:$0xf]
        %v5683 = vld [vmem:[#allocation32 + $0x7c] sm:$0xf]
        %v5684 = vld [vmem:[#allocation32 + $0x80] sm:$0xf]
        %v5685 = vld [vmem:[#allocation32 + $0x84] sm:$0xf]
        %v5686 = vld [vmem:[#allocation32 + $0x88] sm:$0xf]
        %v5687 = vld [vmem:[#allocation32 + $0x8c] sm:$0xf]
        %v5688 = vld [vmem:[#allocation32 + $0x90] sm:$0xf]
        %v5689 = vld [vmem:[#allocation32 + $0x94] sm:$0xf]
        %v5690 = vld [vmem:[#allocation32 + $0x98] sm:$0xf]
        %v5691 = vld [vmem:[#allocation32 + $0x9c] sm:$0xf]
        %v5692 = vld [vmem:[#allocation32 + $0xa0] sm:$0xf]
        %v5693 = vld [vmem:[#allocation32 + $0xa4] sm:$0xf]
        %v5694 = vld [vmem:[#allocation32 + $0xa8] sm:$0xf]
        %v5695 = vld [vmem:[#allocation32 + $0xac] sm:$0xf]
        %v5696 = vld [vmem:[#allocation32 + $0xb0] sm:$0xf]
        %v5697 = vld [vmem:[#allocation32 + $0xb4] sm:$0xf]
        %v5698 = vld [vmem:[#allocation32 + $0xb8] sm:$0xf]
        %v5699 = vld [vmem:[#allocation32 + $0xbc] sm:$0xf]
        %v5700 = vld [vmem:[#allocation34] sm:$0x1]
        %v5701 = vpack.c.bf16 %v5645, %v5644
        %v5702 = vpack.c.bf16 %v5647, %v5646
        %v5703 = vpack.c.bf16 %v5649, %v5648
        %v5704 = vpack.c.bf16 %v5651, %v5650
        %v5706 = vshrl.u32 %v5701, 16
        %v5708 = vrot.slane %v5706, 7
        %v5709 = vshll.u32 %v5701, 16
        %v5711 = vor.u32 %v5708, %v5709
        %v5713 = vshrl.u32 %v5702, 16
        %v5715 = vrot.slane %v5713, 7
        %v5716 = vshll.u32 %v5702, 16
        %v5718 = vor.u32 %v5715, %v5716
        %v5719 = vsel %vm982, %v5708, %v5718
        %v5721 = vshrl.u32 %v5703, 16
        %v5723 = vrot.slane %v5721, 7
        %v5724 = vshll.u32 %v5703, 16
        %v5726 = vor.u32 %v5723, %v5724
        %v5727 = vsel %vm982, %v5715, %v5726
        %v5729 = vshrl.u32 %v5704, 16
        %v5731 = vrot.slane %v5729, 7
        %v5732 = vshll.u32 %v5704, 16
        %v5734 = vor.u32 %v5731, %v5732
        %v5735 = vsel %vm982, %v5723, %v5734
        %v5741 = vsel %vm983, 0, %v5711
        %v5742 = vsel %vm983, %v5731, 0
        %v5744 = vshrl.u32 %v5741, 16
        %v5746 = vshll.u32 %v5741, 16
        %v5748 = vrot.slane %v5746, 1
        %v5749 = vor.u32 %v5744, %v5748
        %v5751 = vshll.u32 %v5719, 16
        %v5753 = vrot.slane %v5751, 1
        %v5754 = vsel %vm986, %v5749, %v5753
        %v5755 = vshrl.u32 %v5719, 16
        %v5757 = vor.u32 %v5755, %v5753
        %v5759 = vshll.u32 %v5727, 16
        %v5761 = vrot.slane %v5759, 1
        %v5762 = vsel %vm986, %v5757, %v5761
        %v5763 = vshrl.u32 %v5727, 16
        %v5765 = vor.u32 %v5763, %v5761
        %v5767 = vshll.u32 %v5735, 16
        %v5769 = vrot.slane %v5767, 1
        %v5770 = vsel %vm986, %v5765, %v5769
        %v5771 = vshrl.u32 %v5735, 16
        %v5773 = vor.u32 %v5771, %v5769
        %v5775 = vshll.u32 %v5742, 16
        %v5777 = vrot.slane %v5775, 1
        %v5778 = vsel %vm986, %v5773, %v5777
        %v5785 = vrot.slane %v5741, 1
        %v5786 = vrot.slane %v5719, 1
        %v5787 = vsel %vm1003, %v5785, %v5786
        %v5788 = vrot.slane %v5727, 1
        %v5789 = vsel %vm1003, %v5786, %v5788
        %v5790 = vrot.slane %v5735, 1
        %v5791 = vsel %vm1003, %v5788, %v5790
        %v5792 = vrot.slane %v5742, 1
        %v5793 = vsel %vm1003, %v5790, %v5792
        %v5799 = vlaneseq
        %v5800 = vshrl.u32 %v5799, 7
        %v5801 = vsub.s32 0, %v5800
        %v5802 = vrot.slane %v5700, %v5801
        %v5852 = vunpack.c.l.b16 %v5652
        %v5853 = vunpack.c.l.b16 %v5653
        %v5854 = vunpack.c.l.b16 %v5654
        %v5855 = vunpack.c.l.b16 %v5655
        %v5856 = vunpack.c.l.b16 %v5656
        %v5857 = vunpack.c.l.b16 %v5657
        %v5858 = vunpack.c.l.b16 %v5658
        %v5859 = vunpack.c.l.b16 %v5659
        %v5860 = vunpack.c.l.b16 %v5660
        %v5861 = vunpack.c.l.b16 %v5661
        %v5862 = vunpack.c.l.b16 %v5662
        %v5863 = vunpack.c.l.b16 %v5663
        %v5864 = vunpack.c.l.b16 %v5664
        %v5865 = vunpack.c.l.b16 %v5665
        %v5866 = vunpack.c.l.b16 %v5666
        %v5867 = vunpack.c.l.b16 %v5667
        %v5868 = vunpack.c.l.b16 %v5668
        %v5869 = vunpack.c.l.b16 %v5669
        %v5870 = vunpack.c.l.b16 %v5670
        %v5871 = vunpack.c.l.b16 %v5671
        %v5872 = vunpack.c.l.b16 %v5672
        %v5873 = vunpack.c.l.b16 %v5673
        %v5874 = vunpack.c.l.b16 %v5674
        %v5875 = vunpack.c.l.b16 %v5675
        %v5876 = vunpack.c.l.b16 %v5676
        %v5877 = vunpack.c.l.b16 %v5677
        %v5878 = vunpack.c.l.b16 %v5678
        %v5879 = vunpack.c.l.b16 %v5679
        %v5880 = vunpack.c.l.b16 %v5680
        %v5881 = vunpack.c.l.b16 %v5681
        %v5882 = vunpack.c.l.b16 %v5682
        %v5883 = vunpack.c.l.b16 %v5683
        %v5884 = vunpack.c.l.b16 %v5684
        %v5885 = vunpack.c.l.b16 %v5685
        %v5886 = vunpack.c.l.b16 %v5686
        %v5887 = vunpack.c.l.b16 %v5687
        %v5888 = vunpack.c.l.b16 %v5688
        %v5889 = vunpack.c.l.b16 %v5689
        %v5890 = vunpack.c.l.b16 %v5690
        %v5891 = vunpack.c.l.b16 %v5691
        %v5892 = vunpack.c.l.b16 %v5692
        %v5893 = vunpack.c.l.b16 %v5693
        %v5894 = vunpack.c.l.b16 %v5694
        %v5895 = vunpack.c.l.b16 %v5695
        %v5896 = vunpack.c.l.b16 %v5696
        %v5897 = vunpack.c.l.b16 %v5697
        %v5898 = vunpack.c.l.b16 %v5698
        %v5899 = vunpack.c.l.b16 %v5699
        %v5900 = vpack.c.b16 %v5853, %v5852
        %v5901 = vpack.c.b16 %v5855, %v5854
        %v5902 = vpack.c.b16 %v5857, %v5856
        %v5903 = vpack.c.b16 %v5859, %v5858
        %v5904 = vpack.c.b16 %v5861, %v5860
        %v5905 = vpack.c.b16 %v5863, %v5862
        %v5906 = vpack.c.b16 %v5865, %v5864
        %v5907 = vpack.c.b16 %v5867, %v5866
        %v5908 = vpack.c.b16 %v5869, %v5868
        %v5909 = vpack.c.b16 %v5871, %v5870
        %v5910 = vpack.c.b16 %v5873, %v5872
        %v5911 = vpack.c.b16 %v5875, %v5874
        %v5912 = vpack.c.b16 %v5877, %v5876
        %v5913 = vpack.c.b16 %v5879, %v5878
        %v5914 = vpack.c.b16 %v5881, %v5880
        %v5915 = vpack.c.b16 %v5883, %v5882
        %v5916 = vpack.c.b16 %v5885, %v5884
        %v5917 = vpack.c.b16 %v5887, %v5886
        %v5918 = vpack.c.b16 %v5889, %v5888
        %v5919 = vpack.c.b16 %v5891, %v5890
        %v5920 = vpack.c.b16 %v5893, %v5892
        %v5921 = vpack.c.b16 %v5895, %v5894
        %v5922 = vpack.c.b16 %v5897, %v5896
        %v5923 = vpack.c.b16 %v5899, %v5898
        %5948 = vmatprep.subr.bf16.mxu0 0
        %5949 = vmatpush1.bf16.msra.mxu0 %v5900
        %5950 = vmatprep.subr.bf16.mxu0 0
        %5951 = vmatpush1.bf16.msra.mxu0 %v5901
        %5952 = vmatprep.subr.bf16.mxu0 0
        %5953 = vmatpush1.bf16.msra.mxu0 %v5902
        %5954 = vmatprep.subr.bf16.mxu0 0
        %5955 = vmatpush1.bf16.msra.mxu0 %v5903
        %5956 = vmatprep.subr.bf16.mxu0 0
        %5957 = vmatpush1.bf16.msra.mxu0 %v5904
        %5958 = vmatprep.subr.bf16.mxu0 0
        %5959 = vmatpush1.bf16.msra.mxu0 %v5905
        %5960 = vmatprep.subr.bf16.mxu0 0
        %5961 = vmatpush1.bf16.msra.mxu0 %v5906
        %5962 = vmatprep.subr.bf16.mxu0 0
        %5963 = vmatpush1.bf16.msra.mxu0 %v5907
        %5964 = vmatprep.subr.bf16.mxu0 0
        %5965 = vmatpush1.bf16.msra.mxu0 %v5908
        %5966 = vmatprep.subr.bf16.mxu0 0
        %5967 = vmatpush1.bf16.msra.mxu0 %v5909
        %5968 = vmatprep.subr.bf16.mxu0 0
        %5969 = vmatpush1.bf16.msra.mxu0 %v5910
        %5970 = vmatprep.subr.bf16.mxu0 0
        %5971 = vmatpush1.bf16.msra.mxu0 %v5911
        %5972 = vmatprep.subr.bf16.mxu0 0
        %5973 = vmatpush1.bf16.msra.mxu0 %v5912
        %5974 = vmatprep.subr.bf16.mxu0 0
        %5975 = vmatpush1.bf16.msra.mxu0 %v5913
        %5976 = vmatprep.subr.bf16.mxu0 0
        %5977 = vmatpush1.bf16.msra.mxu0 %v5914
        %5978 = vmatprep.subr.bf16.mxu0 0
        %5979 = vmatpush1.bf16.msra.mxu0 %v5915
        %5980 = vmatprep.mubr.bf16.mxu0 %v5754
        %5981 = vmatmul.mubr.bf16.gmra.mrb[0].mxu0 %v5741
        %v5982 = vpop.f32.mrb[0].mxu0
        %v5983 = vadd.f32 %v5802, %v5982
        %v5984 = vpop.f32.mrb[0].mxu0
        %v5985 = vpop.f32.mrb[0].mxu0
        %v5986 = vadd.f32 %v5802, %v5985
        %v5987 = vpop.f32.mrb[0].mxu0
        %5988 = vmatprep.mubr.bf16.mxu0 %v5762
        %5989 = vmatmul.mubr.bf16.gmra.mrb[0].mxu0 %v5719
        %v5990 = vpop.f32.mrb[0].mxu0
        %v5991 = vadd.f32 %v5802, %v5990
        %v5992 = vpop.f32.mrb[0].mxu0
        %v5993 = vpop.f32.mrb[0].mxu0
        %v5994 = vadd.f32 %v5802, %v5993
        %v5995 = vpop.f32.mrb[0].mxu0
        %5996 = vmatprep.mubr.bf16.mxu0 %v5770
        %5997 = vmatmul.mubr.bf16.gmra.mrb[0].mxu0 %v5727
        %v5998 = vpop.f32.mrb[0].mxu0
        %v5999 = vadd.f32 %v5802, %v5998
        %v6000 = vpop.f32.mrb[0].mxu0
        %v6001 = vpop.f32.mrb[0].mxu0
        %v6002 = vadd.f32 %v5802, %v6001
        %v6003 = vpop.f32.mrb[0].mxu0
        %6004 = vmatprep.mubr.bf16.mxu0 %v5778
        %6005 = vmatmul.mubr.bf16.gmra.mrb[0].mxu0 %v5735
        %v6006 = vpop.f32.mrb[0].mxu0
        %v6007 = vadd.f32 %v5802, %v6006
        %v6008 = vpop.f32.mrb[0].mxu0
        %v6009 = vpop.f32.mrb[0].mxu0
        %v6010 = vadd.f32 %v5802, %v6009
        %v6011 = vpop.f32.mrb[0].mxu0
        %6012 = vdwg.mxu0
        %6013 = vmatprep.subr.bf16.mxu0 0
        %6014 = vmatpush1.bf16.msra.mxu0 %v5916
        %6015 = vmatprep.subr.bf16.mxu0 0
        %6016 = vmatpush1.bf16.msra.mxu0 %v5917
        %6017 = vmatprep.subr.bf16.mxu0 0
        %6018 = vmatpush1.bf16.msra.mxu0 %v5918
        %6019 = vmatprep.subr.bf16.mxu0 0
        %6020 = vmatpush1.bf16.msra.mxu0 %v5919
        %6021 = vmatprep.subr.bf16.mxu0 0
        %6022 = vmatpush1.bf16.msra.mxu0 %v5920
        %6023 = vmatprep.subr.bf16.mxu0 0
        %6024 = vmatpush1.bf16.msra.mxu0 %v5921
        %6025 = vmatprep.subr.bf16.mxu0 0
        %6026 = vmatpush1.bf16.msra.mxu0 %v5922
        %6027 = vmatprep.subr.bf16.mxu0 0
        %6028 = vmatpush1.bf16.msra.mxu0 %v5923
        %6029 = vmatprep.subr.bf16.mxu0 0
        %6030 = vmatpush1.bf16.msra.mxu0 0
        %6031 = vmatprep.subr.bf16.mxu0 0
        %6032 = vmatpush1.bf16.msra.mxu0 0
        %6033 = vmatprep.subr.bf16.mxu0 0
        %6034 = vmatpush1.bf16.msra.mxu0 0
        %6035 = vmatprep.subr.bf16.mxu0 0
        %6036 = vmatpush1.bf16.msra.mxu0 0
        %6037 = vmatprep.subr.bf16.mxu0 0
        %6038 = vmatpush1.bf16.msra.mxu0 0
        %6039 = vmatprep.subr.bf16.mxu0 0
        %6040 = vmatpush1.bf16.msra.mxu0 0
        %6041 = vmatprep.subr.bf16.mxu0 0
        %6042 = vmatpush1.bf16.msra.mxu0 0
        %6043 = vmatprep.subr.bf16.mxu0 0
        %6044 = vmatpush1.bf16.msra.mxu0 0
        %6045 = vmatprep.mubr.bf16.mxu0 0
        %6046 = vmatmul.mubr.bf16.gmra.mrb[0].mxu0 %v5787
        %v6047 = vpop.f32.mrb[0].mxu0
        %v6048 = vadd.f32 %v5983, %v6047
        %v6049 = vpop.f32.mrb[0].mxu0
        %v6050 = vpop.f32.mrb[0].mxu0
        %v6051 = vadd.f32 %v5986, %v6050
        %v6052 = vpop.f32.mrb[0].mxu0
        %6053 = vmatprep.mubr.bf16.mxu0 0
        %6054 = vmatmul.mubr.bf16.gmra.mrb[0].mxu0 %v5789
        %v6055 = vpop.f32.mrb[0].mxu0
        %v6056 = vadd.f32 %v5991, %v6055
        %v6057 = vpop.f32.mrb[0].mxu0
        %v6058 = vpop.f32.mrb[0].mxu0
        %v6059 = vadd.f32 %v5994, %v6058
        %v6060 = vpop.f32.mrb[0].mxu0
        %6061 = vmatprep.mubr.bf16.mxu0 0
        %6062 = vmatmul.mubr.bf16.gmra.mrb[0].mxu0 %v5791
        %v6063 = vpop.f32.mrb[0].mxu0
        %v6064 = vadd.f32 %v5999, %v6063
        %v6065 = vpop.f32.mrb[0].mxu0
        %v6066 = vpop.f32.mrb[0].mxu0
        %v6067 = vadd.f32 %v6002, %v6066
        %v6068 = vpop.f32.mrb[0].mxu0
        %6069 = vmatprep.mubr.bf16.mxu0 0
        %6070 = vmatmul.mubr.bf16.gmra.mrb[0].mxu0 %v5793
        %v6071 = vpop.f32.mrb[0].mxu0
        %v6072 = vadd.f32 %v6007, %v6071
        %v6073 = vpop.f32.mrb[0].mxu0
        %v6074 = vpop.f32.mrb[0].mxu0
        %v6075 = vadd.f32 %v6010, %v6074
        %v6076 = vpop.f32.mrb[0].mxu0
        %6077 = vdwg.mxu0
        %6078 = vst [vmem:[%s954] sm:$0xff] %v6048
        %6079 = vst [vmem:[%s954 + $0x8] sm:$0xff] %v6051
        %6080 = vst [vmem:[%s954 + $0x10] sm:$0xff] %v6056
        %6081 = vst [vmem:[%s954 + $0x18] sm:$0xff] %v6059
        %6082 = vst [vmem:[%s954 + $0x20] sm:$0xff] %v6064
        %6083 = vst [vmem:[%s954 + $0x28] sm:$0xff] %v6067
        %6084 = vst [vmem:[%s954 + $0x30] sm:$0xff] %v6072
        %6085 = vst [vmem:[%s954 + $0x38] sm:$0xff] %v6075
        %s6086 = sand.u32 %s502, 1
        %s6087 = scalar_lea.sflag [#allocation4], %s6086
        %s6088 = sand.u32 %s502, 1
        %s6089 = smul.addr %s6088, 64
        %s6090 = scalar_lea.vmem [#allocation35], %s6089
        // Predicated region
        $region189: #{decoder_forward.1} parent=103 // pred_check
          %p6091 = pneg %p512
        $region190: #{decoder_forward.1} parent=103 // pred_check_branch
          %6093 = sbr.rel (%p6091) target = $region192
        $region191: #{decoder_forward.1} parent=103 // pred_region
          %s6095 = ssub.s32 1024, 1024
          %6096 = vsyncadd %s6087, %s6095
          %s6097 = smul.addr %s48, 8
          %s6098 = smul.addr %s6097, 128
          %s6099 = scalar_lea.hbm %s21, %s6098
          %s6100 = sshll.u32 %s6090, 4
          %s6101 = int_to_ptr.vmem [resolvable:$true] %s6100
          %6106 = dma.vmem_to_hbm [thread:$0]  %s6101, 1024, %s6099, %s6087, 128, 128, 8
        $region192: #{decoder_forward.1} parent=103 // pred_fallthru
          _
      $region104: #{decoder_forward.1} parent=5 // pred_fallthru
        _
      %p6107 = scmp.le.s32.totalorder 2, %s43
      // Predicated region
      $region193: #{decoder_forward.1} parent=5 // pred_check
        %p6108 = pneg %p6107
      $region194: #{decoder_forward.1} parent=5 // pred_check_branch
        %6110 = sbr.rel (%p6108) target = $region196
      $region195: #{decoder_forward.1} parent=5 // pred_region
        %s6111 = ssub.s32 %s43, 2
        // Predicated region
        $region197: #{decoder_forward.1} parent=195 // pred_check
          %p6112 = pneg %p518
        $region198: #{decoder_forward.1} parent=195 // pred_check_branch
          %6114 = sbr.rel (%p6112) target = $region200
        $region199: #{decoder_forward.1} parent=195 // pred_region
          %s6115 = sand.u32 %s503, 1
          %s6116 = scalar_lea.sflag [#allocation4], %s6115
          %s6117 = sand.u32 %s503, 1
          %s6118 = smul.addr %s6117, 64
          %s6119 = scalar_lea.vmem [#allocation35], %s6118
          %6120 = dma.done %s6116, 1024
        $region200: #{decoder_forward.1} parent=195 // pred_fallthru
          _
      $region196: #{decoder_forward.1} parent=5 // pred_fallthru
        _
    $region6: #{decoder_forward.1} parent=1 // loop_footer
      %s47 = sadd.s32 1, %s43
    $region7: #{decoder_forward.1} parent=1 // loop_footer_branch
      %42 = sbr.rel target = $region3
    $region8: #{decoder_forward.1} parent=1 // loop_exit
      _
    %6121 = vsyncpa [#allocation3], 1
    %s6122 = scalar_lea.sflag [#allocation3], 1
    %6123 = vsyncpa %s6122, 1
    %6124 = vsyncpa [#allocation6], 1
    %6125 = vsyncpa [#allocation9], 1
    %6126 = vsyncpa [#allocation12], 1
    %6127 = vsyncpa [#allocation15], 1
    %6128 = vsyncpa [#allocation18], 1
    %6129 = vsyncpa [#allocation21], 1
    %6130 = vsyncpa [#allocation24], 1
    %6131 = vsyncpa [#allocation27], 1
    %6132 = vsyncpa [#allocation30], 1
    %6133 = vsyncpa [#allocation33], 1
    %6134 = vsyncpa [#allocation4], 1
    %s6135 = scalar_lea.sflag [#allocation4], 1
    %6136 = vsyncpa %s6135, 1

</llo_original>
